<compile_context>
chip_gen: v7x
topology: tpu7x:2x2x1
jax: 0.10.0
libtpu: 0.0.40
codegen_flags: <defaults>
</compile_context>

<pallas_src>
import jax
import jax.numpy as jnp
from jax.experimental import pallas as pl
from jax.experimental.pallas import tpu as pltpu

# --- config straight from the module's __init__ ----------------------------------
IN_CH, IMG, PATCH, CLASSES, DIM, NUM_LAYERS = 1, 28, 7, 10, 512, 12
NUM_PATCHES = (IMG // PATCH) ** 2        # 16 tokens
PATCH_DIM = PATCH * PATCH * IN_CH        # 49
PATCH_PAD = 128                          # lane-dense pad of patch_dim
CLASSES_PAD = 128                        # lane-dense pad of the head output
LAYERS_PER_STEP = 2                      # layers fused per grid step
assert NUM_LAYERS % LAYERS_PER_STEP == 0


# --- the single fused forward kernel ----------------------------------------------
def _fused_forward_kernel(patches_ref, emb_w_ref, emb_b_ref,
                          w_ref, ws_ref, mixbd_ref, a_ref,
                          head_w_ref, head_b_ref,
                          logits_ref, tok_ref):
    step = pl.program_id(0)
    BN, D = tok_ref.shape

    # ---- step 0: patch embedding into the resident token stream ----
    @pl.when(step == 0)
    def _():
        tok_ref[...] = (
            jnp.dot(patches_ref[...].astype(jnp.bfloat16), emb_w_ref[...],
                    preferred_element_type=jnp.float32)
            + emb_b_ref[...])

    # ---- LAYERS_PER_STEP Remixer blocks (residual folded in) ----
    for k in range(LAYERS_PER_STEP):
        x = tok_ref[...]                                # (BN, D) f32 residual stream
        xb = x.astype(jnp.bfloat16)

        # dequant: int8 values are exact in bf16; per-output-channel scale applied after
        # the dot (f32 epilogue), so result == dot(x, W_int8 * scale).
        wb = w_ref[k].astype(jnp.bfloat16)              # (D, 3D) = [w_value | w_gate | w_out]
        sc = ws_ref[k]                                  # (1, 3D) f32 per-column scales

        # fused proj_in: single (BN, D) x (D, 2D) matmul; value/gate split is a free
        # lane-aligned static slice (offset 512 = 4 * 128).
        vg = (jnp.dot(xb, wb[:, :2 * DIM], preferred_element_type=jnp.float32)
              * sc[:, :2 * DIM])
        v = vg[:, :DIM]
        g = vg[:, DIM:]
        v = jax.nn.gelu(g, approximate=True) * v        # gated GELU, f32 epilogue

        # token mixing: block-diagonal kron(I_B, softmax(mixer_l)) -> one clean 2-D dot.
        mixed = jnp.dot(mixbd_ref[k], v, preferred_element_type=jnp.float32)

        a = a_ref[LAYERS_PER_STEP * step + k]           # sigmoid(alpha), SMEM scalar
        out = (v * mixed) * a + (v - mixed) * (1.0 - a)

        tok_ref[...] = x + (jnp.dot(out.astype(jnp.bfloat16), wb[:, 2 * DIM:],
                                    preferred_element_type=jnp.float32)
                            * sc[:, 2 * DIM:])

    # ---- last step: mean-pool + classifier head ----
    # (constant-index output block over the "arbitrary" layer axis -> flushed once at end)
    @pl.when(step == pl.num_programs(0) - 1)
    def _():
        Bsz = BN // NUM_PATCHES
        pooled = jnp.mean(tok_ref[...].reshape(Bsz, NUM_PATCHES, D), axis=1)   # (B, D)
        logits_ref[...] = (
            jnp.dot(pooled.astype(jnp.bfloat16), head_w_ref[...],
                    preferred_element_type=jnp.float32)
            + head_b_ref[...])


def remixer_forward(x, params):
    B = x.shape[0]
    nh = IMG // PATCH
    # NCHW -> (B, tokens, patch_dim):  'b c (h p1) (w p2) -> b (h w) (p1 p2 c)'
    p = x.reshape(B, IN_CH, nh, PATCH, nh, PATCH)
    p = jnp.transpose(p, (0, 2, 4, 3, 5, 1)).reshape(B, NUM_PATCHES, PATCH_DIM)
    p = jnp.pad(p, ((0, 0), (0, 0), (0, PATCH_PAD - PATCH_DIM)))
    p = p.reshape(B * NUM_PATCHES, PATCH_PAD)

    # input-independent preprocessing, hoisted out of the hot kernel
    mix_sm = jax.nn.softmax(params["mixer"], axis=-1)                 # (L, N, N) f32
    eye_b = jnp.eye(B, dtype=jnp.float32)
    mixbd = jax.vmap(lambda m: jnp.kron(eye_b, m))(mix_sm)            # (L, BN, BN)
    a_sig = jax.nn.sigmoid(params["alpha"])                           # (L,)      f32

    BN = B * NUM_PATCHES
    logits_pad = pl.pallas_call(
        _fused_forward_kernel,
        out_shape=jax.ShapeDtypeStruct((B, CLASSES_PAD), jnp.float32),
        grid=(NUM_LAYERS // LAYERS_PER_STEP,),
        in_specs=[
            # constant-index blocks: DMA'd once, stay resident across the layer loop
            pl.BlockSpec((BN, PATCH_PAD), lambda l: (0, 0)),              # patches
            pl.BlockSpec((PATCH_PAD, DIM), lambda l: (0, 0)),             # embed W (bf16)
            pl.BlockSpec((1, DIM), lambda l: (0, 0)),                     # embed b (f32)
            # per-step streamed weights: 2 layers x (D, 3D) int8, one coalesced DMA
            pl.BlockSpec((LAYERS_PER_STEP, DIM, 3 * DIM), lambda l: (l, 0, 0)),
            pl.BlockSpec((LAYERS_PER_STEP, 1, 3 * DIM), lambda l: (l, 0, 0)),   # scales
            pl.BlockSpec((LAYERS_PER_STEP, BN, BN), lambda l: (l, 0, 0)),  # block-diag mixer
            pl.BlockSpec(memory_space=pltpu.MemorySpace.SMEM),            # sigmoid(alpha)
            pl.BlockSpec((DIM, CLASSES_PAD), lambda l: (0, 0)),           # head W (bf16)
            pl.BlockSpec((1, CLASSES_PAD), lambda l: (0, 0)),             # head b (f32)
        ],
        out_specs=pl.BlockSpec((B, CLASSES_PAD), lambda l: (0, 0)),
        scratch_shapes=[pltpu.VMEM((BN, DIM), jnp.float32)],              # resident tokens
        compiler_params=pltpu.CompilerParams(
            dimension_semantics=("arbitrary",)),
    )(p, params["embed_w"], params["embed_b"],
      params["w_all"], params["w_scale"], mixbd, a_sig,
      params["head_w"], params["head_b"])

    return logits_pad[:, :CLASSES]


forward = jax.jit(remixer_forward)


# --- parameters (deterministic, shapes per the module) ----------------------------
def init_params(key):
    ks = iter(jax.random.split(key, 4 + 3 * NUM_LAYERS))

    def lin_w(k, fan_in, fan_out):
        lim = float(fan_in) ** -0.5
        return jax.random.uniform(k, (fan_in, fan_out), jnp.float32, -lim, lim)

    def lin_b(k, fan_in, n):
        lim = float(fan_in) ** -0.5
        return jax.random.uniform(k, (1, n), jnp.float32, -lim, lim)

    embed_w = jnp.zeros((PATCH_PAD, DIM), jnp.float32)
    embed_w = embed_w.at[:PATCH_DIM].set(lin_w(next(ks), PATCH_DIM, DIM))
    embed_b = lin_b(next(ks), PATCH_DIM, DIM)

    head_w = jnp.zeros((DIM, CLASSES_PAD), jnp.float32)
    head_w = head_w.at[:, :CLASSES].set(lin_w(next(ks), DIM, CLASSES))
    head_b = jnp.zeros((1, CLASSES_PAD), jnp.float32)
    head_b = head_b.at[:, :CLASSES].set(lin_b(next(ks), DIM, CLASSES))

    w_all_l, mixer_l = [], []
    for _ in range(NUM_LAYERS):
        w_in = lin_w(next(ks), DIM, 2 * DIM)            # proj_in  (bias=False): [value|gate]
        w_out = lin_w(next(ks), DIM, DIM)               # proj_out (bias=False)
        w_all_l.append(jnp.concatenate([w_in, w_out], axis=-1))       # (D, 3D)
        mixer_l.append(jax.random.normal(next(ks), (NUM_PATCHES, NUM_PATCHES),
                                         jnp.float32))
    w_all = jnp.stack(w_all_l)                          # (L, D, 3D) f32

    # symmetric int8 per-output-channel quantization; dequant is an in-kernel post-dot
    # f32 column scale.  Halves the dominant per-forward HBM weight stream (~18 -> ~9 MiB).
    amax = jnp.max(jnp.abs(w_all), axis=1, keepdims=True)             # (L, 1, 3D)
    w_scale = jnp.maximum(amax, 1e-8) / 127.0
    w_q = jnp.round(w_all / w_scale).astype(jnp.int8)

    return {
        "embed_w": embed_w.astype(jnp.bfloat16),        # (128, D)  bf16, zero-padded
        "embed_b": embed_b,                             # (1, D)    f32
        "head_w": head_w.astype(jnp.bfloat16),          # (D, 128)  bf16, zero-padded
        "head_b": head_b,                               # (1, 128)  f32, zero-padded
        "w_all": w_q,                                   # (L, D, 3D) int8 [value|gate|out]
        "w_scale": w_scale,                             # (L, 1, 3D) f32 per-column scales
        "mixer": jnp.stack(mixer_l),                    # (L, N, N) f32 (pre-softmax)
        "alpha": jnp.zeros((NUM_LAYERS,), jnp.float32), # torch.tensor(0.) per layer
    }


if __name__ == "__main__":
    key = jax.random.PRNGKey(0)
    pkey, xkey = jax.random.split(key)
    params = init_params(pkey)
    x = jax.random.normal(xkey, (2, IN_CH, IMG, IMG), dtype=jnp.float32)  # NCHW, like torch

    logits = forward(x, params)
    jax.block_until_ready(logits)
    assert logits.shape == (2, CLASSES) and logits.dtype == jnp.float32
    print("KERNEL_OK")
</pallas_src>

<mosaic_0001>
module attributes {stable_mosaic.version = 11 : i64} {
  func.func @_fused_forward_kernel(%arg0: i32, %arg1: memref<32x128xf32, #tpu.memory_space<vmem>>, %arg2: memref<128x512xbf16, #tpu.memory_space<vmem>>, %arg3: memref<1x512xf32, #tpu.memory_space<vmem>>, %arg4: memref<2x512x1536xi8, #tpu.memory_space<vmem>>, %arg5: memref<2x1x1536xf32, #tpu.memory_space<vmem>>, %arg6: memref<2x32x32xf32, #tpu.memory_space<vmem>>, %arg7: memref<12xf32, #tpu.memory_space<smem>>, %arg8: memref<512x128xbf16, #tpu.memory_space<vmem>>, %arg9: memref<1x128xf32, #tpu.memory_space<vmem>>, %arg10: memref<2x128xf32, #tpu.memory_space<vmem>>, %arg11: memref<32x512xf32, #tpu.memory_space<vmem>>) attributes {dimension_semantics = [#tpu.dimension_semantics<arbitrary>], iteration_bounds = array<i64: 6>, scalar_prefetch = 0 : i64, scratch_operands = 1 : i64, tpu.core_type = #tpu.core_type<tc>, window_params = [{pipeline_mode = #tpu.pipeline_mode<synchronous>, transform_indices = @transform_0, window_bounds = array<i64: 32, 128>}, {pipeline_mode = #tpu.pipeline_mode<synchronous>, transform_indices = @transform_1, window_bounds = array<i64: 128, 512>}, {pipeline_mode = #tpu.pipeline_mode<synchronous>, transform_indices = @transform_2, window_bounds = array<i64: 1, 512>}, {transform_indices = @transform_3, window_bounds = array<i64: 2, 512, 1536>}, {transform_indices = @transform_4, window_bounds = array<i64: 2, 1, 1536>}, {transform_indices = @transform_5, window_bounds = array<i64: 2, 32, 32>}, {transform_indices = @transform_6, window_bounds = array<i64: 12>}, {pipeline_mode = #tpu.pipeline_mode<synchronous>, transform_indices = @transform_7, window_bounds = array<i64: 512, 128>}, {pipeline_mode = #tpu.pipeline_mode<synchronous>, transform_indices = @transform_8, window_bounds = array<i64: 1, 128>}, {pipeline_mode = #tpu.pipeline_mode<synchronous>, transform_indices = @transform_9, window_bounds = array<i64: 2, 128>}]} {
    %c0_i32 = arith.constant 0 : i32
    %0 = arith.cmpi eq, %arg0, %c0_i32 : i32
    %1 = arith.extui %0 : i1 to i32
    %c0_i32_0 = arith.constant 0 : i32
    %2 = arith.cmpi ne, %1, %c0_i32_0 : i32
    scf.if %2 {
      %c0_43 = arith.constant 0 : index
      %c0_44 = arith.constant 0 : index
      %108 = vector.load %arg1[%c0_43, %c0_44] : memref<32x128xf32, #tpu.memory_space<vmem>>, vector<32x128xf32>
      %109 = arith.truncf %108 : vector<32x128xf32> to vector<32x128xbf16>
      %c0_45 = arith.constant 0 : index
      %c0_46 = arith.constant 0 : index
      %110 = vector.load %arg2[%c0_45, %c0_46] : memref<128x512xbf16, #tpu.memory_space<vmem>>, vector<128x512xbf16>
      %cst_47 = arith.constant dense<0.000000e+00> : vector<32x512xf32>
      %111 = tpu.matmul %109, %110, %cst_47 {dimension_numbers = #tpu.dot_dimension_numbers<[1], [0], [0], [1], [0, 0, 1, 1], [], []>} : vector<32x128xbf16>, vector<128x512xbf16>, vector<32x512xf32> -> vector<32x512xf32>
      %c0_48 = arith.constant 0 : index
      %c0_49 = arith.constant 0 : index
      %112 = vector.load %arg3[%c0_48, %c0_49] : memref<1x512xf32, #tpu.memory_space<vmem>>, vector<1x512xf32>
      %113 = vector.broadcast %112 : vector<1x512xf32> to vector<32x512xf32>
      %114 = arith.addf %111, %113 : vector<32x512xf32>
      %c0_50 = arith.constant 0 : index
      %c0_51 = arith.constant 0 : index
      %115 = vector.load %arg11[%c0_50, %c0_51] : memref<32x512xf32, #tpu.memory_space<vmem>>, vector<32x512xf32>
      tpu.vector_store %arg11[%c0_50, %c0_51], %114 {strides = array<i32>} : memref<32x512xf32, #tpu.memory_space<vmem>>, vector<32x512xf32>,
    } else {
    }
    %c0 = arith.constant 0 : index
    %c0_1 = arith.constant 0 : index
    %3 = vector.load %arg11[%c0, %c0_1] : memref<32x512xf32, #tpu.memory_space<vmem>>, vector<32x512xf32>
    %4 = arith.truncf %3 : vector<32x512xf32> to vector<32x512xbf16>
    %c0_2 = arith.constant 0 : index
    %c0_3 = arith.constant 0 : index
    %c0_4 = arith.constant 0 : index
    %5 = vector.load %arg4[%c0_2, %c0_3, %c0_4] : memref<2x512x1536xi8, #tpu.memory_space<vmem>>, vector<1x512x1536xi8>
    %6 = vector.shape_cast %5 : vector<1x512x1536xi8> to vector<512x1536xi8>
    %7 = arith.sitofp %6 : vector<512x1536xi8> to vector<512x1536xbf16>
    %c0_5 = arith.constant 0 : index
    %c0_6 = arith.constant 0 : index
    %c0_7 = arith.constant 0 : index
    %8 = vector.load %arg5[%c0_5, %c0_6, %c0_7] : memref<2x1x1536xf32, #tpu.memory_space<vmem>>, vector<1x1x1536xf32>
    %9 = vector.shape_cast %8 : vector<1x1x1536xf32> to vector<1x1536xf32>
    %10 = vector.extract_strided_slice %7 {offsets = [0, 0], sizes = [512, 1024], strides = [1, 1]} : vector<512x1536xbf16> to vector<512x1024xbf16>
    %cst = arith.constant dense<0.000000e+00> : vector<32x1024xf32>
    %11 = tpu.matmul %4, %10, %cst {dimension_numbers = #tpu.dot_dimension_numbers<[1], [0], [0], [1], [0, 0, 1, 1], [], []>} : vector<32x512xbf16>, vector<512x1024xbf16>, vector<32x1024xf32> -> vector<32x1024xf32>
    %12 = vector.extract_strided_slice %9 {offsets = [0, 0], sizes = [1, 1024], strides = [1, 1]} : vector<1x1536xf32> to vector<1x1024xf32>
    %13 = vector.broadcast %12 : vector<1x1024xf32> to vector<32x1024xf32>
    %14 = arith.mulf %11, %13 : vector<32x1024xf32>
    %15 = vector.extract_strided_slice %14 {offsets = [0, 0], sizes = [32, 512], strides = [1, 1]} : vector<32x1024xf32> to vector<32x512xf32>
    %16 = vector.extract_strided_slice %14 {offsets = [0, 512], sizes = [32, 512], strides = [1, 1]} : vector<32x1024xf32> to vector<32x512xf32>
    %17 = arith.mulf %16, %16 : vector<32x512xf32>
    %18 = arith.mulf %16, %17 : vector<32x512xf32>
    %cst_8 = arith.constant 4.471500e-02 : f32
    %19 = vector.broadcast %cst_8 : f32 to vector<32x512xf32>
    %20 = arith.mulf %19, %18 : vector<32x512xf32>
    %21 = arith.addf %16, %20 : vector<32x512xf32>
    %cst_9 = arith.constant 0.797884583 : f32
    %22 = vector.broadcast %cst_9 : f32 to vector<32x512xf32>
    %23 = arith.mulf %22, %21 : vector<32x512xf32>
    %24 = math.tanh %23 : vector<32x512xf32>
    %cst_10 = arith.constant 1.000000e+00 : f32
    %25 = vector.broadcast %cst_10 : f32 to vector<32x512xf32>
    %26 = arith.addf %25, %24 : vector<32x512xf32>
    %cst_11 = arith.constant 5.000000e-01 : f32
    %27 = vector.broadcast %cst_11 : f32 to vector<32x512xf32>
    %28 = arith.mulf %27, %26 : vector<32x512xf32>
    %29 = arith.mulf %16, %28 : vector<32x512xf32>
    %30 = arith.mulf %29, %15 : vector<32x512xf32>
    %c0_12 = arith.constant 0 : index
    %c0_13 = arith.constant 0 : index
    %c0_14 = arith.constant 0 : index
    %31 = vector.load %arg6[%c0_12, %c0_13, %c0_14] : memref<2x32x32xf32, #tpu.memory_space<vmem>>, vector<1x32x32xf32>
    %32 = vector.shape_cast %31 : vector<1x32x32xf32> to vector<32x32xf32>
    %cst_15 = arith.constant dense<0.000000e+00> : vector<32x512xf32>
    %33 = tpu.matmul %32, %30, %cst_15 {dimension_numbers = #tpu.dot_dimension_numbers<[1], [0], [0], [1], [0, 0, 1, 1], [], []>} : vector<32x32xf32>, vector<32x512xf32>, vector<32x512xf32> -> vector<32x512xf32>
    %c2_i32 = arith.constant 2 : i32
    %34 = arith.muli %c2_i32, %arg0 : i32
    %c0_i32_16 = arith.constant 0 : i32
    %35 = arith.addi %34, %c0_i32_16 : i32
    %36 = arith.index_cast %35 : i32 to index
    %37 = memref.load %arg7[%36] : memref<12xf32, #tpu.memory_space<smem>>
    %38 = arith.mulf %30, %33 : vector<32x512xf32>
    %39 = vector.broadcast %37 : f32 to vector<32x512xf32>
    %40 = arith.mulf %38, %39 : vector<32x512xf32>
    %41 = arith.subf %30, %33 : vector<32x512xf32>
    %cst_17 = arith.constant 1.000000e+00 : f32
    %42 = arith.subf %cst_17, %37 : f32
    %43 = vector.broadcast %42 : f32 to vector<32x512xf32>
    %44 = arith.mulf %41, %43 : vector<32x512xf32>
    %45 = arith.addf %40, %44 : vector<32x512xf32>
    %46 = arith.truncf %45 : vector<32x512xf32> to vector<32x512xbf16>
    %47 = vector.extract_strided_slice %7 {offsets = [0, 1024], sizes = [512, 512], strides = [1, 1]} : vector<512x1536xbf16> to vector<512x512xbf16>
    %cst_18 = arith.constant dense<0.000000e+00> : vector<32x512xf32>
    %48 = tpu.matmul %46, %47, %cst_18 {dimension_numbers = #tpu.dot_dimension_numbers<[1], [0], [0], [1], [0, 0, 1, 1], [], []>} : vector<32x512xbf16>, vector<512x512xbf16>, vector<32x512xf32> -> vector<32x512xf32>
    %49 = vector.extract_strided_slice %9 {offsets = [0, 1024], sizes = [1, 512], strides = [1, 1]} : vector<1x1536xf32> to vector<1x512xf32>
    %50 = vector.broadcast %49 : vector<1x512xf32> to vector<32x512xf32>
    %51 = arith.mulf %48, %50 : vector<32x512xf32>
    %52 = arith.addf %3, %51 : vector<32x512xf32>
    %c0_19 = arith.constant 0 : index
    %c0_20 = arith.constant 0 : index
    %53 = vector.load %arg11[%c0_19, %c0_20] : memref<32x512xf32, #tpu.memory_space<vmem>>, vector<32x512xf32>
    tpu.vector_store %arg11[%c0_19, %c0_20], %52 {strides = array<i32>} : memref<32x512xf32, #tpu.memory_space<vmem>>, vector<32x512xf32>,
    %c0_21 = arith.constant 0 : index
    %c0_22 = arith.constant 0 : index
    %54 = vector.load %arg11[%c0_21, %c0_22] : memref<32x512xf32, #tpu.memory_space<vmem>>, vector<32x512xf32>
    %55 = arith.truncf %54 : vector<32x512xf32> to vector<32x512xbf16>
    %c1 = arith.constant 1 : index
    %c0_23 = arith.constant 0 : index
    %c0_24 = arith.constant 0 : index
    %56 = vector.load %arg4[%c1, %c0_23, %c0_24] : memref<2x512x1536xi8, #tpu.memory_space<vmem>>, vector<1x512x1536xi8>
    %57 = vector.shape_cast %56 : vector<1x512x1536xi8> to vector<512x1536xi8>
    %58 = arith.sitofp %57 : vector<512x1536xi8> to vector<512x1536xbf16>
    %c1_25 = arith.constant 1 : index
    %c0_26 = arith.constant 0 : index
    %c0_27 = arith.constant 0 : index
    %59 = vector.load %arg5[%c1_25, %c0_26, %c0_27] : memref<2x1x1536xf32, #tpu.memory_space<vmem>>, vector<1x1x1536xf32>
    %60 = vector.shape_cast %59 : vector<1x1x1536xf32> to vector<1x1536xf32>
    %61 = vector.extract_strided_slice %58 {offsets = [0, 0], sizes = [512, 1024], strides = [1, 1]} : vector<512x1536xbf16> to vector<512x1024xbf16>
    %cst_28 = arith.constant dense<0.000000e+00> : vector<32x1024xf32>
    %62 = tpu.matmul %55, %61, %cst_28 {dimension_numbers = #tpu.dot_dimension_numbers<[1], [0], [0], [1], [0, 0, 1, 1], [], []>} : vector<32x512xbf16>, vector<512x1024xbf16>, vector<32x1024xf32> -> vector<32x1024xf32>
    %63 = vector.extract_strided_slice %60 {offsets = [0, 0], sizes = [1, 1024], strides = [1, 1]} : vector<1x1536xf32> to vector<1x1024xf32>
    %64 = vector.broadcast %63 : vector<1x1024xf32> to vector<32x1024xf32>
    %65 = arith.mulf %62, %64 : vector<32x1024xf32>
    %66 = vector.extract_strided_slice %65 {offsets = [0, 0], sizes = [32, 512], strides = [1, 1]} : vector<32x1024xf32> to vector<32x512xf32>
    %67 = vector.extract_strided_slice %65 {offsets = [0, 512], sizes = [32, 512], strides = [1, 1]} : vector<32x1024xf32> to vector<32x512xf32>
    %68 = arith.mulf %67, %67 : vector<32x512xf32>
    %69 = arith.mulf %67, %68 : vector<32x512xf32>
    %cst_29 = arith.constant 4.471500e-02 : f32
    %70 = vector.broadcast %cst_29 : f32 to vector<32x512xf32>
    %71 = arith.mulf %70, %69 : vector<32x512xf32>
    %72 = arith.addf %67, %71 : vector<32x512xf32>
    %cst_30 = arith.constant 0.797884583 : f32
    %73 = vector.broadcast %cst_30 : f32 to vector<32x512xf32>
    %74 = arith.mulf %73, %72 : vector<32x512xf32>
    %75 = math.tanh %74 : vector<32x512xf32>
    %cst_31 = arith.constant 1.000000e+00 : f32
    %76 = vector.broadcast %cst_31 : f32 to vector<32x512xf32>
    %77 = arith.addf %76, %75 : vector<32x512xf32>
    %cst_32 = arith.constant 5.000000e-01 : f32
    %78 = vector.broadcast %cst_32 : f32 to vector<32x512xf32>
    %79 = arith.mulf %78, %77 : vector<32x512xf32>
    %80 = arith.mulf %67, %79 : vector<32x512xf32>
    %81 = arith.mulf %80, %66 : vector<32x512xf32>
    %c1_33 = arith.constant 1 : index
    %c0_34 = arith.constant 0 : index
    %c0_35 = arith.constant 0 : index
    %82 = vector.load %arg6[%c1_33, %c0_34, %c0_35] : memref<2x32x32xf32, #tpu.memory_space<vmem>>, vector<1x32x32xf32>
    %83 = vector.shape_cast %82 : vector<1x32x32xf32> to vector<32x32xf32>
    %cst_36 = arith.constant dense<0.000000e+00> : vector<32x512xf32>
    %84 = tpu.matmul %83, %81, %cst_36 {dimension_numbers = #tpu.dot_dimension_numbers<[1], [0], [0], [1], [0, 0, 1, 1], [], []>} : vector<32x32xf32>, vector<32x512xf32>, vector<32x512xf32> -> vector<32x512xf32>
    %c2_i32_37 = arith.constant 2 : i32
    %85 = arith.muli %c2_i32_37, %arg0 : i32
    %c1_i32 = arith.constant 1 : i32
    %86 = arith.addi %85, %c1_i32 : i32
    %87 = arith.index_cast %86 : i32 to index
    %88 = memref.load %arg7[%87] : memref<12xf32, #tpu.memory_space<smem>>
    %89 = arith.mulf %81, %84 : vector<32x512xf32>
    %90 = vector.broadcast %88 : f32 to vector<32x512xf32>
    %91 = arith.mulf %89, %90 : vector<32x512xf32>
    %92 = arith.subf %81, %84 : vector<32x512xf32>
    %cst_38 = arith.constant 1.000000e+00 : f32
    %93 = arith.subf %cst_38, %88 : f32
    %94 = vector.broadcast %93 : f32 to vector<32x512xf32>
    %95 = arith.mulf %92, %94 : vector<32x512xf32>
    %96 = arith.addf %91, %95 : vector<32x512xf32>
    %97 = arith.truncf %96 : vector<32x512xf32> to vector<32x512xbf16>
    %98 = vector.extract_strided_slice %58 {offsets = [0, 1024], sizes = [512, 512], strides = [1, 1]} : vector<512x1536xbf16> to vector<512x512xbf16>
    %cst_39 = arith.constant dense<0.000000e+00> : vector<32x512xf32>
    %99 = tpu.matmul %97, %98, %cst_39 {dimension_numbers = #tpu.dot_dimension_numbers<[1], [0], [0], [1], [0, 0, 1, 1], [], []>} : vector<32x512xbf16>, vector<512x512xbf16>, vector<32x512xf32> -> vector<32x512xf32>
    %100 = vector.extract_strided_slice %60 {offsets = [0, 1024], sizes = [1, 512], strides = [1, 1]} : vector<1x1536xf32> to vector<1x512xf32>
    %101 = vector.broadcast %100 : vector<1x512xf32> to vector<32x512xf32>
    %102 = arith.mulf %99, %101 : vector<32x512xf32>
    %103 = arith.addf %54, %102 : vector<32x512xf32>
    %c0_40 = arith.constant 0 : index
    %c0_41 = arith.constant 0 : index
    %104 = vector.load %arg11[%c0_40, %c0_41] : memref<32x512xf32, #tpu.memory_space<vmem>>, vector<32x512xf32>
    tpu.vector_store %arg11[%c0_40, %c0_41], %103 {strides = array<i32>} : memref<32x512xf32, #tpu.memory_space<vmem>>, vector<32x512xf32>,
    %c5_i32 = arith.constant 5 : i32
    %105 = arith.cmpi eq, %arg0, %c5_i32 : i32
    %106 = arith.extui %105 : i1 to i32
    %c0_i32_42 = arith.constant 0 : i32
    %107 = arith.cmpi ne, %106, %c0_i32_42 : i32
    scf.if %107 {
      %c0_43 = arith.constant 0 : index
      %c0_44 = arith.constant 0 : index
      %108 = vector.load %arg11[%c0_43, %c0_44] : memref<32x512xf32, #tpu.memory_space<vmem>>, vector<32x512xf32>
      %109 = vector.shape_cast %108 : vector<32x512xf32> to vector<2x16x512xf32>
      %cst_45 = arith.constant dense<0.000000e+00> : vector<2x512xf32>
      %110 = vector.multi_reduction <add>, %109, %cst_45 [1] : vector<2x16x512xf32> to vector<2x512xf32>
      %cst_46 = arith.constant 1.600000e+01 : f32
      %111 = vector.broadcast %cst_46 : f32 to vector<2x512xf32>
      %112 = arith.divf %110, %111 : vector<2x512xf32>
      %113 = arith.truncf %112 : vector<2x512xf32> to vector<2x512xbf16>
      %c0_47 = arith.constant 0 : index
      %c0_48 = arith.constant 0 : index
      %114 = vector.load %arg8[%c0_47, %c0_48] : memref<512x128xbf16, #tpu.memory_space<vmem>>, vector<512x128xbf16>
      %cst_49 = arith.constant dense<0.000000e+00> : vector<2x128xf32>
      %115 = tpu.matmul %113, %114, %cst_49 {dimension_numbers = #tpu.dot_dimension_numbers<[1], [0], [0], [1], [0, 0, 1, 1], [], []>} : vector<2x512xbf16>, vector<512x128xbf16>, vector<2x128xf32> -> vector<2x128xf32>
      %c0_50 = arith.constant 0 : index
      %c0_51 = arith.constant 0 : index
      %116 = vector.load %arg9[%c0_50, %c0_51] : memref<1x128xf32, #tpu.memory_space<vmem>>, vector<1x128xf32>
      %117 = vector.broadcast %116 : vector<1x128xf32> to vector<2x128xf32>
      %118 = arith.addf %115, %117 : vector<2x128xf32>
      %c0_52 = arith.constant 0 : index
      %c0_53 = arith.constant 0 : index
      %119 = vector.load %arg10[%c0_52, %c0_53] : memref<2x128xf32, #tpu.memory_space<vmem>>, vector<2x128xf32>
      tpu.vector_store %arg10[%c0_52, %c0_53], %118 {strides = array<i32>} : memref<2x128xf32, #tpu.memory_space<vmem>>, vector<2x128xf32>,
    } else {
    }
    return
  }
  func.func @transform_0(%arg0: i32) -> (i32, i32) {
    %c0_i32 = arith.constant 0 : i32
    %c0_i32_0 = arith.constant 0 : i32
    %c0_i32_1 = arith.constant 0 : i32
    return %c0_i32, %c0_i32_0 : i32, i32
  }
  func.func @transform_1(%arg0: i32) -> (i32, i32) {
    %c0_i32 = arith.constant 0 : i32
    %c0_i32_0 = arith.constant 0 : i32
    %c0_i32_1 = arith.constant 0 : i32
    return %c0_i32, %c0_i32_0 : i32, i32
  }
  func.func @transform_2(%arg0: i32) -> (i32, i32) {
    %c0_i32 = arith.constant 0 : i32
    %c0_i32_0 = arith.constant 0 : i32
    %c0_i32_1 = arith.constant 0 : i32
    return %c0_i32, %c0_i32_0 : i32, i32
  }
  func.func @transform_3(%arg0: i32) -> (i32, i32, i32) {
    %c0_i32 = arith.constant 0 : i32
    %c0_i32_0 = arith.constant 0 : i32
    %c0_i32_1 = arith.constant 0 : i32
    return %arg0, %c0_i32, %c0_i32_0 : i32, i32, i32
  }
  func.func @transform_4(%arg0: i32) -> (i32, i32, i32) {
    %c0_i32 = arith.constant 0 : i32
    %c0_i32_0 = arith.constant 0 : i32
    %c0_i32_1 = arith.constant 0 : i32
    return %arg0, %c0_i32, %c0_i32_0 : i32, i32, i32
  }
  func.func @transform_5(%arg0: i32) -> (i32, i32, i32) {
    %c0_i32 = arith.constant 0 : i32
    %c0_i32_0 = arith.constant 0 : i32
    %c0_i32_1 = arith.constant 0 : i32
    return %arg0, %c0_i32, %c0_i32_0 : i32, i32, i32
  }
  func.func @transform_6(%arg0: i32) -> i32 {
    %c0_i32 = arith.constant 0 : i32
    %c0_i32_0 = arith.constant 0 : i32
    return %c0_i32 : i32
  }
  func.func @transform_7(%arg0: i32) -> (i32, i32) {
    %c0_i32 = arith.constant 0 : i32
    %c0_i32_0 = arith.constant 0 : i32
    %c0_i32_1 = arith.constant 0 : i32
    return %c0_i32, %c0_i32_0 : i32, i32
  }
  func.func @transform_8(%arg0: i32) -> (i32, i32) {
    %c0_i32 = arith.constant 0 : i32
    %c0_i32_0 = arith.constant 0 : i32
    %c0_i32_1 = arith.constant 0 : i32
    return %c0_i32, %c0_i32_0 : i32, i32
  }
  func.func @transform_9(%arg0: i32) -> (i32, i32) {
    %c0_i32 = arith.constant 0 : i32
    %c0_i32_0 = arith.constant 0 : i32
    %c0_i32_1 = arith.constant 0 : i32
    return %c0_i32, %c0_i32_0 : i32, i32
  }
}

</mosaic_0001>

<llo_original>
// kernel: remixer_forward.1
$region0: #{remixer_forward.1}
  #allocation0 [shape = 'u32[]', space=smem, size = 0x4, offset = 0x4, fixed_abs, tag = 'smem constant byte address 0x4 - core index']
  #allocation1 [shape = 'u32[144,128]{1,0:T(1,128)}', space=vmem, size = 0x12000, scoped, tag = 'internal scratch']
  #allocation2 [shape = 'f32[32,512]{1,0:T(8,128)}', space=vmem, size = 0x10000, scoped, tag = 'scratch operand']
  %s0 = inlined_call_operand.vmem [shape: f32[32,128], index: 0, kind: input, shape index: {}]
  %s1 = inlined_call_operand.hbm [shape: bf16[128,512], index: 1, kind: input, shape index: {}]
  %s2 = inlined_call_operand.hbm [shape: f32[1,512], index: 2, kind: input, shape index: {}]
  %s3 = inlined_call_operand.hbm [shape: s8[12,512,1536], index: 3, kind: input, shape index: {}]
  %s4 = inlined_call_operand.hbm [shape: f32[12,1,1536], index: 4, kind: input, shape index: {}]
  %s5 = inlined_call_operand.vmem [shape: f32[12,32,32], index: 5, kind: input, shape index: {}]
  %s6 = inlined_call_operand.vmem [shape: f32[12], index: 6, kind: input, shape index: {}]
  %s7 = inlined_call_operand.hbm [shape: bf16[512,128], index: 7, kind: input, shape index: {}]
  %s8 = inlined_call_operand.hbm [shape: f32[1,128], index: 8, kind: input, shape index: {}]
  %s9 = inlined_call_operand.hbm [shape: f32[2,128], index: 9, kind: output, shape index: {}]
  %s10 = sld [smem:[#allocation0]]
  $region105: #{remixer_forward.1} parent=0
    _
  %s12 = ssub.s32 1, %s10
  %s13 = scalar_select 0, %s12, %s10
  $region1: #{remixer_forward.1} parent=0
    #allocation3 [shape = 'u8[131072]{0}', space=vmem, size = 0x20000, scoped, tag = 'input window, operand 1, single buffered']
    #allocation4 [shape = 's32[2]{0}', space=sflag, size = 0x8, scoped, tag = 'scoped memory for remixer_forward.1']
    #allocation5 [shape = 's32[2]{0}', space=sflag, size = 0x8, scoped, tag = 'scoped memory for remixer_forward.1']
    #allocation6 [shape = 's32[2]{0}', space=sflag, size = 0x8, scoped, tag = 'scoped memory for remixer_forward.1']
    #allocation7 [shape = 'u8[2048]{0}', space=vmem, size = 0x800, scoped, tag = 'input window, operand 2, single buffered']
    #allocation8 [shape = 's32[1]{0}', space=sflag, size = 0x4, scoped, tag = 'scoped memory for remixer_forward.1']
    #allocation9 [shape = 'u8[3145728]{0}', space=vmem, size = 0x300000, scoped, tag = 'input window, operand 3']
    #allocation10 [shape = 'u8[24576]{0}', space=vmem, size = 0x6000, scoped, tag = 'input window, operand 4']
    #allocation11 [shape = 'u8[512]{0}', space=smem, size = 0x200, scoped, tag = 'input window, operand 6, single buffered']
    #allocation12 [shape = 'u8[131072]{0}', space=vmem, size = 0x20000, scoped, tag = 'input window, operand 7, single buffered']
    #allocation13 [shape = 'u8[512]{0}', space=vmem, size = 0x400, scoped, tag = 'input window, operand 8, single buffered']
    #allocation14 [shape = 's32[1]{0}', space=sflag, size = 0x4, scoped, tag = 'scoped memory for remixer_forward.1']
    #allocation15 [shape = 'u8[1024]{0}', space=vmem, size = 0x400, scoped, tag = 'output window, operand 0, single buffered']
    %14 = vsyncpa [#allocation4], 0
    %15 = vsyncpa [#allocation8], 0
    %16 = vsyncpa [#allocation6], 0
    %17 = vsyncpa [#allocation14], 0
    %18 = vsyncpa [#allocation5], 0
    loop: start=0, step=1, limit=8
    $region2: #{remixer_forward.1} parent=1 // loop_pre_header
      _
    $region3: #{remixer_forward.1} parent=1 // loop_header
      %s20 = sphi 0, %s24
      %p21 = scmp.ge.s32.totalorder %s20, 8
      %s28 = sphi 0, %s28
      %s30 = sphi 0, %s28
      %s31 = sphi 0, %s30
      %s45 = sphi 0, %s31
      %s49 = sphi 0, %s49
      %s51 = sphi 0, %s49
      %s52 = sphi 0, %s51
      %s66 = sphi 0, %s52
      %s70 = sphi 0, %s70
      %s72 = sphi 0, %s70
      %s73 = sphi 0, %s72
      %s87 = sphi 0, %s73
      %s93 = sphi 0, %s95
      %s96 = sphi 0, %s93
      %s97 = sphi 0, %s96
      %s113 = sphi 0, %s97
      %s119 = sphi 0, %s121
      %s122 = sphi 0, %s119
      %s123 = sphi 0, %s122
      %s139 = sphi 0, %s123
      %s145 = sphi 0, %s147
      %s148 = sphi 0, %s145
      %s149 = sphi 0, %s148
      %s165 = sphi 0, %s149
      %s169 = sphi 0, %s169
      %s171 = sphi 0, %s169
      %s172 = sphi 0, %s171
      %s186 = sphi 0, %s172
      %s190 = sphi 0, %s190
      %s192 = sphi 0, %s190
      %s193 = sphi 0, %s192
      %s207 = sphi 0, %s193
      %s211 = sphi 0, %s211
      %s213 = sphi 0, %s211
      %s214 = sphi 0, %s213
      %s228 = sphi 0, %s214
      %s232 = sphi 0, %s232
      %s234 = sphi 0, %s232
      %s235 = sphi 0, %s234
      %s249 = sphi 0, %s235
    $region4: #{remixer_forward.1} parent=1 // loop_header_branch
      %23 = sbr.rel (%p21) target = $region8
    $region5: #{remixer_forward.1} parent=1 // loop_body
      %s25 = ssub.s32 %s20, 1
      %s26 = ssub.s32 %s20, 2
      %s27 = sadd.s32 %s20, 1
      %s29 = sadd.s32 %s28, 1
      %p32 = scmp.eq.s32.totalorder %s20, 5
      %p33 = scmp.ne.s32.totalorder %s28, %s30
      %p34 = scmp.eq.s32.totalorder %s20, 0
      %p35 = por %p33, %p34
      %p36 = scmp.ne.s32.totalorder %s28, %s30
      %p37 = scmp.eq.s32.totalorder %s25, 5
      %p38 = por %p36, %p37
      %p39 = scmp.ne.s32.totalorder %s30, %s31
      %p40 = scmp.eq.s32.totalorder %s25, 0
      %p41 = por %p39, %p40
      %p42 = scmp.ne.s32.totalorder %s30, %s31
      %p43 = scmp.eq.s32.totalorder %s26, 5
      %p44 = por %p42, %p43
      %p46 = scmp.ne.s32.totalorder %s31, %s45
      %p47 = scmp.eq.s32.totalorder %s26, 0
      %p48 = por %p46, %p47
      %s50 = sadd.s32 %s49, 1
      %p53 = scmp.eq.s32.totalorder %s20, 5
      %p54 = scmp.ne.s32.totalorder %s49, %s51
      %p55 = scmp.eq.s32.totalorder %s20, 0
      %p56 = por %p54, %p55
      %p57 = scmp.ne.s32.totalorder %s49, %s51
      %p58 = scmp.eq.s32.totalorder %s25, 5
      %p59 = por %p57, %p58
      %p60 = scmp.ne.s32.totalorder %s51, %s52
      %p61 = scmp.eq.s32.totalorder %s25, 0
      %p62 = por %p60, %p61
      %p63 = scmp.ne.s32.totalorder %s51, %s52
      %p64 = scmp.eq.s32.totalorder %s26, 5
      %p65 = por %p63, %p64
      %p67 = scmp.ne.s32.totalorder %s52, %s66
      %p68 = scmp.eq.s32.totalorder %s26, 0
      %p69 = por %p67, %p68
      %s71 = sadd.s32 %s70, 1
      %p74 = scmp.eq.s32.totalorder %s20, 5
      %p75 = scmp.ne.s32.totalorder %s70, %s72
      %p76 = scmp.eq.s32.totalorder %s20, 0
      %p77 = por %p75, %p76
      %p78 = scmp.ne.s32.totalorder %s70, %s72
      %p79 = scmp.eq.s32.totalorder %s25, 5
      %p80 = por %p78, %p79
      %p81 = scmp.ne.s32.totalorder %s72, %s73
      %p82 = scmp.eq.s32.totalorder %s25, 0
      %p83 = por %p81, %p82
      %p84 = scmp.ne.s32.totalorder %s72, %s73
      %p85 = scmp.eq.s32.totalorder %s26, 5
      %p86 = por %p84, %p85
      %p88 = scmp.ne.s32.totalorder %s73, %s87
      %p89 = scmp.eq.s32.totalorder %s26, 0
      %p90 = por %p88, %p89
      %s91 = ssub.s32 %s20, %s27
      %p92 = scmp.eq.s32.totalorder %s91, 0
      %s94 = sadd.s32 %s93, 1
      %s95 = scalar_select %p92, %s93, %s94
      %p98 = pneg %p92
      %p99 = scmp.eq.s32.totalorder %s20, 5
      %p100 = por %p98, %p99
      %p101 = scmp.ne.s32.totalorder %s93, %s96
      %p102 = scmp.eq.s32.totalorder %s20, 0
      %p103 = por %p101, %p102
      %p104 = scmp.ne.s32.totalorder %s93, %s96
      %p105 = scmp.eq.s32.totalorder %s25, 5
      %p106 = por %p104, %p105
      %p107 = scmp.ne.s32.totalorder %s96, %s97
      %p108 = scmp.eq.s32.totalorder %s25, 0
      %p109 = por %p107, %p108
      %p110 = scmp.ne.s32.totalorder %s96, %s97
      %p111 = scmp.eq.s32.totalorder %s26, 5
      %p112 = por %p110, %p111
      %p114 = scmp.ne.s32.totalorder %s97, %s113
      %p115 = scmp.eq.s32.totalorder %s26, 0
      %p116 = por %p114, %p115
      %s117 = ssub.s32 %s20, %s27
      %p118 = scmp.eq.s32.totalorder %s117, 0
      %s120 = sadd.s32 %s119, 1
      %s121 = scalar_select %p118, %s119, %s120
      %p124 = pneg %p118
      %p125 = scmp.eq.s32.totalorder %s20, 5
      %p126 = por %p124, %p125
      %p127 = scmp.ne.s32.totalorder %s119, %s122
      %p128 = scmp.eq.s32.totalorder %s20, 0
      %p129 = por %p127, %p128
      %p130 = scmp.ne.s32.totalorder %s119, %s122
      %p131 = scmp.eq.s32.totalorder %s25, 5
      %p132 = por %p130, %p131
      %p133 = scmp.ne.s32.totalorder %s122, %s123
      %p134 = scmp.eq.s32.totalorder %s25, 0
      %p135 = por %p133, %p134
      %p136 = scmp.ne.s32.totalorder %s122, %s123
      %p137 = scmp.eq.s32.totalorder %s26, 5
      %p138 = por %p136, %p137
      %p140 = scmp.ne.s32.totalorder %s123, %s139
      %p141 = scmp.eq.s32.totalorder %s26, 0
      %p142 = por %p140, %p141
      %s143 = ssub.s32 %s20, %s27
      %p144 = scmp.eq.s32.totalorder %s143, 0
      %s146 = sadd.s32 %s145, 1
      %s147 = scalar_select %p144, %s145, %s146
      %p150 = pneg %p144
      %p151 = scmp.eq.s32.totalorder %s20, 5
      %p152 = por %p150, %p151
      %p153 = scmp.ne.s32.totalorder %s145, %s148
      %p154 = scmp.eq.s32.totalorder %s20, 0
      %p155 = por %p153, %p154
      %p156 = scmp.ne.s32.totalorder %s145, %s148
      %p157 = scmp.eq.s32.totalorder %s25, 5
      %p158 = por %p156, %p157
      %p159 = scmp.ne.s32.totalorder %s148, %s149
      %p160 = scmp.eq.s32.totalorder %s25, 0
      %p161 = por %p159, %p160
      %p162 = scmp.ne.s32.totalorder %s148, %s149
      %p163 = scmp.eq.s32.totalorder %s26, 5
      %p164 = por %p162, %p163
      %p166 = scmp.ne.s32.totalorder %s149, %s165
      %p167 = scmp.eq.s32.totalorder %s26, 0
      %p168 = por %p166, %p167
      %s170 = sadd.s32 %s169, 1
      %p173 = scmp.eq.s32.totalorder %s20, 5
      %p174 = scmp.ne.s32.totalorder %s169, %s171
      %p175 = scmp.eq.s32.totalorder %s20, 0
      %p176 = por %p174, %p175
      %p177 = scmp.ne.s32.totalorder %s169, %s171
      %p178 = scmp.eq.s32.totalorder %s25, 5
      %p179 = por %p177, %p178
      %p180 = scmp.ne.s32.totalorder %s171, %s172
      %p181 = scmp.eq.s32.totalorder %s25, 0
      %p182 = por %p180, %p181
      %p183 = scmp.ne.s32.totalorder %s171, %s172
      %p184 = scmp.eq.s32.totalorder %s26, 5
      %p185 = por %p183, %p184
      %p187 = scmp.ne.s32.totalorder %s172, %s186
      %p188 = scmp.eq.s32.totalorder %s26, 0
      %p189 = por %p187, %p188
      %s191 = sadd.s32 %s190, 1
      %p194 = scmp.eq.s32.totalorder %s20, 5
      %p195 = scmp.ne.s32.totalorder %s190, %s192
      %p196 = scmp.eq.s32.totalorder %s20, 0
      %p197 = por %p195, %p196
      %p198 = scmp.ne.s32.totalorder %s190, %s192
      %p199 = scmp.eq.s32.totalorder %s25, 5
      %p200 = por %p198, %p199
      %p201 = scmp.ne.s32.totalorder %s192, %s193
      %p202 = scmp.eq.s32.totalorder %s25, 0
      %p203 = por %p201, %p202
      %p204 = scmp.ne.s32.totalorder %s192, %s193
      %p205 = scmp.eq.s32.totalorder %s26, 5
      %p206 = por %p204, %p205
      %p208 = scmp.ne.s32.totalorder %s193, %s207
      %p209 = scmp.eq.s32.totalorder %s26, 0
      %p210 = por %p208, %p209
      %s212 = sadd.s32 %s211, 1
      %p215 = scmp.eq.s32.totalorder %s20, 5
      %p216 = scmp.ne.s32.totalorder %s211, %s213
      %p217 = scmp.eq.s32.totalorder %s20, 0
      %p218 = por %p216, %p217
      %p219 = scmp.ne.s32.totalorder %s211, %s213
      %p220 = scmp.eq.s32.totalorder %s25, 5
      %p221 = por %p219, %p220
      %p222 = scmp.ne.s32.totalorder %s213, %s214
      %p223 = scmp.eq.s32.totalorder %s25, 0
      %p224 = por %p222, %p223
      %p225 = scmp.ne.s32.totalorder %s213, %s214
      %p226 = scmp.eq.s32.totalorder %s26, 5
      %p227 = por %p225, %p226
      %p229 = scmp.ne.s32.totalorder %s214, %s228
      %p230 = scmp.eq.s32.totalorder %s26, 0
      %p231 = por %p229, %p230
      %s233 = sadd.s32 %s232, 1
      %p236 = scmp.eq.s32.totalorder %s20, 5
      %p237 = scmp.ne.s32.totalorder %s232, %s234
      %p238 = scmp.eq.s32.totalorder %s20, 0
      %p239 = por %p237, %p238
      %p240 = scmp.ne.s32.totalorder %s232, %s234
      %p241 = scmp.eq.s32.totalorder %s25, 5
      %p242 = por %p240, %p241
      %p243 = scmp.ne.s32.totalorder %s234, %s235
      %p244 = scmp.eq.s32.totalorder %s25, 0
      %p245 = por %p243, %p244
      %p246 = scmp.ne.s32.totalorder %s234, %s235
      %p247 = scmp.eq.s32.totalorder %s26, 5
      %p248 = por %p246, %p247
      %p250 = scmp.ne.s32.totalorder %s235, %s249
      %p251 = scmp.eq.s32.totalorder %s26, 0
      %p252 = por %p250, %p251
      %p253 = scmp.le.s32.totalorder 1, %s20
      %p254 = scmp.lt.s32.totalorder %s20, 7
      %p255 = pnand %p253, %p254
      %p256 = pneg %p255
      // Predicated region
      $region9: #{remixer_forward.1} parent=5 // pred_check
        _
      $region10: #{remixer_forward.1} parent=5 // pred_check_branch
        %258 = sbr.rel (%p255) target = $region12
      $region11: #{remixer_forward.1} parent=5 // pred_region
        %s259 = ssub.s32 %s20, 1
        // Predicated region
        $region13: #{remixer_forward.1} parent=11 // pred_check
          %p260 = pneg %p41
        $region14: #{remixer_forward.1} parent=11 // pred_check_branch
          %262 = sbr.rel (%p260) target = $region16
        $region15: #{remixer_forward.1} parent=11 // pred_region
          _
        $region16: #{remixer_forward.1} parent=11 // pred_fallthru
          _
        // Predicated region
        $region17: #{remixer_forward.1} parent=11 // pred_check
          %p263 = pneg %p62
        $region18: #{remixer_forward.1} parent=11 // pred_check_branch
          %265 = sbr.rel (%p263) target = $region20
        $region19: #{remixer_forward.1} parent=11 // pred_region
          %s267 = ssub.s32 4096, 4096
          %268 = vsyncadd [#allocation4], %s267
          %s269 = sshll.u32 [#allocation3], 4
          %s270 = int_to_ptr.vmem [resolvable:$true] %s269
          %275 = dma.hbm_to_vmem [thread:$0]  %s1, 4096, %s270, [#allocation4], 256, 256, 16
        $region20: #{remixer_forward.1} parent=11 // pred_fallthru
          _
        // Predicated region
        $region21: #{remixer_forward.1} parent=11 // pred_check
          %p276 = pneg %p83
        $region22: #{remixer_forward.1} parent=11 // pred_check_branch
          %278 = sbr.rel (%p276) target = $region24
        $region23: #{remixer_forward.1} parent=11 // pred_region
          %s280 = ssub.s32 64, 64
          %281 = vsyncadd [#allocation8], %s280
          %s283 = sshll.u32 [#allocation7], 4
          %s284 = int_to_ptr.vmem [resolvable:$true] %s283
          %286 = dma.hbm_to_vmem [thread:$0]  %s2, 64, %s284, [#allocation8]
        $region24: #{remixer_forward.1} parent=11 // pred_fallthru
          _
        // Predicated region
        $region25: #{remixer_forward.1} parent=11 // pred_check
          %p287 = pneg %p182
        $region26: #{remixer_forward.1} parent=11 // pred_check_branch
          %289 = sbr.rel (%p287) target = $region28
        $region27: #{remixer_forward.1} parent=11 // pred_region
          %s291 = ssub.s32 16, 16
          %292 = vsyncadd [#allocation6], %s291
          %s294 = sshll.u32 %s6, 4
          %s295 = int_to_ptr.vmem [resolvable:$true] %s294
          %297 = dma.vmem_to_smem %s295, 16, [#allocation11], [#allocation6]
        $region28: #{remixer_forward.1} parent=11 // pred_fallthru
          _
        // Predicated region
        $region29: #{remixer_forward.1} parent=11 // pred_check
          %p298 = pneg %p203
        $region30: #{remixer_forward.1} parent=11 // pred_check_branch
          %300 = sbr.rel (%p298) target = $region32
        $region31: #{remixer_forward.1} parent=11 // pred_region
          %s302 = ssub.s32 4096, 4096
          %303 = vsyncadd [#allocation8], %s302
          %s304 = sshll.u32 [#allocation12], 4
          %s305 = int_to_ptr.vmem [resolvable:$true] %s304
          %310 = dma.hbm_to_vmem [thread:$0]  %s7, 4096, %s305, [#allocation8], 64, 64, 4
        $region32: #{remixer_forward.1} parent=11 // pred_fallthru
          _
        // Predicated region
        $region33: #{remixer_forward.1} parent=11 // pred_check
          %p311 = pneg %p224
        $region34: #{remixer_forward.1} parent=11 // pred_check_branch
          %313 = sbr.rel (%p311) target = $region36
        $region35: #{remixer_forward.1} parent=11 // pred_region
          %s315 = ssub.s32 16, 16
          %316 = vsyncadd [#allocation14], %s315
          %s318 = sshll.u32 [#allocation13], 4
          %s319 = int_to_ptr.vmem [resolvable:$true] %s318
          %321 = dma.hbm_to_vmem [thread:$0]  %s8, 16, %s319, [#allocation14]
        $region36: #{remixer_forward.1} parent=11 // pred_fallthru
          _
      $region12: #{remixer_forward.1} parent=5 // pred_fallthru
        _
      %p322 = scmp.lt.s32.totalorder %s20, 6
      // Predicated region
      $region37: #{remixer_forward.1} parent=5 // pred_check
        %p323 = pneg %p322
      $region38: #{remixer_forward.1} parent=5 // pred_check_branch
        %325 = sbr.rel (%p323) target = $region40
      $region39: #{remixer_forward.1} parent=5 // pred_region
        // Predicated region
        $region41: #{remixer_forward.1} parent=39 // pred_check
          %p326 = pneg %p103
        $region42: #{remixer_forward.1} parent=39 // pred_check_branch
          %328 = sbr.rel (%p326) target = $region44
        $region43: #{remixer_forward.1} parent=39 // pred_region
          %s329 = sand.u32 %s20, 1
          %s330 = scalar_lea.sflag [#allocation4], %s329
          %s331 = sand.u32 %s93, 1
          %s332 = smul.addr %s331, 3072
          %s333 = scalar_lea.vmem [#allocation9], %s332
          %s334 = smul.u32 2, %s20
          %s336 = ssub.s32 49152, 49152
          %337 = vsyncadd %s330, %s336
          %s338 = smul.addr %s334, 192
          %s339 = smul.addr %s338, 128
          %s340 = scalar_lea.hbm %s3, %s339
          %s341 = sshll.u32 %s333, 4
          %s342 = int_to_ptr.vmem [resolvable:$true] %s341
          %347 = dma.hbm_to_vmem [thread:$0]  %s340, 49152, %s342, %s330, 1536, 1536, 96
        $region44: #{remixer_forward.1} parent=39 // pred_fallthru
          _
        // Predicated region
        $region45: #{remixer_forward.1} parent=39 // pred_check
          %p348 = pneg %p129
        $region46: #{remixer_forward.1} parent=39 // pred_check_branch
          %350 = sbr.rel (%p348) target = $region48
        $region47: #{remixer_forward.1} parent=39 // pred_region
          %s351 = sand.u32 %s20, 1
          %s352 = scalar_lea.sflag [#allocation4], %s351
          %s353 = sand.u32 %s119, 1
          %s354 = smul.addr %s353, 24
          %s355 = scalar_lea.vmem [#allocation10], %s354
          %s356 = smul.u32 2, %s20
          %s358 = ssub.s32 384, 384
          %359 = vsyncadd %s352, %s358
          %s360 = smul.addr %s356, 12
          %s361 = smul.addr %s360, 16
          %s362 = scalar_lea.hbm %s4, %s361
          %s363 = sshll.u32 %s355, 4
          %s364 = int_to_ptr.vmem [resolvable:$true] %s363
          %369 = dma.hbm_to_vmem [thread:$0]  %s362, 384, %s364, %s352, 192, 192, 12
        $region48: #{remixer_forward.1} parent=39 // pred_fallthru
          _
        // Predicated region
        $region49: #{remixer_forward.1} parent=39 // pred_check
          %p370 = pneg %p155
        $region50: #{remixer_forward.1} parent=39 // pred_check_branch
          %372 = sbr.rel (%p370) target = $region52
        $region51: #{remixer_forward.1} parent=39 // pred_region
          %s373 = smul.u32 2, %s20
          %p374 = scmp.lt.s32.totalorder %s373, 11
          %s375 = scalar_select %p374, %s373, 11
          %s376 = smul.addr %s375, 4
          %s377 = smul.addr %s376, 8
          %s378 = scalar_lea.vmem %s5, %s377
          %s379 = smul.u32 2, %s20
        $region52: #{remixer_forward.1} parent=39 // pred_fallthru
          _
      $region40: #{remixer_forward.1} parent=5 // pred_fallthru
        _
      %p380 = scmp.le.s32.totalorder 1, %s20
      %p381 = scmp.lt.s32.totalorder %s20, 7
      %p382 = pnand %p380, %p381
      %p383 = pneg %p382
      // Predicated region
      $region53: #{remixer_forward.1} parent=5 // pred_check
        _
      $region54: #{remixer_forward.1} parent=5 // pred_check_branch
        %385 = sbr.rel (%p382) target = $region56
      $region55: #{remixer_forward.1} parent=5 // pred_region
        %s386 = ssub.s32 %s20, 1
        // Predicated region
        $region57: #{remixer_forward.1} parent=55 // pred_check
          %p387 = pneg %p62
        $region58: #{remixer_forward.1} parent=55 // pred_check_branch
          %389 = sbr.rel (%p387) target = $region60
        $region59: #{remixer_forward.1} parent=55 // pred_region
          %390 = dma.done [#allocation4], 4096
        $region60: #{remixer_forward.1} parent=55 // pred_fallthru
          _
        // Predicated region
        $region61: #{remixer_forward.1} parent=55 // pred_check
          %p391 = pneg %p83
        $region62: #{remixer_forward.1} parent=55 // pred_check_branch
          %393 = sbr.rel (%p391) target = $region64
        $region63: #{remixer_forward.1} parent=55 // pred_region
          %394 = dma.done [#allocation8], 64
        $region64: #{remixer_forward.1} parent=55 // pred_fallthru
          _
        %s395 = sand.u32 %s25, 1
        %s396 = scalar_lea.sflag [#allocation4], %s395
        %s397 = sand.u32 %s96, 1
        %s398 = smul.addr %s397, 3072
        %s399 = scalar_lea.vmem [#allocation9], %s398
        // Predicated region
        $region65: #{remixer_forward.1} parent=55 // pred_check
          %p400 = pneg %p109
        $region66: #{remixer_forward.1} parent=55 // pred_check_branch
          %402 = sbr.rel (%p400) target = $region68
        $region67: #{remixer_forward.1} parent=55 // pred_region
          %403 = dma.done %s396, 49152
        $region68: #{remixer_forward.1} parent=55 // pred_fallthru
          _
        %s404 = sand.u32 %s25, 1
        %s405 = scalar_lea.sflag [#allocation4], %s404
        %s406 = sand.u32 %s122, 1
        %s407 = smul.addr %s406, 24
        %s408 = scalar_lea.vmem [#allocation10], %s407
        // Predicated region
        $region69: #{remixer_forward.1} parent=55 // pred_check
          %p409 = pneg %p135
        $region70: #{remixer_forward.1} parent=55 // pred_check_branch
          %411 = sbr.rel (%p409) target = $region72
        $region71: #{remixer_forward.1} parent=55 // pred_region
          %412 = dma.done %s405, 384
        $region72: #{remixer_forward.1} parent=55 // pred_fallthru
          _
        // Predicated region
        $region73: #{remixer_forward.1} parent=55 // pred_check
          %p413 = pneg %p182
        $region74: #{remixer_forward.1} parent=55 // pred_check_branch
          %415 = sbr.rel (%p413) target = $region76
        $region75: #{remixer_forward.1} parent=55 // pred_region
          %416 = dma.done [#allocation6], 16
        $region76: #{remixer_forward.1} parent=55 // pred_fallthru
          _
        // Predicated region
        $region77: #{remixer_forward.1} parent=55 // pred_check
          %p417 = pneg %p203
        $region78: #{remixer_forward.1} parent=55 // pred_check_branch
          %419 = sbr.rel (%p417) target = $region80
        $region79: #{remixer_forward.1} parent=55 // pred_region
          %420 = dma.done [#allocation8], 4096
        $region80: #{remixer_forward.1} parent=55 // pred_fallthru
          _
        // Predicated region
        $region81: #{remixer_forward.1} parent=55 // pred_check
          %p421 = pneg %p224
        $region82: #{remixer_forward.1} parent=55 // pred_check_branch
          %423 = sbr.rel (%p421) target = $region84
        $region83: #{remixer_forward.1} parent=55 // pred_region
          %424 = dma.done [#allocation14], 16
        $region84: #{remixer_forward.1} parent=55 // pred_fallthru
          _
        %425 = sfence
        %p426 = pneg %p41
        %p427 = pneg %p38
        %p428 = pneg %p62
        %p429 = pneg %p59
        %p430 = pneg %p83
        %p431 = pneg %p80
        %s432 = sand.u32 %s25, 1
        %s433 = scalar_lea.sflag [#allocation4], %s432
        %s434 = sand.u32 %s96, 1
        %s435 = smul.addr %s434, 3072
        %s436 = scalar_lea.vmem [#allocation9], %s435
        %p437 = pneg %p109
        %p438 = pneg %p106
        %s439 = sand.u32 %s25, 1
        %s440 = scalar_lea.sflag [#allocation4], %s439
        %s441 = sand.u32 %s122, 1
        %s442 = smul.addr %s441, 24
        %s443 = scalar_lea.vmem [#allocation10], %s442
        %p444 = pneg %p135
        %p445 = pneg %p132
        %s446 = smul.u32 2, %s25
        %p447 = scmp.lt.s32.totalorder %s446, 11
        %s448 = scalar_select %p447, %s446, 11
        %s449 = smul.addr %s448, 4
        %s450 = smul.addr %s449, 8
        %s451 = scalar_lea.vmem %s5, %s450
        %p452 = pneg %p161
        %p453 = pneg %p158
        %p454 = pneg %p182
        %p455 = pneg %p179
        %p456 = pneg %p203
        %p457 = pneg %p200
        %p458 = pneg %p224
        %p459 = pneg %p221
        %p460 = pneg %p245
        %p461 = pneg %p242
        %s462 = smul.u32 2, %s25
        %s463 = smul.u32 2, %s25
        %s464 = smul.u32 2, %s25
        %p465 = scmp.lt.s32.totalorder %s464, 11
        %s466 = scalar_select %p465, %s464, 11
        %s467 = smul.addr %s466, 4
        %s468 = smul.addr %s467, 8
        %s469 = scalar_lea.vmem %s5, %s468
        %s470 = smul.u32 2, %s25
        %p472 = scmp.eq.s32.totalorder %s25, 0
        // Predicated region
        $region85: #{remixer_forward.1} parent=55 // pred_check
          %p473 = pneg %p472
        $region86: #{remixer_forward.1} parent=55 // pred_check_branch
          %475 = sbr.rel (%p473) target = $region88
        $region87: #{remixer_forward.1} parent=55 // pred_region
          %v476 = vld [vmem:[%s0] sm:$0xff]
          %v477 = vld [vmem:[%s0 + $0x8] sm:$0xff]
          %v478 = vld [vmem:[%s0 + $0x10] sm:$0xff]
          %v479 = vld [vmem:[%s0 + $0x18] sm:$0xff]
          %v480 = vpack.c.bf16 %v477, %v476
          %v481 = vpack.c.bf16 %v479, %v478
          %v482 = vld [vmem:[#allocation3] sm:$0xff]
          %v483 = vld [vmem:[#allocation3 + $0x8] sm:$0xff]
          %v484 = vld [vmem:[#allocation3 + $0x10] sm:$0xff]
          %v485 = vld [vmem:[#allocation3 + $0x18] sm:$0xff]
          %v486 = vld [vmem:[#allocation3 + $0x20] sm:$0xff]
          %v487 = vld [vmem:[#allocation3 + $0x28] sm:$0xff]
          %v488 = vld [vmem:[#allocation3 + $0x30] sm:$0xff]
          %v489 = vld [vmem:[#allocation3 + $0x38] sm:$0xff]
          %v490 = vld [vmem:[#allocation3 + $0x40] sm:$0xff]
          %v491 = vld [vmem:[#allocation3 + $0x48] sm:$0xff]
          %v492 = vld [vmem:[#allocation3 + $0x50] sm:$0xff]
          %v493 = vld [vmem:[#allocation3 + $0x58] sm:$0xff]
          %v494 = vld [vmem:[#allocation3 + $0x60] sm:$0xff]
          %v495 = vld [vmem:[#allocation3 + $0x68] sm:$0xff]
          %v496 = vld [vmem:[#allocation3 + $0x70] sm:$0xff]
          %v497 = vld [vmem:[#allocation3 + $0x78] sm:$0xff]
          %v498 = vld [vmem:[#allocation3 + $0x80] sm:$0xff]
          %v499 = vld [vmem:[#allocation3 + $0x88] sm:$0xff]
          %v500 = vld [vmem:[#allocation3 + $0x90] sm:$0xff]
          %v501 = vld [vmem:[#allocation3 + $0x98] sm:$0xff]
          %v502 = vld [vmem:[#allocation3 + $0xa0] sm:$0xff]
          %v503 = vld [vmem:[#allocation3 + $0xa8] sm:$0xff]
          %v504 = vld [vmem:[#allocation3 + $0xb0] sm:$0xff]
          %v505 = vld [vmem:[#allocation3 + $0xb8] sm:$0xff]
          %v506 = vld [vmem:[#allocation3 + $0xc0] sm:$0xff]
          %v507 = vld [vmem:[#allocation3 + $0xc8] sm:$0xff]
          %v508 = vld [vmem:[#allocation3 + $0xd0] sm:$0xff]
          %v509 = vld [vmem:[#allocation3 + $0xd8] sm:$0xff]
          %v510 = vld [vmem:[#allocation3 + $0xe0] sm:$0xff]
          %v511 = vld [vmem:[#allocation3 + $0xe8] sm:$0xff]
          %v512 = vld [vmem:[#allocation3 + $0xf0] sm:$0xff]
          %v513 = vld [vmem:[#allocation3 + $0xf8] sm:$0xff]
          %v514 = vld [vmem:[#allocation7] sm:$0xf]
          %v516 = vlaneseq
          %v517 = vshrl.u32 %v516, 7
          %v518 = vsub.s32 0, %v517
          %v519 = vrot.slane %v514, %v518
          %v520 = vlaneseq
          %v521 = vshrl.u32 %v520, 7
          %v522 = vsub.s32 1, %v521
          %v523 = vrot.slane %v514, %v522
          %v524 = vlaneseq
          %v525 = vshrl.u32 %v524, 7
          %v526 = vsub.s32 2, %v525
          %v527 = vrot.slane %v514, %v526
          %v528 = vlaneseq
          %v529 = vshrl.u32 %v528, 7
          %v530 = vsub.s32 3, %v529
          %v531 = vrot.slane %v514, %v530
          %v568 = vunpack.c.l.b16 %v482
          %v569 = vunpack.c.h.b16 %v482
          %v570 = vunpack.c.l.b16 %v483
          %v571 = vunpack.c.h.b16 %v483
          %v572 = vunpack.c.l.b16 %v484
          %v573 = vunpack.c.h.b16 %v484
          %v574 = vunpack.c.l.b16 %v485
          %v575 = vunpack.c.h.b16 %v485
          %v576 = vunpack.c.l.b16 %v486
          %v577 = vunpack.c.h.b16 %v486
          %v578 = vunpack.c.l.b16 %v487
          %v579 = vunpack.c.h.b16 %v487
          %v580 = vunpack.c.l.b16 %v488
          %v581 = vunpack.c.h.b16 %v488
          %v582 = vunpack.c.l.b16 %v489
          %v583 = vunpack.c.h.b16 %v489
          %v584 = vunpack.c.l.b16 %v490
          %v585 = vunpack.c.h.b16 %v490
          %v586 = vunpack.c.l.b16 %v491
          %v587 = vunpack.c.h.b16 %v491
          %v588 = vunpack.c.l.b16 %v492
          %v589 = vunpack.c.h.b16 %v492
          %v590 = vunpack.c.l.b16 %v493
          %v591 = vunpack.c.h.b16 %v493
          %v592 = vunpack.c.l.b16 %v494
          %v593 = vunpack.c.h.b16 %v494
          %v594 = vunpack.c.l.b16 %v495
          %v595 = vunpack.c.h.b16 %v495
          %v596 = vunpack.c.l.b16 %v496
          %v597 = vunpack.c.h.b16 %v496
          %v598 = vunpack.c.l.b16 %v497
          %v599 = vunpack.c.h.b16 %v497
          %v600 = vunpack.c.l.b16 %v498
          %v601 = vunpack.c.h.b16 %v498
          %v602 = vunpack.c.l.b16 %v499
          %v603 = vunpack.c.h.b16 %v499
          %v604 = vunpack.c.l.b16 %v500
          %v605 = vunpack.c.h.b16 %v500
          %v606 = vunpack.c.l.b16 %v501
          %v607 = vunpack.c.h.b16 %v501
          %v608 = vunpack.c.l.b16 %v502
          %v609 = vunpack.c.h.b16 %v502
          %v610 = vunpack.c.l.b16 %v503
          %v611 = vunpack.c.h.b16 %v503
          %v612 = vunpack.c.l.b16 %v504
          %v613 = vunpack.c.h.b16 %v504
          %v614 = vunpack.c.l.b16 %v505
          %v615 = vunpack.c.h.b16 %v505
          %v616 = vunpack.c.l.b16 %v506
          %v617 = vunpack.c.h.b16 %v506
          %v618 = vunpack.c.l.b16 %v507
          %v619 = vunpack.c.h.b16 %v507
          %v620 = vunpack.c.l.b16 %v508
          %v621 = vunpack.c.h.b16 %v508
          %v622 = vunpack.c.l.b16 %v509
          %v623 = vunpack.c.h.b16 %v509
          %v624 = vunpack.c.l.b16 %v510
          %v625 = vunpack.c.h.b16 %v510
          %v626 = vunpack.c.l.b16 %v511
          %v627 = vunpack.c.h.b16 %v511
          %v628 = vunpack.c.l.b16 %v512
          %v629 = vunpack.c.h.b16 %v512
          %v630 = vunpack.c.l.b16 %v513
          %v631 = vunpack.c.h.b16 %v513
          %v632 = vpack.c.b16 %v572, %v568
          %v633 = vpack.c.b16 %v573, %v569
          %v634 = vpack.c.b16 %v574, %v570
          %v635 = vpack.c.b16 %v575, %v571
          %v636 = vpack.c.b16 %v580, %v576
          %v637 = vpack.c.b16 %v581, %v577
          %v638 = vpack.c.b16 %v582, %v578
          %v639 = vpack.c.b16 %v583, %v579
          %v640 = vpack.c.b16 %v588, %v584
          %v641 = vpack.c.b16 %v589, %v585
          %v642 = vpack.c.b16 %v590, %v586
          %v643 = vpack.c.b16 %v591, %v587
          %v644 = vpack.c.b16 %v596, %v592
          %v645 = vpack.c.b16 %v597, %v593
          %v646 = vpack.c.b16 %v598, %v594
          %v647 = vpack.c.b16 %v599, %v595
          %v648 = vpack.c.b16 %v604, %v600
          %v649 = vpack.c.b16 %v605, %v601
          %v650 = vpack.c.b16 %v606, %v602
          %v651 = vpack.c.b16 %v607, %v603
          %v652 = vpack.c.b16 %v612, %v608
          %v653 = vpack.c.b16 %v613, %v609
          %v654 = vpack.c.b16 %v614, %v610
          %v655 = vpack.c.b16 %v615, %v611
          %v656 = vpack.c.b16 %v620, %v616
          %v657 = vpack.c.b16 %v621, %v617
          %v658 = vpack.c.b16 %v622, %v618
          %v659 = vpack.c.b16 %v623, %v619
          %v660 = vpack.c.b16 %v628, %v624
          %v661 = vpack.c.b16 %v629, %v625
          %v662 = vpack.c.b16 %v630, %v626
          %v663 = vpack.c.b16 %v631, %v627
          %696 = vmatprep.subr.bf16.mxu0 %v633
          %697 = vmatpush1.bf16.msra.mxu0 %v632
          %698 = vmatprep.subr.bf16.mxu0 %v637
          %699 = vmatpush1.bf16.msra.mxu0 %v636
          %700 = vmatprep.subr.bf16.mxu0 %v641
          %701 = vmatpush1.bf16.msra.mxu0 %v640
          %702 = vmatprep.subr.bf16.mxu0 %v645
          %703 = vmatpush1.bf16.msra.mxu0 %v644
          %704 = vmatprep.subr.bf16.mxu0 %v649
          %705 = vmatpush1.bf16.msra.mxu0 %v648
          %706 = vmatprep.subr.bf16.mxu0 %v653
          %707 = vmatpush1.bf16.msra.mxu0 %v652
          %708 = vmatprep.subr.bf16.mxu0 %v657
          %709 = vmatpush1.bf16.msra.mxu0 %v656
          %710 = vmatprep.subr.bf16.mxu0 %v661
          %711 = vmatpush1.bf16.msra.mxu0 %v660
          %712 = vmatprep.subr.bf16.mxu0 0
          %713 = vmatpush1.bf16.msra.mxu0 0
          %714 = vmatprep.subr.bf16.mxu0 0
          %715 = vmatpush1.bf16.msra.mxu0 0
          %716 = vmatprep.subr.bf16.mxu0 0
          %717 = vmatpush1.bf16.msra.mxu0 0
          %718 = vmatprep.subr.bf16.mxu0 0
          %719 = vmatpush1.bf16.msra.mxu0 0
          %720 = vmatprep.subr.bf16.mxu0 0
          %721 = vmatpush1.bf16.msra.mxu0 0
          %722 = vmatprep.subr.bf16.mxu0 0
          %723 = vmatpush1.bf16.msra.mxu0 0
          %724 = vmatprep.subr.bf16.mxu0 0
          %725 = vmatpush1.bf16.msra.mxu0 0
          %726 = vmatprep.subr.bf16.mxu0 0
          %727 = vmatpush1.bf16.msra.mxu0 0
          %728 = vmatprep.mubr.bf16.mxu0 0
          %729 = vmatmul.mubr.bf16.gmra.mrb[0].mxu0 %v480
          %v730 = vpop.f32.mrb[0].mxu0
          %v731 = vadd.f32 %v519, %v730
          %v732 = vpop.f32.mrb[0].mxu0
          %v733 = vadd.f32 %v523, %v732
          %v734 = vpop.f32.mrb[0].mxu0
          %v735 = vadd.f32 %v519, %v734
          %v736 = vpop.f32.mrb[0].mxu0
          %v737 = vadd.f32 %v523, %v736
          %738 = vmatprep.mubr.bf16.mxu0 0
          %739 = vmatmul.mubr.bf16.gmra.mrb[0].mxu0 %v481
          %v740 = vpop.f32.mrb[0].mxu0
          %v741 = vadd.f32 %v519, %v740
          %v742 = vpop.f32.mrb[0].mxu0
          %v743 = vadd.f32 %v523, %v742
          %v744 = vpop.f32.mrb[0].mxu0
          %v745 = vadd.f32 %v519, %v744
          %v746 = vpop.f32.mrb[0].mxu0
          %v747 = vadd.f32 %v523, %v746
          %748 = vdwg.mxu0
          %749 = vmatprep.subr.bf16.mxu0 %v635
          %750 = vmatpush1.bf16.msra.mxu0 %v634
          %751 = vmatprep.subr.bf16.mxu0 %v639
          %752 = vmatpush1.bf16.msra.mxu0 %v638
          %753 = vmatprep.subr.bf16.mxu0 %v643
          %754 = vmatpush1.bf16.msra.mxu0 %v642
          %755 = vmatprep.subr.bf16.mxu0 %v647
          %756 = vmatpush1.bf16.msra.mxu0 %v646
          %757 = vmatprep.subr.bf16.mxu0 %v651
          %758 = vmatpush1.bf16.msra.mxu0 %v650
          %759 = vmatprep.subr.bf16.mxu0 %v655
          %760 = vmatpush1.bf16.msra.mxu0 %v654
          %761 = vmatprep.subr.bf16.mxu0 %v659
          %762 = vmatpush1.bf16.msra.mxu0 %v658
          %763 = vmatprep.subr.bf16.mxu0 %v663
          %764 = vmatpush1.bf16.msra.mxu0 %v662
          %765 = vmatprep.subr.bf16.mxu0 0
          %766 = vmatpush1.bf16.msra.mxu0 0
          %767 = vmatprep.subr.bf16.mxu0 0
          %768 = vmatpush1.bf16.msra.mxu0 0
          %769 = vmatprep.subr.bf16.mxu0 0
          %770 = vmatpush1.bf16.msra.mxu0 0
          %771 = vmatprep.subr.bf16.mxu0 0
          %772 = vmatpush1.bf16.msra.mxu0 0
          %773 = vmatprep.subr.bf16.mxu0 0
          %774 = vmatpush1.bf16.msra.mxu0 0
          %775 = vmatprep.subr.bf16.mxu0 0
          %776 = vmatpush1.bf16.msra.mxu0 0
          %777 = vmatprep.subr.bf16.mxu0 0
          %778 = vmatpush1.bf16.msra.mxu0 0
          %779 = vmatprep.subr.bf16.mxu0 0
          %780 = vmatpush1.bf16.msra.mxu0 0
          %781 = vmatprep.mubr.bf16.mxu0 0
          %782 = vmatmul.mubr.bf16.gmra.mrb[0].mxu0 %v480
          %v783 = vpop.f32.mrb[0].mxu0
          %v784 = vadd.f32 %v527, %v783
          %v785 = vpop.f32.mrb[0].mxu0
          %v786 = vadd.f32 %v531, %v785
          %v787 = vpop.f32.mrb[0].mxu0
          %v788 = vadd.f32 %v527, %v787
          %v789 = vpop.f32.mrb[0].mxu0
          %v790 = vadd.f32 %v531, %v789
          %791 = vmatprep.mubr.bf16.mxu0 0
          %792 = vmatmul.mubr.bf16.gmra.mrb[0].mxu0 %v481
          %v793 = vpop.f32.mrb[0].mxu0
          %v794 = vadd.f32 %v527, %v793
          %v795 = vpop.f32.mrb[0].mxu0
          %v796 = vadd.f32 %v531, %v795
          %v797 = vpop.f32.mrb[0].mxu0
          %v798 = vadd.f32 %v527, %v797
          %v799 = vpop.f32.mrb[0].mxu0
          %v800 = vadd.f32 %v531, %v799
          %801 = vdwg.mxu0
          %802 = vst [vmem:[#allocation2] sm:$0xff] %v731
          %803 = vst [vmem:[#allocation2 + $0x8] sm:$0xff] %v733
          %804 = vst [vmem:[#allocation2 + $0x10] sm:$0xff] %v784
          %805 = vst [vmem:[#allocation2 + $0x18] sm:$0xff] %v786
          %806 = vst [vmem:[#allocation2 + $0x20] sm:$0xff] %v735
          %807 = vst [vmem:[#allocation2 + $0x28] sm:$0xff] %v737
          %808 = vst [vmem:[#allocation2 + $0x30] sm:$0xff] %v788
          %809 = vst [vmem:[#allocation2 + $0x38] sm:$0xff] %v790
          %810 = vst [vmem:[#allocation2 + $0x40] sm:$0xff] %v741
          %811 = vst [vmem:[#allocation2 + $0x48] sm:$0xff] %v743
          %812 = vst [vmem:[#allocation2 + $0x50] sm:$0xff] %v794
          %813 = vst [vmem:[#allocation2 + $0x58] sm:$0xff] %v796
          %814 = vst [vmem:[#allocation2 + $0x60] sm:$0xff] %v745
          %815 = vst [vmem:[#allocation2 + $0x68] sm:$0xff] %v747
          %816 = vst [vmem:[#allocation2 + $0x70] sm:$0xff] %v798
          %817 = vst [vmem:[#allocation2 + $0x78] sm:$0xff] %v800
        $region88: #{remixer_forward.1} parent=55 // pred_fallthru
          _
        %v818 = vld [vmem:[#allocation2] sm:$0xff]
        %v819 = vld [vmem:[#allocation2 + $0x8] sm:$0xff]
        %v820 = vld [vmem:[#allocation2 + $0x10] sm:$0xff]
        %v821 = vld [vmem:[#allocation2 + $0x18] sm:$0xff]
        %v822 = vld [vmem:[#allocation2 + $0x20] sm:$0xff]
        %v823 = vld [vmem:[#allocation2 + $0x28] sm:$0xff]
        %v824 = vld [vmem:[#allocation2 + $0x30] sm:$0xff]
        %v825 = vld [vmem:[#allocation2 + $0x38] sm:$0xff]
        %v826 = vld [vmem:[#allocation2 + $0x40] sm:$0xff]
        %v827 = vld [vmem:[#allocation2 + $0x48] sm:$0xff]
        %v828 = vld [vmem:[#allocation2 + $0x50] sm:$0xff]
        %v829 = vld [vmem:[#allocation2 + $0x58] sm:$0xff]
        %v830 = vld [vmem:[#allocation2 + $0x60] sm:$0xff]
        %v831 = vld [vmem:[#allocation2 + $0x68] sm:$0xff]
        %v832 = vld [vmem:[#allocation2 + $0x70] sm:$0xff]
        %v833 = vld [vmem:[#allocation2 + $0x78] sm:$0xff]
        %v834 = vpack.c.bf16 %v822, %v818
        %v835 = vpack.c.bf16 %v823, %v819
        %v836 = vpack.c.bf16 %v824, %v820
        %v837 = vpack.c.bf16 %v825, %v821
        %v838 = vpack.c.bf16 %v830, %v826
        %v839 = vpack.c.bf16 %v831, %v827
        %v840 = vpack.c.bf16 %v832, %v828
        %v841 = vpack.c.bf16 %v833, %v829
        %v842 = vld [vmem:[%s399] sm:$0xff]
        %v843 = vld [vmem:[%s399 + $0x8] sm:$0xff]
        %v844 = vld [vmem:[%s399 + $0x10] sm:$0xff]
        %v845 = vld [vmem:[%s399 + $0x18] sm:$0xff]
        %v846 = vld [vmem:[%s399 + $0x20] sm:$0xff]
        %v847 = vld [vmem:[%s399 + $0x28] sm:$0xff]
        %v848 = vld [vmem:[%s399 + $0x30] sm:$0xff]
        %v849 = vld [vmem:[%s399 + $0x38] sm:$0xff]
        %v850 = vld [vmem:[%s399 + $0x40] sm:$0xff]
        %v851 = vld [vmem:[%s399 + $0x48] sm:$0xff]
        %v852 = vld [vmem:[%s399 + $0x50] sm:$0xff]
        %v853 = vld [vmem:[%s399 + $0x58] sm:$0xff]
        %v854 = vld [vmem:[%s399 + $0x60] sm:$0xff]
        %v855 = vld [vmem:[%s399 + $0x68] sm:$0xff]
        %v856 = vld [vmem:[%s399 + $0x70] sm:$0xff]
        %v857 = vld [vmem:[%s399 + $0x78] sm:$0xff]
        %v858 = vld [vmem:[%s399 + $0x80] sm:$0xff]
        %v859 = vld [vmem:[%s399 + $0x88] sm:$0xff]
        %v860 = vld [vmem:[%s399 + $0x90] sm:$0xff]
        %v861 = vld [vmem:[%s399 + $0x98] sm:$0xff]
        %v862 = vld [vmem:[%s399 + $0xa0] sm:$0xff]
        %v863 = vld [vmem:[%s399 + $0xa8] sm:$0xff]
        %v864 = vld [vmem:[%s399 + $0xb0] sm:$0xff]
        %v865 = vld [vmem:[%s399 + $0xb8] sm:$0xff]
        %v866 = vld [vmem:[%s399 + $0xc0] sm:$0xff]
        %v867 = vld [vmem:[%s399 + $0xc8] sm:$0xff]
        %v868 = vld [vmem:[%s399 + $0xd0] sm:$0xff]
        %v869 = vld [vmem:[%s399 + $0xd8] sm:$0xff]
        %v870 = vld [vmem:[%s399 + $0xe0] sm:$0xff]
        %v871 = vld [vmem:[%s399 + $0xe8] sm:$0xff]
        %v872 = vld [vmem:[%s399 + $0xf0] sm:$0xff]
        %v873 = vld [vmem:[%s399 + $0xf8] sm:$0xff]
        %v874 = vld [vmem:[%s399 + $0x100] sm:$0xff]
        %v875 = vld [vmem:[%s399 + $0x108] sm:$0xff]
        %v876 = vld [vmem:[%s399 + $0x110] sm:$0xff]
        %v877 = vld [vmem:[%s399 + $0x118] sm:$0xff]
        %v878 = vld [vmem:[%s399 + $0x120] sm:$0xff]
        %v879 = vld [vmem:[%s399 + $0x128] sm:$0xff]
        %v880 = vld [vmem:[%s399 + $0x130] sm:$0xff]
        %v881 = vld [vmem:[%s399 + $0x138] sm:$0xff]
        %v882 = vld [vmem:[%s399 + $0x140] sm:$0xff]
        %v883 = vld [vmem:[%s399 + $0x148] sm:$0xff]
        %v884 = vld [vmem:[%s399 + $0x150] sm:$0xff]
        %v885 = vld [vmem:[%s399 + $0x158] sm:$0xff]
        %v886 = vld [vmem:[%s399 + $0x160] sm:$0xff]
        %v887 = vld [vmem:[%s399 + $0x168] sm:$0xff]
        %v888 = vld [vmem:[%s399 + $0x170] sm:$0xff]
        %v889 = vld [vmem:[%s399 + $0x178] sm:$0xff]
        %v890 = vld [vmem:[%s399 + $0x180] sm:$0xff]
        %v891 = vld [vmem:[%s399 + $0x188] sm:$0xff]
        %v892 = vld [vmem:[%s399 + $0x190] sm:$0xff]
        %v893 = vld [vmem:[%s399 + $0x198] sm:$0xff]
        %v894 = vld [vmem:[%s399 + $0x1a0] sm:$0xff]
        %v895 = vld [vmem:[%s399 + $0x1a8] sm:$0xff]
        %v896 = vld [vmem:[%s399 + $0x1b0] sm:$0xff]
        %v897 = vld [vmem:[%s399 + $0x1b8] sm:$0xff]
        %v898 = vld [vmem:[%s399 + $0x1c0] sm:$0xff]
        %v899 = vld [vmem:[%s399 + $0x1c8] sm:$0xff]
        %v900 = vld [vmem:[%s399 + $0x1d0] sm:$0xff]
        %v901 = vld [vmem:[%s399 + $0x1d8] sm:$0xff]
        %v902 = vld [vmem:[%s399 + $0x1e0] sm:$0xff]
        %v903 = vld [vmem:[%s399 + $0x1e8] sm:$0xff]
        %v904 = vld [vmem:[%s399 + $0x1f0] sm:$0xff]
        %v905 = vld [vmem:[%s399 + $0x1f8] sm:$0xff]
        %v906 = vld [vmem:[%s399 + $0x200] sm:$0xff]
        %v907 = vld [vmem:[%s399 + $0x208] sm:$0xff]
        %v908 = vld [vmem:[%s399 + $0x210] sm:$0xff]
        %v909 = vld [vmem:[%s399 + $0x218] sm:$0xff]
        %v910 = vld [vmem:[%s399 + $0x220] sm:$0xff]
        %v911 = vld [vmem:[%s399 + $0x228] sm:$0xff]
        %v912 = vld [vmem:[%s399 + $0x230] sm:$0xff]
        %v913 = vld [vmem:[%s399 + $0x238] sm:$0xff]
        %v914 = vld [vmem:[%s399 + $0x240] sm:$0xff]
        %v915 = vld [vmem:[%s399 + $0x248] sm:$0xff]
        %v916 = vld [vmem:[%s399 + $0x250] sm:$0xff]
        %v917 = vld [vmem:[%s399 + $0x258] sm:$0xff]
        %v918 = vld [vmem:[%s399 + $0x260] sm:$0xff]
        %v919 = vld [vmem:[%s399 + $0x268] sm:$0xff]
        %v920 = vld [vmem:[%s399 + $0x270] sm:$0xff]
        %v921 = vld [vmem:[%s399 + $0x278] sm:$0xff]
        %v922 = vld [vmem:[%s399 + $0x280] sm:$0xff]
        %v923 = vld [vmem:[%s399 + $0x288] sm:$0xff]
        %v924 = vld [vmem:[%s399 + $0x290] sm:$0xff]
        %v925 = vld [vmem:[%s399 + $0x298] sm:$0xff]
        %v926 = vld [vmem:[%s399 + $0x2a0] sm:$0xff]
        %v927 = vld [vmem:[%s399 + $0x2a8] sm:$0xff]
        %v928 = vld [vmem:[%s399 + $0x2b0] sm:$0xff]
        %v929 = vld [vmem:[%s399 + $0x2b8] sm:$0xff]
        %v930 = vld [vmem:[%s399 + $0x2c0] sm:$0xff]
        %v931 = vld [vmem:[%s399 + $0x2c8] sm:$0xff]
        %v932 = vld [vmem:[%s399 + $0x2d0] sm:$0xff]
        %v933 = vld [vmem:[%s399 + $0x2d8] sm:$0xff]
        %v934 = vld [vmem:[%s399 + $0x2e0] sm:$0xff]
        %v935 = vld [vmem:[%s399 + $0x2e8] sm:$0xff]
        %v936 = vld [vmem:[%s399 + $0x2f0] sm:$0xff]
        %v937 = vld [vmem:[%s399 + $0x2f8] sm:$0xff]
        %v938 = vld [vmem:[%s399 + $0x300] sm:$0xff]
        %v939 = vld [vmem:[%s399 + $0x308] sm:$0xff]
        %v940 = vld [vmem:[%s399 + $0x310] sm:$0xff]
        %v941 = vld [vmem:[%s399 + $0x318] sm:$0xff]
        %v942 = vld [vmem:[%s399 + $0x320] sm:$0xff]
        %v943 = vld [vmem:[%s399 + $0x328] sm:$0xff]
        %v944 = vld [vmem:[%s399 + $0x330] sm:$0xff]
        %v945 = vld [vmem:[%s399 + $0x338] sm:$0xff]
        %v946 = vld [vmem:[%s399 + $0x340] sm:$0xff]
        %v947 = vld [vmem:[%s399 + $0x348] sm:$0xff]
        %v948 = vld [vmem:[%s399 + $0x350] sm:$0xff]
        %v949 = vld [vmem:[%s399 + $0x358] sm:$0xff]
        %v950 = vld [vmem:[%s399 + $0x360] sm:$0xff]
        %v951 = vld [vmem:[%s399 + $0x368] sm:$0xff]
        %v952 = vld [vmem:[%s399 + $0x370] sm:$0xff]
        %v953 = vld [vmem:[%s399 + $0x378] sm:$0xff]
        %v954 = vld [vmem:[%s399 + $0x380] sm:$0xff]
        %v955 = vld [vmem:[%s399 + $0x388] sm:$0xff]
        %v956 = vld [vmem:[%s399 + $0x390] sm:$0xff]
        %v957 = vld [vmem:[%s399 + $0x398] sm:$0xff]
        %v958 = vld [vmem:[%s399 + $0x3a0] sm:$0xff]
        %v959 = vld [vmem:[%s399 + $0x3a8] sm:$0xff]
        %v960 = vld [vmem:[%s399 + $0x3b0] sm:$0xff]
        %v961 = vld [vmem:[%s399 + $0x3b8] sm:$0xff]
        %v962 = vld [vmem:[%s399 + $0x3c0] sm:$0xff]
        %v963 = vld [vmem:[%s399 + $0x3c8] sm:$0xff]
        %v964 = vld [vmem:[%s399 + $0x3d0] sm:$0xff]
        %v965 = vld [vmem:[%s399 + $0x3d8] sm:$0xff]
        %v966 = vld [vmem:[%s399 + $0x3e0] sm:$0xff]
        %v967 = vld [vmem:[%s399 + $0x3e8] sm:$0xff]
        %v968 = vld [vmem:[%s399 + $0x3f0] sm:$0xff]
        %v969 = vld [vmem:[%s399 + $0x3f8] sm:$0xff]
        %v970 = vld [vmem:[%s399 + $0x400] sm:$0xff]
        %v971 = vld [vmem:[%s399 + $0x408] sm:$0xff]
        %v972 = vld [vmem:[%s399 + $0x410] sm:$0xff]
        %v973 = vld [vmem:[%s399 + $0x418] sm:$0xff]
        %v974 = vld [vmem:[%s399 + $0x420] sm:$0xff]
        %v975 = vld [vmem:[%s399 + $0x428] sm:$0xff]
        %v976 = vld [vmem:[%s399 + $0x430] sm:$0xff]
        %v977 = vld [vmem:[%s399 + $0x438] sm:$0xff]
        %v978 = vld [vmem:[%s399 + $0x440] sm:$0xff]
        %v979 = vld [vmem:[%s399 + $0x448] sm:$0xff]
        %v980 = vld [vmem:[%s399 + $0x450] sm:$0xff]
        %v981 = vld [vmem:[%s399 + $0x458] sm:$0xff]
        %v982 = vld [vmem:[%s399 + $0x460] sm:$0xff]
        %v983 = vld [vmem:[%s399 + $0x468] sm:$0xff]
        %v984 = vld [vmem:[%s399 + $0x470] sm:$0xff]
        %v985 = vld [vmem:[%s399 + $0x478] sm:$0xff]
        %v986 = vld [vmem:[%s399 + $0x480] sm:$0xff]
        %v987 = vld [vmem:[%s399 + $0x488] sm:$0xff]
        %v988 = vld [vmem:[%s399 + $0x490] sm:$0xff]
        %v989 = vld [vmem:[%s399 + $0x498] sm:$0xff]
        %v990 = vld [vmem:[%s399 + $0x4a0] sm:$0xff]
        %v991 = vld [vmem:[%s399 + $0x4a8] sm:$0xff]
        %v992 = vld [vmem:[%s399 + $0x4b0] sm:$0xff]
        %v993 = vld [vmem:[%s399 + $0x4b8] sm:$0xff]
        %v994 = vld [vmem:[%s399 + $0x4c0] sm:$0xff]
        %v995 = vld [vmem:[%s399 + $0x4c8] sm:$0xff]
        %v996 = vld [vmem:[%s399 + $0x4d0] sm:$0xff]
        %v997 = vld [vmem:[%s399 + $0x4d8] sm:$0xff]
        %v998 = vld [vmem:[%s399 + $0x4e0] sm:$0xff]
        %v999 = vld [vmem:[%s399 + $0x4e8] sm:$0xff]
        %v1000 = vld [vmem:[%s399 + $0x4f0] sm:$0xff]
        %v1001 = vld [vmem:[%s399 + $0x4f8] sm:$0xff]
        %v1002 = vld [vmem:[%s399 + $0x500] sm:$0xff]
        %v1003 = vld [vmem:[%s399 + $0x508] sm:$0xff]
        %v1004 = vld [vmem:[%s399 + $0x510] sm:$0xff]
        %v1005 = vld [vmem:[%s399 + $0x518] sm:$0xff]
        %v1006 = vld [vmem:[%s399 + $0x520] sm:$0xff]
        %v1007 = vld [vmem:[%s399 + $0x528] sm:$0xff]
        %v1008 = vld [vmem:[%s399 + $0x530] sm:$0xff]
        %v1009 = vld [vmem:[%s399 + $0x538] sm:$0xff]
        %v1010 = vld [vmem:[%s399 + $0x540] sm:$0xff]
        %v1011 = vld [vmem:[%s399 + $0x548] sm:$0xff]
        %v1012 = vld [vmem:[%s399 + $0x550] sm:$0xff]
        %v1013 = vld [vmem:[%s399 + $0x558] sm:$0xff]
        %v1014 = vld [vmem:[%s399 + $0x560] sm:$0xff]
        %v1015 = vld [vmem:[%s399 + $0x568] sm:$0xff]
        %v1016 = vld [vmem:[%s399 + $0x570] sm:$0xff]
        %v1017 = vld [vmem:[%s399 + $0x578] sm:$0xff]
        %v1018 = vld [vmem:[%s399 + $0x580] sm:$0xff]
        %v1019 = vld [vmem:[%s399 + $0x588] sm:$0xff]
        %v1020 = vld [vmem:[%s399 + $0x590] sm:$0xff]
        %v1021 = vld [vmem:[%s399 + $0x598] sm:$0xff]
        %v1022 = vld [vmem:[%s399 + $0x5a0] sm:$0xff]
        %v1023 = vld [vmem:[%s399 + $0x5a8] sm:$0xff]
        %v1024 = vld [vmem:[%s399 + $0x5b0] sm:$0xff]
        %v1025 = vld [vmem:[%s399 + $0x5b8] sm:$0xff]
        %v1026 = vld [vmem:[%s399 + $0x5c0] sm:$0xff]
        %v1027 = vld [vmem:[%s399 + $0x5c8] sm:$0xff]
        %v1028 = vld [vmem:[%s399 + $0x5d0] sm:$0xff]
        %v1029 = vld [vmem:[%s399 + $0x5d8] sm:$0xff]
        %v1030 = vld [vmem:[%s399 + $0x5e0] sm:$0xff]
        %v1031 = vld [vmem:[%s399 + $0x5e8] sm:$0xff]
        %v1032 = vld [vmem:[%s399 + $0x5f0] sm:$0xff]
        %v1033 = vld [vmem:[%s399 + $0x5f8] sm:$0xff]
        %v1034 = vunpack.c.l.s8.bf16 %v842
        %v1035 = vunpack.c.l.s8.bf16 %v843
        %v1036 = vunpack.c.l.s8.bf16 %v844
        %v1037 = vunpack.c.l.s8.bf16 %v845
        %v1038 = vunpack.c.l.s8.bf16 %v846
        %v1039 = vunpack.c.l.s8.bf16 %v847
        %v1040 = vunpack.c.l.s8.bf16 %v848
        %v1041 = vunpack.c.l.s8.bf16 %v849
        %v1042 = vunpack.c.l.s8.bf16 %v850
        %v1043 = vunpack.c.l.s8.bf16 %v851
        %v1044 = vunpack.c.l.s8.bf16 %v852
        %v1045 = vunpack.c.l.s8.bf16 %v853
        %v1046 = vunpack.c.h.s8.bf16 %v842
        %v1047 = vunpack.c.h.s8.bf16 %v843
        %v1048 = vunpack.c.h.s8.bf16 %v844
        %v1049 = vunpack.c.h.s8.bf16 %v845
        %v1050 = vunpack.c.h.s8.bf16 %v846
        %v1051 = vunpack.c.h.s8.bf16 %v847
        %v1052 = vunpack.c.h.s8.bf16 %v848
        %v1053 = vunpack.c.h.s8.bf16 %v849
        %v1054 = vunpack.c.h.s8.bf16 %v850
        %v1055 = vunpack.c.h.s8.bf16 %v851
        %v1056 = vunpack.c.h.s8.bf16 %v852
        %v1057 = vunpack.c.h.s8.bf16 %v853
        %v1058 = vunpack.c.l.s8.bf16 %v854
        %v1059 = vunpack.c.l.s8.bf16 %v855
        %v1060 = vunpack.c.l.s8.bf16 %v856
        %v1061 = vunpack.c.l.s8.bf16 %v857
        %v1062 = vunpack.c.l.s8.bf16 %v858
        %v1063 = vunpack.c.l.s8.bf16 %v859
        %v1064 = vunpack.c.l.s8.bf16 %v860
        %v1065 = vunpack.c.l.s8.bf16 %v861
        %v1066 = vunpack.c.l.s8.bf16 %v862
        %v1067 = vunpack.c.l.s8.bf16 %v863
        %v1068 = vunpack.c.l.s8.bf16 %v864
        %v1069 = vunpack.c.l.s8.bf16 %v865
        %v1070 = vunpack.c.h.s8.bf16 %v854
        %v1071 = vunpack.c.h.s8.bf16 %v855
        %v1072 = vunpack.c.h.s8.bf16 %v856
        %v1073 = vunpack.c.h.s8.bf16 %v857
        %v1074 = vunpack.c.h.s8.bf16 %v858
        %v1075 = vunpack.c.h.s8.bf16 %v859
        %v1076 = vunpack.c.h.s8.bf16 %v860
        %v1077 = vunpack.c.h.s8.bf16 %v861
        %v1078 = vunpack.c.h.s8.bf16 %v862
        %v1079 = vunpack.c.h.s8.bf16 %v863
        %v1080 = vunpack.c.h.s8.bf16 %v864
        %v1081 = vunpack.c.h.s8.bf16 %v865
        %v1082 = vunpack.c.l.s8.bf16 %v866
        %v1083 = vunpack.c.l.s8.bf16 %v867
        %v1084 = vunpack.c.l.s8.bf16 %v868
        %v1085 = vunpack.c.l.s8.bf16 %v869
        %v1086 = vunpack.c.l.s8.bf16 %v870
        %v1087 = vunpack.c.l.s8.bf16 %v871
        %v1088 = vunpack.c.l.s8.bf16 %v872
        %v1089 = vunpack.c.l.s8.bf16 %v873
        %v1090 = vunpack.c.l.s8.bf16 %v874
        %v1091 = vunpack.c.l.s8.bf16 %v875
        %v1092 = vunpack.c.l.s8.bf16 %v876
        %v1093 = vunpack.c.l.s8.bf16 %v877
        %v1094 = vunpack.c.h.s8.bf16 %v866
        %v1095 = vunpack.c.h.s8.bf16 %v867
        %v1096 = vunpack.c.h.s8.bf16 %v868
        %v1097 = vunpack.c.h.s8.bf16 %v869
        %v1098 = vunpack.c.h.s8.bf16 %v870
        %v1099 = vunpack.c.h.s8.bf16 %v871
        %v1100 = vunpack.c.h.s8.bf16 %v872
        %v1101 = vunpack.c.h.s8.bf16 %v873
        %v1102 = vunpack.c.h.s8.bf16 %v874
        %v1103 = vunpack.c.h.s8.bf16 %v875
        %v1104 = vunpack.c.h.s8.bf16 %v876
        %v1105 = vunpack.c.h.s8.bf16 %v877
        %v1106 = vunpack.c.l.s8.bf16 %v878
        %v1107 = vunpack.c.l.s8.bf16 %v879
        %v1108 = vunpack.c.l.s8.bf16 %v880
        %v1109 = vunpack.c.l.s8.bf16 %v881
        %v1110 = vunpack.c.l.s8.bf16 %v882
        %v1111 = vunpack.c.l.s8.bf16 %v883
        %v1112 = vunpack.c.l.s8.bf16 %v884
        %v1113 = vunpack.c.l.s8.bf16 %v885
        %v1114 = vunpack.c.l.s8.bf16 %v886
        %v1115 = vunpack.c.l.s8.bf16 %v887
        %v1116 = vunpack.c.l.s8.bf16 %v888
        %v1117 = vunpack.c.l.s8.bf16 %v889
        %v1118 = vunpack.c.h.s8.bf16 %v878
        %v1119 = vunpack.c.h.s8.bf16 %v879
        %v1120 = vunpack.c.h.s8.bf16 %v880
        %v1121 = vunpack.c.h.s8.bf16 %v881
        %v1122 = vunpack.c.h.s8.bf16 %v882
        %v1123 = vunpack.c.h.s8.bf16 %v883
        %v1124 = vunpack.c.h.s8.bf16 %v884
        %v1125 = vunpack.c.h.s8.bf16 %v885
        %v1126 = vunpack.c.h.s8.bf16 %v886
        %v1127 = vunpack.c.h.s8.bf16 %v887
        %v1128 = vunpack.c.h.s8.bf16 %v888
        %v1129 = vunpack.c.h.s8.bf16 %v889
        %v1130 = vunpack.c.l.s8.bf16 %v890
        %v1131 = vunpack.c.l.s8.bf16 %v891
        %v1132 = vunpack.c.l.s8.bf16 %v892
        %v1133 = vunpack.c.l.s8.bf16 %v893
        %v1134 = vunpack.c.l.s8.bf16 %v894
        %v1135 = vunpack.c.l.s8.bf16 %v895
        %v1136 = vunpack.c.l.s8.bf16 %v896
        %v1137 = vunpack.c.l.s8.bf16 %v897
        %v1138 = vunpack.c.l.s8.bf16 %v898
        %v1139 = vunpack.c.l.s8.bf16 %v899
        %v1140 = vunpack.c.l.s8.bf16 %v900
        %v1141 = vunpack.c.l.s8.bf16 %v901
        %v1142 = vunpack.c.h.s8.bf16 %v890
        %v1143 = vunpack.c.h.s8.bf16 %v891
        %v1144 = vunpack.c.h.s8.bf16 %v892
        %v1145 = vunpack.c.h.s8.bf16 %v893
        %v1146 = vunpack.c.h.s8.bf16 %v894
        %v1147 = vunpack.c.h.s8.bf16 %v895
        %v1148 = vunpack.c.h.s8.bf16 %v896
        %v1149 = vunpack.c.h.s8.bf16 %v897
        %v1150 = vunpack.c.h.s8.bf16 %v898
        %v1151 = vunpack.c.h.s8.bf16 %v899
        %v1152 = vunpack.c.h.s8.bf16 %v900
        %v1153 = vunpack.c.h.s8.bf16 %v901
        %v1154 = vunpack.c.l.s8.bf16 %v902
        %v1155 = vunpack.c.l.s8.bf16 %v903
        %v1156 = vunpack.c.l.s8.bf16 %v904
        %v1157 = vunpack.c.l.s8.bf16 %v905
        %v1158 = vunpack.c.l.s8.bf16 %v906
        %v1159 = vunpack.c.l.s8.bf16 %v907
        %v1160 = vunpack.c.l.s8.bf16 %v908
        %v1161 = vunpack.c.l.s8.bf16 %v909
        %v1162 = vunpack.c.l.s8.bf16 %v910
        %v1163 = vunpack.c.l.s8.bf16 %v911
        %v1164 = vunpack.c.l.s8.bf16 %v912
        %v1165 = vunpack.c.l.s8.bf16 %v913
        %v1166 = vunpack.c.h.s8.bf16 %v902
        %v1167 = vunpack.c.h.s8.bf16 %v903
        %v1168 = vunpack.c.h.s8.bf16 %v904
        %v1169 = vunpack.c.h.s8.bf16 %v905
        %v1170 = vunpack.c.h.s8.bf16 %v906
        %v1171 = vunpack.c.h.s8.bf16 %v907
        %v1172 = vunpack.c.h.s8.bf16 %v908
        %v1173 = vunpack.c.h.s8.bf16 %v909
        %v1174 = vunpack.c.h.s8.bf16 %v910
        %v1175 = vunpack.c.h.s8.bf16 %v911
        %v1176 = vunpack.c.h.s8.bf16 %v912
        %v1177 = vunpack.c.h.s8.bf16 %v913
        %v1178 = vunpack.c.l.s8.bf16 %v914
        %v1179 = vunpack.c.l.s8.bf16 %v915
        %v1180 = vunpack.c.l.s8.bf16 %v916
        %v1181 = vunpack.c.l.s8.bf16 %v917
        %v1182 = vunpack.c.l.s8.bf16 %v918
        %v1183 = vunpack.c.l.s8.bf16 %v919
        %v1184 = vunpack.c.l.s8.bf16 %v920
        %v1185 = vunpack.c.l.s8.bf16 %v921
        %v1186 = vunpack.c.l.s8.bf16 %v922
        %v1187 = vunpack.c.l.s8.bf16 %v923
        %v1188 = vunpack.c.l.s8.bf16 %v924
        %v1189 = vunpack.c.l.s8.bf16 %v925
        %v1190 = vunpack.c.h.s8.bf16 %v914
        %v1191 = vunpack.c.h.s8.bf16 %v915
        %v1192 = vunpack.c.h.s8.bf16 %v916
        %v1193 = vunpack.c.h.s8.bf16 %v917
        %v1194 = vunpack.c.h.s8.bf16 %v918
        %v1195 = vunpack.c.h.s8.bf16 %v919
        %v1196 = vunpack.c.h.s8.bf16 %v920
        %v1197 = vunpack.c.h.s8.bf16 %v921
        %v1198 = vunpack.c.h.s8.bf16 %v922
        %v1199 = vunpack.c.h.s8.bf16 %v923
        %v1200 = vunpack.c.h.s8.bf16 %v924
        %v1201 = vunpack.c.h.s8.bf16 %v925
        %v1202 = vunpack.c.l.s8.bf16 %v926
        %v1203 = vunpack.c.l.s8.bf16 %v927
        %v1204 = vunpack.c.l.s8.bf16 %v928
        %v1205 = vunpack.c.l.s8.bf16 %v929
        %v1206 = vunpack.c.l.s8.bf16 %v930
        %v1207 = vunpack.c.l.s8.bf16 %v931
        %v1208 = vunpack.c.l.s8.bf16 %v932
        %v1209 = vunpack.c.l.s8.bf16 %v933
        %v1210 = vunpack.c.l.s8.bf16 %v934
        %v1211 = vunpack.c.l.s8.bf16 %v935
        %v1212 = vunpack.c.l.s8.bf16 %v936
        %v1213 = vunpack.c.l.s8.bf16 %v937
        %v1214 = vunpack.c.h.s8.bf16 %v926
        %v1215 = vunpack.c.h.s8.bf16 %v927
        %v1216 = vunpack.c.h.s8.bf16 %v928
        %v1217 = vunpack.c.h.s8.bf16 %v929
        %v1218 = vunpack.c.h.s8.bf16 %v930
        %v1219 = vunpack.c.h.s8.bf16 %v931
        %v1220 = vunpack.c.h.s8.bf16 %v932
        %v1221 = vunpack.c.h.s8.bf16 %v933
        %v1222 = vunpack.c.h.s8.bf16 %v934
        %v1223 = vunpack.c.h.s8.bf16 %v935
        %v1224 = vunpack.c.h.s8.bf16 %v936
        %v1225 = vunpack.c.h.s8.bf16 %v937
        %v1226 = vunpack.c.l.s8.bf16 %v938
        %v1227 = vunpack.c.l.s8.bf16 %v939
        %v1228 = vunpack.c.l.s8.bf16 %v940
        %v1229 = vunpack.c.l.s8.bf16 %v941
        %v1230 = vunpack.c.l.s8.bf16 %v942
        %v1231 = vunpack.c.l.s8.bf16 %v943
        %v1232 = vunpack.c.l.s8.bf16 %v944
        %v1233 = vunpack.c.l.s8.bf16 %v945
        %v1234 = vunpack.c.l.s8.bf16 %v946
        %v1235 = vunpack.c.l.s8.bf16 %v947
        %v1236 = vunpack.c.l.s8.bf16 %v948
        %v1237 = vunpack.c.l.s8.bf16 %v949
        %v1238 = vunpack.c.h.s8.bf16 %v938
        %v1239 = vunpack.c.h.s8.bf16 %v939
        %v1240 = vunpack.c.h.s8.bf16 %v940
        %v1241 = vunpack.c.h.s8.bf16 %v941
        %v1242 = vunpack.c.h.s8.bf16 %v942
        %v1243 = vunpack.c.h.s8.bf16 %v943
        %v1244 = vunpack.c.h.s8.bf16 %v944
        %v1245 = vunpack.c.h.s8.bf16 %v945
        %v1246 = vunpack.c.h.s8.bf16 %v946
        %v1247 = vunpack.c.h.s8.bf16 %v947
        %v1248 = vunpack.c.h.s8.bf16 %v948
        %v1249 = vunpack.c.h.s8.bf16 %v949
        %v1250 = vunpack.c.l.s8.bf16 %v950
        %v1251 = vunpack.c.l.s8.bf16 %v951
        %v1252 = vunpack.c.l.s8.bf16 %v952
        %v1253 = vunpack.c.l.s8.bf16 %v953
        %v1254 = vunpack.c.l.s8.bf16 %v954
        %v1255 = vunpack.c.l.s8.bf16 %v955
        %v1256 = vunpack.c.l.s8.bf16 %v956
        %v1257 = vunpack.c.l.s8.bf16 %v957
        %v1258 = vunpack.c.l.s8.bf16 %v958
        %v1259 = vunpack.c.l.s8.bf16 %v959
        %v1260 = vunpack.c.l.s8.bf16 %v960
        %v1261 = vunpack.c.l.s8.bf16 %v961
        %v1262 = vunpack.c.h.s8.bf16 %v950
        %v1263 = vunpack.c.h.s8.bf16 %v951
        %v1264 = vunpack.c.h.s8.bf16 %v952
        %v1265 = vunpack.c.h.s8.bf16 %v953
        %v1266 = vunpack.c.h.s8.bf16 %v954
        %v1267 = vunpack.c.h.s8.bf16 %v955
        %v1268 = vunpack.c.h.s8.bf16 %v956
        %v1269 = vunpack.c.h.s8.bf16 %v957
        %v1270 = vunpack.c.h.s8.bf16 %v958
        %v1271 = vunpack.c.h.s8.bf16 %v959
        %v1272 = vunpack.c.h.s8.bf16 %v960
        %v1273 = vunpack.c.h.s8.bf16 %v961
        %v1274 = vunpack.c.l.s8.bf16 %v962
        %v1275 = vunpack.c.l.s8.bf16 %v963
        %v1276 = vunpack.c.l.s8.bf16 %v964
        %v1277 = vunpack.c.l.s8.bf16 %v965
        %v1278 = vunpack.c.l.s8.bf16 %v966
        %v1279 = vunpack.c.l.s8.bf16 %v967
        %v1280 = vunpack.c.l.s8.bf16 %v968
        %v1281 = vunpack.c.l.s8.bf16 %v969
        %v1282 = vunpack.c.l.s8.bf16 %v970
        %v1283 = vunpack.c.l.s8.bf16 %v971
        %v1284 = vunpack.c.l.s8.bf16 %v972
        %v1285 = vunpack.c.l.s8.bf16 %v973
        %v1286 = vunpack.c.h.s8.bf16 %v962
        %v1287 = vunpack.c.h.s8.bf16 %v963
        %v1288 = vunpack.c.h.s8.bf16 %v964
        %v1289 = vunpack.c.h.s8.bf16 %v965
        %v1290 = vunpack.c.h.s8.bf16 %v966
        %v1291 = vunpack.c.h.s8.bf16 %v967
        %v1292 = vunpack.c.h.s8.bf16 %v968
        %v1293 = vunpack.c.h.s8.bf16 %v969
        %v1294 = vunpack.c.h.s8.bf16 %v970
        %v1295 = vunpack.c.h.s8.bf16 %v971
        %v1296 = vunpack.c.h.s8.bf16 %v972
        %v1297 = vunpack.c.h.s8.bf16 %v973
        %v1298 = vunpack.c.l.s8.bf16 %v974
        %v1299 = vunpack.c.l.s8.bf16 %v975
        %v1300 = vunpack.c.l.s8.bf16 %v976
        %v1301 = vunpack.c.l.s8.bf16 %v977
        %v1302 = vunpack.c.l.s8.bf16 %v978
        %v1303 = vunpack.c.l.s8.bf16 %v979
        %v1304 = vunpack.c.l.s8.bf16 %v980
        %v1305 = vunpack.c.l.s8.bf16 %v981
        %v1306 = vunpack.c.l.s8.bf16 %v982
        %v1307 = vunpack.c.l.s8.bf16 %v983
        %v1308 = vunpack.c.l.s8.bf16 %v984
        %v1309 = vunpack.c.l.s8.bf16 %v985
        %v1310 = vunpack.c.h.s8.bf16 %v974
        %v1311 = vunpack.c.h.s8.bf16 %v975
        %v1312 = vunpack.c.h.s8.bf16 %v976
        %v1313 = vunpack.c.h.s8.bf16 %v977
        %v1314 = vunpack.c.h.s8.bf16 %v978
        %v1315 = vunpack.c.h.s8.bf16 %v979
        %v1316 = vunpack.c.h.s8.bf16 %v980
        %v1317 = vunpack.c.h.s8.bf16 %v981
        %v1318 = vunpack.c.h.s8.bf16 %v982
        %v1319 = vunpack.c.h.s8.bf16 %v983
        %v1320 = vunpack.c.h.s8.bf16 %v984
        %v1321 = vunpack.c.h.s8.bf16 %v985
        %v1322 = vunpack.c.l.s8.bf16 %v986
        %v1323 = vunpack.c.l.s8.bf16 %v987
        %v1324 = vunpack.c.l.s8.bf16 %v988
        %v1325 = vunpack.c.l.s8.bf16 %v989
        %v1326 = vunpack.c.l.s8.bf16 %v990
        %v1327 = vunpack.c.l.s8.bf16 %v991
        %v1328 = vunpack.c.l.s8.bf16 %v992
        %v1329 = vunpack.c.l.s8.bf16 %v993
        %v1330 = vunpack.c.l.s8.bf16 %v994
        %v1331 = vunpack.c.l.s8.bf16 %v995
        %v1332 = vunpack.c.l.s8.bf16 %v996
        %v1333 = vunpack.c.l.s8.bf16 %v997
        %v1334 = vunpack.c.h.s8.bf16 %v986
        %v1335 = vunpack.c.h.s8.bf16 %v987
        %v1336 = vunpack.c.h.s8.bf16 %v988
        %v1337 = vunpack.c.h.s8.bf16 %v989
        %v1338 = vunpack.c.h.s8.bf16 %v990
        %v1339 = vunpack.c.h.s8.bf16 %v991
        %v1340 = vunpack.c.h.s8.bf16 %v992
        %v1341 = vunpack.c.h.s8.bf16 %v993
        %v1342 = vunpack.c.h.s8.bf16 %v994
        %v1343 = vunpack.c.h.s8.bf16 %v995
        %v1344 = vunpack.c.h.s8.bf16 %v996
        %v1345 = vunpack.c.h.s8.bf16 %v997
        %v1346 = vunpack.c.l.s8.bf16 %v998
        %v1347 = vunpack.c.l.s8.bf16 %v999
        %v1348 = vunpack.c.l.s8.bf16 %v1000
        %v1349 = vunpack.c.l.s8.bf16 %v1001
        %v1350 = vunpack.c.l.s8.bf16 %v1002
        %v1351 = vunpack.c.l.s8.bf16 %v1003
        %v1352 = vunpack.c.l.s8.bf16 %v1004
        %v1353 = vunpack.c.l.s8.bf16 %v1005
        %v1354 = vunpack.c.l.s8.bf16 %v1006
        %v1355 = vunpack.c.l.s8.bf16 %v1007
        %v1356 = vunpack.c.l.s8.bf16 %v1008
        %v1357 = vunpack.c.l.s8.bf16 %v1009
        %v1358 = vunpack.c.h.s8.bf16 %v998
        %v1359 = vunpack.c.h.s8.bf16 %v999
        %v1360 = vunpack.c.h.s8.bf16 %v1000
        %v1361 = vunpack.c.h.s8.bf16 %v1001
        %v1362 = vunpack.c.h.s8.bf16 %v1002
        %v1363 = vunpack.c.h.s8.bf16 %v1003
        %v1364 = vunpack.c.h.s8.bf16 %v1004
        %v1365 = vunpack.c.h.s8.bf16 %v1005
        %v1366 = vunpack.c.h.s8.bf16 %v1006
        %v1367 = vunpack.c.h.s8.bf16 %v1007
        %v1368 = vunpack.c.h.s8.bf16 %v1008
        %v1369 = vunpack.c.h.s8.bf16 %v1009
        %v1370 = vunpack.c.l.s8.bf16 %v1010
        %v1371 = vunpack.c.l.s8.bf16 %v1011
        %v1372 = vunpack.c.l.s8.bf16 %v1012
        %v1373 = vunpack.c.l.s8.bf16 %v1013
        %v1374 = vunpack.c.l.s8.bf16 %v1014
        %v1375 = vunpack.c.l.s8.bf16 %v1015
        %v1376 = vunpack.c.l.s8.bf16 %v1016
        %v1377 = vunpack.c.l.s8.bf16 %v1017
        %v1378 = vunpack.c.l.s8.bf16 %v1018
        %v1379 = vunpack.c.l.s8.bf16 %v1019
        %v1380 = vunpack.c.l.s8.bf16 %v1020
        %v1381 = vunpack.c.l.s8.bf16 %v1021
        %v1382 = vunpack.c.h.s8.bf16 %v1010
        %v1383 = vunpack.c.h.s8.bf16 %v1011
        %v1384 = vunpack.c.h.s8.bf16 %v1012
        %v1385 = vunpack.c.h.s8.bf16 %v1013
        %v1386 = vunpack.c.h.s8.bf16 %v1014
        %v1387 = vunpack.c.h.s8.bf16 %v1015
        %v1388 = vunpack.c.h.s8.bf16 %v1016
        %v1389 = vunpack.c.h.s8.bf16 %v1017
        %v1390 = vunpack.c.h.s8.bf16 %v1018
        %v1391 = vunpack.c.h.s8.bf16 %v1019
        %v1392 = vunpack.c.h.s8.bf16 %v1020
        %v1393 = vunpack.c.h.s8.bf16 %v1021
        %v1394 = vunpack.c.l.s8.bf16 %v1022
        %v1395 = vunpack.c.l.s8.bf16 %v1023
        %v1396 = vunpack.c.l.s8.bf16 %v1024
        %v1397 = vunpack.c.l.s8.bf16 %v1025
        %v1398 = vunpack.c.l.s8.bf16 %v1026
        %v1399 = vunpack.c.l.s8.bf16 %v1027
        %v1400 = vunpack.c.l.s8.bf16 %v1028
        %v1401 = vunpack.c.l.s8.bf16 %v1029
        %v1402 = vunpack.c.l.s8.bf16 %v1030
        %v1403 = vunpack.c.l.s8.bf16 %v1031
        %v1404 = vunpack.c.l.s8.bf16 %v1032
        %v1405 = vunpack.c.l.s8.bf16 %v1033
        %v1406 = vunpack.c.h.s8.bf16 %v1022
        %v1407 = vunpack.c.h.s8.bf16 %v1023
        %v1408 = vunpack.c.h.s8.bf16 %v1024
        %v1409 = vunpack.c.h.s8.bf16 %v1025
        %v1410 = vunpack.c.h.s8.bf16 %v1026
        %v1411 = vunpack.c.h.s8.bf16 %v1027
        %v1412 = vunpack.c.h.s8.bf16 %v1028
        %v1413 = vunpack.c.h.s8.bf16 %v1029
        %v1414 = vunpack.c.h.s8.bf16 %v1030
        %v1415 = vunpack.c.h.s8.bf16 %v1031
        %v1416 = vunpack.c.h.s8.bf16 %v1032
        %v1417 = vunpack.c.h.s8.bf16 %v1033
        %v1418 = vld [vmem:[%s408] sm:$0xff]
        %v1419 = vld [vmem:[%s408 + $0x8] sm:$0xf]
        %1420 = vmatprep.subr.bf16.mxu0 %v1035
        %1421 = vmatpush1.bf16.msra.mxu0 %v1034
        %1422 = vmatprep.subr.bf16.mxu0 %v1047
        %1423 = vmatpush1.bf16.msra.mxu0 %v1046
        %1424 = vmatprep.subr.bf16.mxu0 %v1059
        %1425 = vmatpush1.bf16.msra.mxu0 %v1058
        %1426 = vmatprep.subr.bf16.mxu0 %v1071
        %1427 = vmatpush1.bf16.msra.mxu0 %v1070
        %1428 = vmatprep.subr.bf16.mxu0 %v1083
        %1429 = vmatpush1.bf16.msra.mxu0 %v1082
        %1430 = vmatprep.subr.bf16.mxu0 %v1095
        %1431 = vmatpush1.bf16.msra.mxu0 %v1094
        %1432 = vmatprep.subr.bf16.mxu0 %v1107
        %1433 = vmatpush1.bf16.msra.mxu0 %v1106
        %1434 = vmatprep.subr.bf16.mxu0 %v1119
        %1435 = vmatpush1.bf16.msra.mxu0 %v1118
        %1436 = vmatprep.subr.bf16.mxu0 %v1131
        %1437 = vmatpush1.bf16.msra.mxu0 %v1130
        %1438 = vmatprep.subr.bf16.mxu0 %v1143
        %1439 = vmatpush1.bf16.msra.mxu0 %v1142
        %1440 = vmatprep.subr.bf16.mxu0 %v1155
        %1441 = vmatpush1.bf16.msra.mxu0 %v1154
        %1442 = vmatprep.subr.bf16.mxu0 %v1167
        %1443 = vmatpush1.bf16.msra.mxu0 %v1166
        %1444 = vmatprep.subr.bf16.mxu0 %v1179
        %1445 = vmatpush1.bf16.msra.mxu0 %v1178
        %1446 = vmatprep.subr.bf16.mxu0 %v1191
        %1447 = vmatpush1.bf16.msra.mxu0 %v1190
        %1448 = vmatprep.subr.bf16.mxu0 %v1203
        %1449 = vmatpush1.bf16.msra.mxu0 %v1202
        %1450 = vmatprep.subr.bf16.mxu0 %v1215
        %1451 = vmatpush1.bf16.msra.mxu0 %v1214
        %1452 = vmatprep.mubr.bf16.mxu0 %v835
        %1453 = vmatmul.mubr.bf16.gmra.mrb[0].mxu0 %v834
        %v1454 = vpop.f32.mrb[0].mxu0
        %v1455 = vadd.f32 0.0, %v1454
        %v1456 = vpop.f32.mrb[0].mxu0
        %v1457 = vadd.f32 0.0, %v1456
        %v1458 = vpop.f32.mrb[0].mxu0
        %v1459 = vadd.f32 0.0, %v1458
        %v1460 = vpop.f32.mrb[0].mxu0
        %v1461 = vadd.f32 0.0, %v1460
        %1462 = vmatprep.mubr.bf16.mxu0 %v839
        %1463 = vmatmul.mubr.bf16.gmra.mrb[0].mxu0 %v838
        %v1464 = vpop.f32.mrb[0].mxu0
        %v1465 = vadd.f32 0.0, %v1464
        %v1466 = vpop.f32.mrb[0].mxu0
        %v1467 = vadd.f32 0.0, %v1466
        %v1468 = vpop.f32.mrb[0].mxu0
        %v1469 = vadd.f32 0.0, %v1468
        %v1470 = vpop.f32.mrb[0].mxu0
        %v1471 = vadd.f32 0.0, %v1470
        %1472 = vdwg.mxu0
        %1473 = vmatprep.subr.bf16.mxu0 %v1227
        %1474 = vmatpush1.bf16.msra.mxu0 %v1226
        %1475 = vmatprep.subr.bf16.mxu0 %v1239
        %1476 = vmatpush1.bf16.msra.mxu0 %v1238
        %1477 = vmatprep.subr.bf16.mxu0 %v1251
        %1478 = vmatpush1.bf16.msra.mxu0 %v1250
        %1479 = vmatprep.subr.bf16.mxu0 %v1263
        %1480 = vmatpush1.bf16.msra.mxu0 %v1262
        %1481 = vmatprep.subr.bf16.mxu0 %v1275
        %1482 = vmatpush1.bf16.msra.mxu0 %v1274
        %1483 = vmatprep.subr.bf16.mxu0 %v1287
        %1484 = vmatpush1.bf16.msra.mxu0 %v1286
        %1485 = vmatprep.subr.bf16.mxu0 %v1299
        %1486 = vmatpush1.bf16.msra.mxu0 %v1298
        %1487 = vmatprep.subr.bf16.mxu0 %v1311
        %1488 = vmatpush1.bf16.msra.mxu0 %v1310
        %1489 = vmatprep.subr.bf16.mxu0 %v1323
        %1490 = vmatpush1.bf16.msra.mxu0 %v1322
        %1491 = vmatprep.subr.bf16.mxu0 %v1335
        %1492 = vmatpush1.bf16.msra.mxu0 %v1334
        %1493 = vmatprep.subr.bf16.mxu0 %v1347
        %1494 = vmatpush1.bf16.msra.mxu0 %v1346
        %1495 = vmatprep.subr.bf16.mxu0 %v1359
        %1496 = vmatpush1.bf16.msra.mxu0 %v1358
        %1497 = vmatprep.subr.bf16.mxu0 %v1371
        %1498 = vmatpush1.bf16.msra.mxu0 %v1370
        %1499 = vmatprep.subr.bf16.mxu0 %v1383
        %1500 = vmatpush1.bf16.msra.mxu0 %v1382
        %1501 = vmatprep.subr.bf16.mxu0 %v1395
        %1502 = vmatpush1.bf16.msra.mxu0 %v1394
        %1503 = vmatprep.subr.bf16.mxu0 %v1407
        %1504 = vmatpush1.bf16.msra.mxu0 %v1406
        %1505 = vmatprep.mubr.bf16.mxu0 %v837
        %1506 = vmatmul.mubr.bf16.gmra.mrb[0].mxu0 %v836
        %v1507 = vpop.f32.mrb[0].mxu0
        %v1508 = vadd.f32 %v1455, %v1507
        %v1509 = vpop.f32.mrb[0].mxu0
        %v1510 = vadd.f32 %v1457, %v1509
        %v1511 = vpop.f32.mrb[0].mxu0
        %v1512 = vadd.f32 %v1459, %v1511
        %v1513 = vpop.f32.mrb[0].mxu0
        %v1514 = vadd.f32 %v1461, %v1513
        %1515 = vmatprep.mubr.bf16.mxu0 %v841
        %1516 = vmatmul.mubr.bf16.gmra.mrb[0].mxu0 %v840
        %v1517 = vpop.f32.mrb[0].mxu0
        %v1518 = vadd.f32 %v1465, %v1517
        %v1519 = vpop.f32.mrb[0].mxu0
        %v1520 = vadd.f32 %v1467, %v1519
        %v1521 = vpop.f32.mrb[0].mxu0
        %v1522 = vadd.f32 %v1469, %v1521
        %v1523 = vpop.f32.mrb[0].mxu0
        %v1524 = vadd.f32 %v1471, %v1523
        %1525 = vdwg.mxu0
        %1526 = vmatprep.subr.bf16.mxu0 %v1037
        %1527 = vmatpush1.bf16.msra.mxu0 %v1036
        %1528 = vmatprep.subr.bf16.mxu0 %v1049
        %1529 = vmatpush1.bf16.msra.mxu0 %v1048
        %1530 = vmatprep.subr.bf16.mxu0 %v1061
        %1531 = vmatpush1.bf16.msra.mxu0 %v1060
        %1532 = vmatprep.subr.bf16.mxu0 %v1073
        %1533 = vmatpush1.bf16.msra.mxu0 %v1072
        %1534 = vmatprep.subr.bf16.mxu0 %v1085
        %1535 = vmatpush1.bf16.msra.mxu0 %v1084
        %1536 = vmatprep.subr.bf16.mxu0 %v1097
        %1537 = vmatpush1.bf16.msra.mxu0 %v1096
        %1538 = vmatprep.subr.bf16.mxu0 %v1109
        %1539 = vmatpush1.bf16.msra.mxu0 %v1108
        %1540 = vmatprep.subr.bf16.mxu0 %v1121
        %1541 = vmatpush1.bf16.msra.mxu0 %v1120
        %1542 = vmatprep.subr.bf16.mxu0 %v1133
        %1543 = vmatpush1.bf16.msra.mxu0 %v1132
        %1544 = vmatprep.subr.bf16.mxu0 %v1145
        %1545 = vmatpush1.bf16.msra.mxu0 %v1144
        %1546 = vmatprep.subr.bf16.mxu0 %v1157
        %1547 = vmatpush1.bf16.msra.mxu0 %v1156
        %1548 = vmatprep.subr.bf16.mxu0 %v1169
        %1549 = vmatpush1.bf16.msra.mxu0 %v1168
        %1550 = vmatprep.subr.bf16.mxu0 %v1181
        %1551 = vmatpush1.bf16.msra.mxu0 %v1180
        %1552 = vmatprep.subr.bf16.mxu0 %v1193
        %1553 = vmatpush1.bf16.msra.mxu0 %v1192
        %1554 = vmatprep.subr.bf16.mxu0 %v1205
        %1555 = vmatpush1.bf16.msra.mxu0 %v1204
        %1556 = vmatprep.subr.bf16.mxu0 %v1217
        %1557 = vmatpush1.bf16.msra.mxu0 %v1216
        %1558 = vmatprep.mubr.bf16.mxu0 %v835
        %1559 = vmatmul.mubr.bf16.gmra.mrb[0].mxu0 %v834
        %v1560 = vpop.f32.mrb[0].mxu0
        %v1561 = vadd.f32 0.0, %v1560
        %v1562 = vpop.f32.mrb[0].mxu0
        %v1563 = vadd.f32 0.0, %v1562
        %v1564 = vpop.f32.mrb[0].mxu0
        %v1565 = vadd.f32 0.0, %v1564
        %v1566 = vpop.f32.mrb[0].mxu0
        %v1567 = vadd.f32 0.0, %v1566
        %1568 = vmatprep.mubr.bf16.mxu0 %v839
        %1569 = vmatmul.mubr.bf16.gmra.mrb[0].mxu0 %v838
        %v1570 = vpop.f32.mrb[0].mxu0
        %v1571 = vadd.f32 0.0, %v1570
        %v1572 = vpop.f32.mrb[0].mxu0
        %v1573 = vadd.f32 0.0, %v1572
        %v1574 = vpop.f32.mrb[0].mxu0
        %v1575 = vadd.f32 0.0, %v1574
        %v1576 = vpop.f32.mrb[0].mxu0
        %v1577 = vadd.f32 0.0, %v1576
        %1578 = vdwg.mxu0
        %1579 = vmatprep.subr.bf16.mxu0 %v1229
        %1580 = vmatpush1.bf16.msra.mxu0 %v1228
        %1581 = vmatprep.subr.bf16.mxu0 %v1241
        %1582 = vmatpush1.bf16.msra.mxu0 %v1240
        %1583 = vmatprep.subr.bf16.mxu0 %v1253
        %1584 = vmatpush1.bf16.msra.mxu0 %v1252
        %1585 = vmatprep.subr.bf16.mxu0 %v1265
        %1586 = vmatpush1.bf16.msra.mxu0 %v1264
        %1587 = vmatprep.subr.bf16.mxu0 %v1277
        %1588 = vmatpush1.bf16.msra.mxu0 %v1276
        %1589 = vmatprep.subr.bf16.mxu0 %v1289
        %1590 = vmatpush1.bf16.msra.mxu0 %v1288
        %1591 = vmatprep.subr.bf16.mxu0 %v1301
        %1592 = vmatpush1.bf16.msra.mxu0 %v1300
        %1593 = vmatprep.subr.bf16.mxu0 %v1313
        %1594 = vmatpush1.bf16.msra.mxu0 %v1312
        %1595 = vmatprep.subr.bf16.mxu0 %v1325
        %1596 = vmatpush1.bf16.msra.mxu0 %v1324
        %1597 = vmatprep.subr.bf16.mxu0 %v1337
        %1598 = vmatpush1.bf16.msra.mxu0 %v1336
        %1599 = vmatprep.subr.bf16.mxu0 %v1349
        %1600 = vmatpush1.bf16.msra.mxu0 %v1348
        %1601 = vmatprep.subr.bf16.mxu0 %v1361
        %1602 = vmatpush1.bf16.msra.mxu0 %v1360
        %1603 = vmatprep.subr.bf16.mxu0 %v1373
        %1604 = vmatpush1.bf16.msra.mxu0 %v1372
        %1605 = vmatprep.subr.bf16.mxu0 %v1385
        %1606 = vmatpush1.bf16.msra.mxu0 %v1384
        %1607 = vmatprep.subr.bf16.mxu0 %v1397
        %1608 = vmatpush1.bf16.msra.mxu0 %v1396
        %1609 = vmatprep.subr.bf16.mxu0 %v1409
        %1610 = vmatpush1.bf16.msra.mxu0 %v1408
        %1611 = vmatprep.mubr.bf16.mxu0 %v837
        %1612 = vmatmul.mubr.bf16.gmra.mrb[0].mxu0 %v836
        %v1613 = vpop.f32.mrb[0].mxu0
        %v1614 = vadd.f32 %v1561, %v1613
        %v1615 = vpop.f32.mrb[0].mxu0
        %v1616 = vadd.f32 %v1563, %v1615
        %v1617 = vpop.f32.mrb[0].mxu0
        %v1618 = vadd.f32 %v1565, %v1617
        %v1619 = vpop.f32.mrb[0].mxu0
        %v1620 = vadd.f32 %v1567, %v1619
        %1621 = vmatprep.mubr.bf16.mxu0 %v841
        %1622 = vmatmul.mubr.bf16.gmra.mrb[0].mxu0 %v840
        %v1623 = vpop.f32.mrb[0].mxu0
        %v1624 = vadd.f32 %v1571, %v1623
        %v1625 = vpop.f32.mrb[0].mxu0
        %v1626 = vadd.f32 %v1573, %v1625
        %v1627 = vpop.f32.mrb[0].mxu0
        %v1628 = vadd.f32 %v1575, %v1627
        %v1629 = vpop.f32.mrb[0].mxu0
        %v1630 = vadd.f32 %v1577, %v1629
        %1631 = vdwg.mxu0
        %1632 = vmatprep.subr.bf16.mxu0 %v1039
        %1633 = vmatpush1.bf16.msra.mxu0 %v1038
        %1634 = vmatprep.subr.bf16.mxu0 %v1051
        %1635 = vmatpush1.bf16.msra.mxu0 %v1050
        %1636 = vmatprep.subr.bf16.mxu0 %v1063
        %1637 = vmatpush1.bf16.msra.mxu0 %v1062
        %1638 = vmatprep.subr.bf16.mxu0 %v1075
        %1639 = vmatpush1.bf16.msra.mxu0 %v1074
        %1640 = vmatprep.subr.bf16.mxu0 %v1087
        %1641 = vmatpush1.bf16.msra.mxu0 %v1086
        %1642 = vmatprep.subr.bf16.mxu0 %v1099
        %1643 = vmatpush1.bf16.msra.mxu0 %v1098
        %1644 = vmatprep.subr.bf16.mxu0 %v1111
        %1645 = vmatpush1.bf16.msra.mxu0 %v1110
        %1646 = vmatprep.subr.bf16.mxu0 %v1123
        %1647 = vmatpush1.bf16.msra.mxu0 %v1122
        %1648 = vmatprep.subr.bf16.mxu0 %v1135
        %1649 = vmatpush1.bf16.msra.mxu0 %v1134
        %1650 = vmatprep.subr.bf16.mxu0 %v1147
        %1651 = vmatpush1.bf16.msra.mxu0 %v1146
        %1652 = vmatprep.subr.bf16.mxu0 %v1159
        %1653 = vmatpush1.bf16.msra.mxu0 %v1158
        %1654 = vmatprep.subr.bf16.mxu0 %v1171
        %1655 = vmatpush1.bf16.msra.mxu0 %v1170
        %1656 = vmatprep.subr.bf16.mxu0 %v1183
        %1657 = vmatpush1.bf16.msra.mxu0 %v1182
        %1658 = vmatprep.subr.bf16.mxu0 %v1195
        %1659 = vmatpush1.bf16.msra.mxu0 %v1194
        %1660 = vmatprep.subr.bf16.mxu0 %v1207
        %1661 = vmatpush1.bf16.msra.mxu0 %v1206
        %1662 = vmatprep.subr.bf16.mxu0 %v1219
        %1663 = vmatpush1.bf16.msra.mxu0 %v1218
        %1664 = vmatprep.mubr.bf16.mxu0 %v835
        %1665 = vmatmul.mubr.bf16.gmra.mrb[0].mxu0 %v834
        %v1666 = vpop.f32.mrb[0].mxu0
        %v1667 = vadd.f32 0.0, %v1666
        %v1668 = vpop.f32.mrb[0].mxu0
        %v1669 = vadd.f32 0.0, %v1668
        %v1670 = vpop.f32.mrb[0].mxu0
        %v1671 = vadd.f32 0.0, %v1670
        %v1672 = vpop.f32.mrb[0].mxu0
        %v1673 = vadd.f32 0.0, %v1672
        %1674 = vmatprep.mubr.bf16.mxu0 %v839
        %1675 = vmatmul.mubr.bf16.gmra.mrb[0].mxu0 %v838
        %v1676 = vpop.f32.mrb[0].mxu0
        %v1677 = vadd.f32 0.0, %v1676
        %v1678 = vpop.f32.mrb[0].mxu0
        %v1679 = vadd.f32 0.0, %v1678
        %v1680 = vpop.f32.mrb[0].mxu0
        %v1681 = vadd.f32 0.0, %v1680
        %v1682 = vpop.f32.mrb[0].mxu0
        %v1683 = vadd.f32 0.0, %v1682
        %1684 = vdwg.mxu0
        %1685 = vmatprep.subr.bf16.mxu0 %v1231
        %1686 = vmatpush1.bf16.msra.mxu0 %v1230
        %1687 = vmatprep.subr.bf16.mxu0 %v1243
        %1688 = vmatpush1.bf16.msra.mxu0 %v1242
        %1689 = vmatprep.subr.bf16.mxu0 %v1255
        %1690 = vmatpush1.bf16.msra.mxu0 %v1254
        %1691 = vmatprep.subr.bf16.mxu0 %v1267
        %1692 = vmatpush1.bf16.msra.mxu0 %v1266
        %1693 = vmatprep.subr.bf16.mxu0 %v1279
        %1694 = vmatpush1.bf16.msra.mxu0 %v1278
        %1695 = vmatprep.subr.bf16.mxu0 %v1291
        %1696 = vmatpush1.bf16.msra.mxu0 %v1290
        %1697 = vmatprep.subr.bf16.mxu0 %v1303
        %1698 = vmatpush1.bf16.msra.mxu0 %v1302
        %1699 = vmatprep.subr.bf16.mxu0 %v1315
        %1700 = vmatpush1.bf16.msra.mxu0 %v1314
        %1701 = vmatprep.subr.bf16.mxu0 %v1327
        %1702 = vmatpush1.bf16.msra.mxu0 %v1326
        %1703 = vmatprep.subr.bf16.mxu0 %v1339
        %1704 = vmatpush1.bf16.msra.mxu0 %v1338
        %1705 = vmatprep.subr.bf16.mxu0 %v1351
        %1706 = vmatpush1.bf16.msra.mxu0 %v1350
        %1707 = vmatprep.subr.bf16.mxu0 %v1363
        %1708 = vmatpush1.bf16.msra.mxu0 %v1362
        %1709 = vmatprep.subr.bf16.mxu0 %v1375
        %1710 = vmatpush1.bf16.msra.mxu0 %v1374
        %1711 = vmatprep.subr.bf16.mxu0 %v1387
        %1712 = vmatpush1.bf16.msra.mxu0 %v1386
        %1713 = vmatprep.subr.bf16.mxu0 %v1399
        %1714 = vmatpush1.bf16.msra.mxu0 %v1398
        %1715 = vmatprep.subr.bf16.mxu0 %v1411
        %1716 = vmatpush1.bf16.msra.mxu0 %v1410
        %1717 = vmatprep.mubr.bf16.mxu0 %v837
        %1718 = vmatmul.mubr.bf16.gmra.mrb[0].mxu0 %v836
        %v1719 = vpop.f32.mrb[0].mxu0
        %v1720 = vadd.f32 %v1667, %v1719
        %v1721 = vpop.f32.mrb[0].mxu0
        %v1722 = vadd.f32 %v1669, %v1721
        %v1723 = vpop.f32.mrb[0].mxu0
        %v1724 = vadd.f32 %v1671, %v1723
        %v1725 = vpop.f32.mrb[0].mxu0
        %v1726 = vadd.f32 %v1673, %v1725
        %1727 = vmatprep.mubr.bf16.mxu0 %v841
        %1728 = vmatmul.mubr.bf16.gmra.mrb[0].mxu0 %v840
        %v1729 = vpop.f32.mrb[0].mxu0
        %v1730 = vadd.f32 %v1677, %v1729
        %v1731 = vpop.f32.mrb[0].mxu0
        %v1732 = vadd.f32 %v1679, %v1731
        %v1733 = vpop.f32.mrb[0].mxu0
        %v1734 = vadd.f32 %v1681, %v1733
        %v1735 = vpop.f32.mrb[0].mxu0
        %v1736 = vadd.f32 %v1683, %v1735
        %1737 = vdwg.mxu0
        %1738 = vmatprep.subr.bf16.mxu0 %v1041
        %1739 = vmatpush1.bf16.msra.mxu0 %v1040
        %1740 = vmatprep.subr.bf16.mxu0 %v1053
        %1741 = vmatpush1.bf16.msra.mxu0 %v1052
        %1742 = vmatprep.subr.bf16.mxu0 %v1065
        %1743 = vmatpush1.bf16.msra.mxu0 %v1064
        %1744 = vmatprep.subr.bf16.mxu0 %v1077
        %1745 = vmatpush1.bf16.msra.mxu0 %v1076
        %1746 = vmatprep.subr.bf16.mxu0 %v1089
        %1747 = vmatpush1.bf16.msra.mxu0 %v1088
        %1748 = vmatprep.subr.bf16.mxu0 %v1101
        %1749 = vmatpush1.bf16.msra.mxu0 %v1100
        %1750 = vmatprep.subr.bf16.mxu0 %v1113
        %1751 = vmatpush1.bf16.msra.mxu0 %v1112
        %1752 = vmatprep.subr.bf16.mxu0 %v1125
        %1753 = vmatpush1.bf16.msra.mxu0 %v1124
        %1754 = vmatprep.subr.bf16.mxu0 %v1137
        %1755 = vmatpush1.bf16.msra.mxu0 %v1136
        %1756 = vmatprep.subr.bf16.mxu0 %v1149
        %1757 = vmatpush1.bf16.msra.mxu0 %v1148
        %1758 = vmatprep.subr.bf16.mxu0 %v1161
        %1759 = vmatpush1.bf16.msra.mxu0 %v1160
        %1760 = vmatprep.subr.bf16.mxu0 %v1173
        %1761 = vmatpush1.bf16.msra.mxu0 %v1172
        %1762 = vmatprep.subr.bf16.mxu0 %v1185
        %1763 = vmatpush1.bf16.msra.mxu0 %v1184
        %1764 = vmatprep.subr.bf16.mxu0 %v1197
        %1765 = vmatpush1.bf16.msra.mxu0 %v1196
        %1766 = vmatprep.subr.bf16.mxu0 %v1209
        %1767 = vmatpush1.bf16.msra.mxu0 %v1208
        %1768 = vmatprep.subr.bf16.mxu0 %v1221
        %1769 = vmatpush1.bf16.msra.mxu0 %v1220
        %1770 = vmatprep.mubr.bf16.mxu0 %v835
        %1771 = vmatmul.mubr.bf16.gmra.mrb[0].mxu0 %v834
        %v1772 = vpop.f32.mrb[0].mxu0
        %v1773 = vadd.f32 0.0, %v1772
        %v1774 = vpop.f32.mrb[0].mxu0
        %v1775 = vadd.f32 0.0, %v1774
        %v1776 = vpop.f32.mrb[0].mxu0
        %v1777 = vadd.f32 0.0, %v1776
        %v1778 = vpop.f32.mrb[0].mxu0
        %v1779 = vadd.f32 0.0, %v1778
        %1780 = vmatprep.mubr.bf16.mxu0 %v839
        %1781 = vmatmul.mubr.bf16.gmra.mrb[0].mxu0 %v838
        %v1782 = vpop.f32.mrb[0].mxu0
        %v1783 = vadd.f32 0.0, %v1782
        %v1784 = vpop.f32.mrb[0].mxu0
        %v1785 = vadd.f32 0.0, %v1784
        %v1786 = vpop.f32.mrb[0].mxu0
        %v1787 = vadd.f32 0.0, %v1786
        %v1788 = vpop.f32.mrb[0].mxu0
        %v1789 = vadd.f32 0.0, %v1788
        %1790 = vdwg.mxu0
        %1791 = vmatprep.subr.bf16.mxu0 %v1233
        %1792 = vmatpush1.bf16.msra.mxu0 %v1232
        %1793 = vmatprep.subr.bf16.mxu0 %v1245
        %1794 = vmatpush1.bf16.msra.mxu0 %v1244
        %1795 = vmatprep.subr.bf16.mxu0 %v1257
        %1796 = vmatpush1.bf16.msra.mxu0 %v1256
        %1797 = vmatprep.subr.bf16.mxu0 %v1269
        %1798 = vmatpush1.bf16.msra.mxu0 %v1268
        %1799 = vmatprep.subr.bf16.mxu0 %v1281
        %1800 = vmatpush1.bf16.msra.mxu0 %v1280
        %1801 = vmatprep.subr.bf16.mxu0 %v1293
        %1802 = vmatpush1.bf16.msra.mxu0 %v1292
        %1803 = vmatprep.subr.bf16.mxu0 %v1305
        %1804 = vmatpush1.bf16.msra.mxu0 %v1304
        %1805 = vmatprep.subr.bf16.mxu0 %v1317
        %1806 = vmatpush1.bf16.msra.mxu0 %v1316
        %1807 = vmatprep.subr.bf16.mxu0 %v1329
        %1808 = vmatpush1.bf16.msra.mxu0 %v1328
        %1809 = vmatprep.subr.bf16.mxu0 %v1341
        %1810 = vmatpush1.bf16.msra.mxu0 %v1340
        %1811 = vmatprep.subr.bf16.mxu0 %v1353
        %1812 = vmatpush1.bf16.msra.mxu0 %v1352
        %1813 = vmatprep.subr.bf16.mxu0 %v1365
        %1814 = vmatpush1.bf16.msra.mxu0 %v1364
        %1815 = vmatprep.subr.bf16.mxu0 %v1377
        %1816 = vmatpush1.bf16.msra.mxu0 %v1376
        %1817 = vmatprep.subr.bf16.mxu0 %v1389
        %1818 = vmatpush1.bf16.msra.mxu0 %v1388
        %1819 = vmatprep.subr.bf16.mxu0 %v1401
        %1820 = vmatpush1.bf16.msra.mxu0 %v1400
        %1821 = vmatprep.subr.bf16.mxu0 %v1413
        %1822 = vmatpush1.bf16.msra.mxu0 %v1412
        %1823 = vmatprep.mubr.bf16.mxu0 %v837
        %1824 = vmatmul.mubr.bf16.gmra.mrb[0].mxu0 %v836
        %v1825 = vpop.f32.mrb[0].mxu0
        %v1826 = vadd.f32 %v1773, %v1825
        %v1827 = vpop.f32.mrb[0].mxu0
        %v1828 = vadd.f32 %v1775, %v1827
        %v1829 = vpop.f32.mrb[0].mxu0
        %v1830 = vadd.f32 %v1777, %v1829
        %v1831 = vpop.f32.mrb[0].mxu0
        %v1832 = vadd.f32 %v1779, %v1831
        %1833 = vmatprep.mubr.bf16.mxu0 %v841
        %1834 = vmatmul.mubr.bf16.gmra.mrb[0].mxu0 %v840
        %v1835 = vpop.f32.mrb[0].mxu0
        %v1836 = vadd.f32 %v1783, %v1835
        %v1837 = vpop.f32.mrb[0].mxu0
        %v1838 = vadd.f32 %v1785, %v1837
        %v1839 = vpop.f32.mrb[0].mxu0
        %v1840 = vadd.f32 %v1787, %v1839
        %v1841 = vpop.f32.mrb[0].mxu0
        %v1842 = vadd.f32 %v1789, %v1841
        %1843 = vdwg.mxu0
        %v1845 = vlaneseq
        %v1846 = vshrl.u32 %v1845, 7
        %v1847 = vsub.s32 0, %v1846
        %v1848 = vrot.slane %v1418, %v1847
        %v1849 = vlaneseq
        %v1850 = vshrl.u32 %v1849, 7
        %v1851 = vsub.s32 1, %v1850
        %v1852 = vrot.slane %v1418, %v1851
        %v1853 = vlaneseq
        %v1854 = vshrl.u32 %v1853, 7
        %v1855 = vsub.s32 2, %v1854
        %v1856 = vrot.slane %v1418, %v1855
        %v1857 = vlaneseq
        %v1858 = vshrl.u32 %v1857, 7
        %v1859 = vsub.s32 3, %v1858
        %v1860 = vrot.slane %v1418, %v1859
        %v1861 = vlaneseq
        %v1862 = vshrl.u32 %v1861, 7
        %v1863 = vsub.s32 4, %v1862
        %v1864 = vrot.slane %v1418, %v1863
        %v1865 = vlaneseq
        %v1866 = vshrl.u32 %v1865, 7
        %v1867 = vsub.s32 5, %v1866
        %v1868 = vrot.slane %v1418, %v1867
        %v1869 = vlaneseq
        %v1870 = vshrl.u32 %v1869, 7
        %v1871 = vsub.s32 6, %v1870
        %v1872 = vrot.slane %v1418, %v1871
        %v1873 = vlaneseq
        %v1874 = vshrl.u32 %v1873, 7
        %v1875 = vsub.s32 7, %v1874
        %v1876 = vrot.slane %v1418, %v1875
        %v1885 = vmul.f32 %v1508, %v1848
        %v1886 = vmul.f32 %v1510, %v1852
        %v1887 = vmul.f32 %v1614, %v1856
        %v1888 = vmul.f32 %v1616, %v1860
        %v1889 = vmul.f32 %v1720, %v1864
        %v1890 = vmul.f32 %v1722, %v1868
        %v1891 = vmul.f32 %v1826, %v1872
        %v1892 = vmul.f32 %v1828, %v1876
        %v1893 = vmul.f32 %v1512, %v1848
        %v1894 = vmul.f32 %v1514, %v1852
        %v1895 = vmul.f32 %v1618, %v1856
        %v1896 = vmul.f32 %v1620, %v1860
        %v1897 = vmul.f32 %v1724, %v1864
        %v1898 = vmul.f32 %v1726, %v1868
        %v1899 = vmul.f32 %v1830, %v1872
        %v1900 = vmul.f32 %v1832, %v1876
        %v1901 = vmul.f32 %v1518, %v1848
        %v1902 = vmul.f32 %v1520, %v1852
        %v1903 = vmul.f32 %v1624, %v1856
        %v1904 = vmul.f32 %v1626, %v1860
        %v1905 = vmul.f32 %v1730, %v1864
        %v1906 = vmul.f32 %v1732, %v1868
        %v1907 = vmul.f32 %v1836, %v1872
        %v1908 = vmul.f32 %v1838, %v1876
        %v1909 = vmul.f32 %v1522, %v1848
        %v1910 = vmul.f32 %v1524, %v1852
        %v1911 = vmul.f32 %v1628, %v1856
        %v1912 = vmul.f32 %v1630, %v1860
        %v1913 = vmul.f32 %v1734, %v1864
        %v1914 = vmul.f32 %v1736, %v1868
        %v1915 = vmul.f32 %v1840, %v1872
        %v1916 = vmul.f32 %v1842, %v1876
        %v1917 = vmul.f32 %v1889, %v1889
        %v1918 = vmul.f32 %v1890, %v1890
        %v1919 = vmul.f32 %v1891, %v1891
        %v1920 = vmul.f32 %v1892, %v1892
        %v1921 = vmul.f32 %v1897, %v1897
        %v1922 = vmul.f32 %v1898, %v1898
        %v1923 = vmul.f32 %v1899, %v1899
        %v1924 = vmul.f32 %v1900, %v1900
        %v1925 = vmul.f32 %v1905, %v1905
        %v1926 = vmul.f32 %v1906, %v1906
        %v1927 = vmul.f32 %v1907, %v1907
        %v1928 = vmul.f32 %v1908, %v1908
        %v1929 = vmul.f32 %v1913, %v1913
        %v1930 = vmul.f32 %v1914, %v1914
        %v1931 = vmul.f32 %v1915, %v1915
        %v1932 = vmul.f32 %v1916, %v1916
        %v1933 = vmul.f32 %v1889, %v1917
        %v1934 = vmul.f32 %v1890, %v1918
        %v1935 = vmul.f32 %v1891, %v1919
        %v1936 = vmul.f32 %v1892, %v1920
        %v1937 = vmul.f32 %v1897, %v1921
        %v1938 = vmul.f32 %v1898, %v1922
        %v1939 = vmul.f32 %v1899, %v1923
        %v1940 = vmul.f32 %v1900, %v1924
        %v1941 = vmul.f32 %v1905, %v1925
        %v1942 = vmul.f32 %v1906, %v1926
        %v1943 = vmul.f32 %v1907, %v1927
        %v1944 = vmul.f32 %v1908, %v1928
        %v1945 = vmul.f32 %v1913, %v1929
        %v1946 = vmul.f32 %v1914, %v1930
        %v1947 = vmul.f32 %v1915, %v1931
        %v1948 = vmul.f32 %v1916, %v1932
        %v1949 = vmul.f32 %v1933, 0.044715
        %v1950 = vmul.f32 %v1934, 0.044715
        %v1951 = vmul.f32 %v1935, 0.044715
        %v1952 = vmul.f32 %v1936, 0.044715
        %v1953 = vmul.f32 %v1937, 0.044715
        %v1954 = vmul.f32 %v1938, 0.044715
        %v1955 = vmul.f32 %v1939, 0.044715
        %v1956 = vmul.f32 %v1940, 0.044715
        %v1957 = vmul.f32 %v1941, 0.044715
        %v1958 = vmul.f32 %v1942, 0.044715
        %v1959 = vmul.f32 %v1943, 0.044715
        %v1960 = vmul.f32 %v1944, 0.044715
        %v1961 = vmul.f32 %v1945, 0.044715
        %v1962 = vmul.f32 %v1946, 0.044715
        %v1963 = vmul.f32 %v1947, 0.044715
        %v1964 = vmul.f32 %v1948, 0.044715
        %v1965 = vadd.f32 %v1889, %v1949
        %v1966 = vadd.f32 %v1890, %v1950
        %v1967 = vadd.f32 %v1891, %v1951
        %v1968 = vadd.f32 %v1892, %v1952
        %v1969 = vadd.f32 %v1897, %v1953
        %v1970 = vadd.f32 %v1898, %v1954
        %v1971 = vadd.f32 %v1899, %v1955
        %v1972 = vadd.f32 %v1900, %v1956
        %v1973 = vadd.f32 %v1905, %v1957
        %v1974 = vadd.f32 %v1906, %v1958
        %v1975 = vadd.f32 %v1907, %v1959
        %v1976 = vadd.f32 %v1908, %v1960
        %v1977 = vadd.f32 %v1913, %v1961
        %v1978 = vadd.f32 %v1914, %v1962
        %v1979 = vadd.f32 %v1915, %v1963
        %v1980 = vadd.f32 %v1916, %v1964
        %v1981 = vmul.f32 %v1965, 0.7978846
        %v1982 = vmul.f32 %v1966, 0.7978846
        %v1983 = vmul.f32 %v1967, 0.7978846
        %v1984 = vmul.f32 %v1968, 0.7978846
        %v1985 = vmul.f32 %v1969, 0.7978846
        %v1986 = vmul.f32 %v1970, 0.7978846
        %v1987 = vmul.f32 %v1971, 0.7978846
        %v1988 = vmul.f32 %v1972, 0.7978846
        %v1989 = vmul.f32 %v1973, 0.7978846
        %v1990 = vmul.f32 %v1974, 0.7978846
        %v1991 = vmul.f32 %v1975, 0.7978846
        %v1992 = vmul.f32 %v1976, 0.7978846
        %v1993 = vmul.f32 %v1977, 0.7978846
        %v1994 = vmul.f32 %v1978, 0.7978846
        %v1995 = vmul.f32 %v1979, 0.7978846
        %v1996 = vmul.f32 %v1980, 0.7978846
        %v1997 = vtanh.pop %v1981
        %v1998 = vtanh.pop %v1982
        %v1999 = vtanh.pop %v1983
        %v2000 = vtanh.pop %v1984
        %v2001 = vtanh.pop %v1985
        %v2002 = vtanh.pop %v1986
        %v2003 = vtanh.pop %v1987
        %v2004 = vtanh.pop %v1988
        %v2005 = vtanh.pop %v1989
        %v2006 = vtanh.pop %v1990
        %v2007 = vtanh.pop %v1991
        %v2008 = vtanh.pop %v1992
        %v2009 = vtanh.pop %v1993
        %v2010 = vtanh.pop %v1994
        %v2011 = vtanh.pop %v1995
        %v2012 = vtanh.pop %v1996
        %v2013 = vadd.f32 %v1997, 1.0
        %v2014 = vadd.f32 %v1998, 1.0
        %v2015 = vadd.f32 %v1999, 1.0
        %v2016 = vadd.f32 %v2000, 1.0
        %v2017 = vadd.f32 %v2001, 1.0
        %v2018 = vadd.f32 %v2002, 1.0
        %v2019 = vadd.f32 %v2003, 1.0
        %v2020 = vadd.f32 %v2004, 1.0
        %v2021 = vadd.f32 %v2005, 1.0
        %v2022 = vadd.f32 %v2006, 1.0
        %v2023 = vadd.f32 %v2007, 1.0
        %v2024 = vadd.f32 %v2008, 1.0
        %v2025 = vadd.f32 %v2009, 1.0
        %v2026 = vadd.f32 %v2010, 1.0
        %v2027 = vadd.f32 %v2011, 1.0
        %v2028 = vadd.f32 %v2012, 1.0
        %v2029 = vmul.f32 %v2013, 0.5
        %v2030 = vmul.f32 %v2014, 0.5
        %v2031 = vmul.f32 %v2015, 0.5
        %v2032 = vmul.f32 %v2016, 0.5
        %v2033 = vmul.f32 %v2017, 0.5
        %v2034 = vmul.f32 %v2018, 0.5
        %v2035 = vmul.f32 %v2019, 0.5
        %v2036 = vmul.f32 %v2020, 0.5
        %v2037 = vmul.f32 %v2021, 0.5
        %v2038 = vmul.f32 %v2022, 0.5
        %v2039 = vmul.f32 %v2023, 0.5
        %v2040 = vmul.f32 %v2024, 0.5
        %v2041 = vmul.f32 %v2025, 0.5
        %v2042 = vmul.f32 %v2026, 0.5
        %v2043 = vmul.f32 %v2027, 0.5
        %v2044 = vmul.f32 %v2028, 0.5
        %v2045 = vmul.f32 %v1889, %v2029
        %v2046 = vmul.f32 %v1890, %v2030
        %v2047 = vmul.f32 %v1891, %v2031
        %v2048 = vmul.f32 %v1892, %v2032
        %v2049 = vmul.f32 %v1897, %v2033
        %v2050 = vmul.f32 %v1898, %v2034
        %v2051 = vmul.f32 %v1899, %v2035
        %v2052 = vmul.f32 %v1900, %v2036
        %v2053 = vmul.f32 %v1905, %v2037
        %v2054 = vmul.f32 %v1906, %v2038
        %v2055 = vmul.f32 %v1907, %v2039
        %v2056 = vmul.f32 %v1908, %v2040
        %v2057 = vmul.f32 %v1913, %v2041
        %v2058 = vmul.f32 %v1914, %v2042
        %v2059 = vmul.f32 %v1915, %v2043
        %v2060 = vmul.f32 %v1916, %v2044
        %v2061 = vmul.f32 %v2045, %v1885
        %v2062 = vmul.f32 %v2046, %v1886
        %v2063 = vmul.f32 %v2047, %v1887
        %v2064 = vmul.f32 %v2048, %v1888
        %v2065 = vmul.f32 %v2049, %v1893
        %v2066 = vmul.f32 %v2050, %v1894
        %v2067 = vmul.f32 %v2051, %v1895
        %v2068 = vmul.f32 %v2052, %v1896
        %v2069 = vmul.f32 %v2053, %v1901
        %v2070 = vmul.f32 %v2054, %v1902
        %v2071 = vmul.f32 %v2055, %v1903
        %v2072 = vmul.f32 %v2056, %v1904
        %v2073 = vmul.f32 %v2057, %v1909
        %v2074 = vmul.f32 %v2058, %v1910
        %v2075 = vmul.f32 %v2059, %v1911
        %v2076 = vmul.f32 %v2060, %v1912
        %v2077 = vld [vmem:[%s469] sm:$0xff]
        %v2078 = vld [vmem:[%s469 + $0x8] sm:$0xff]
        %v2079 = vld [vmem:[%s469 + $0x10] sm:$0xff]
        %v2080 = vld [vmem:[%s469 + $0x18] sm:$0xff]
        %vm2081 = vcmask 261120
        %v2083 = vsel %vm2081, %v2077, 0
        %v2086 = vsel %vm2081, %v2078, 0
        %v2089 = vsel %vm2081, %v2079, 0
        %v2092 = vsel %vm2081, %v2080, 0
        %2094 = vmatprep.subr.mxu0 %v2062
        %2095 = vmatpush1.msra.mxu0 %v2061
        %2096 = vmatprep.subr.mxu0 %v2066
        %2097 = vmatpush1.msra.mxu0 %v2065
        %2098 = vmatprep.subr.mxu0 %v2070
        %2099 = vmatpush1.msra.mxu0 %v2069
        %2100 = vmatprep.subr.mxu0 %v2074
        %2101 = vmatpush1.msra.mxu0 %v2073
        %2102 = vmatprep.subr.mxu0 0.0
        %2103 = vmatpush1.msra.mxu0 0.0
        %2104 = vmatprep.subr.mxu0 0.0
        %2105 = vmatpush1.msra.mxu0 0.0
        %2106 = vmatprep.subr.mxu0 0.0
        %2107 = vmatpush1.msra.mxu0 0.0
        %2108 = vmatprep.subr.mxu0 0.0
        %2109 = vmatpush1.msra.mxu0 0.0
        %2110 = vmatprep.subr.mxu0 0.0
        %2111 = vmatpush1.msra.mxu0 0.0
        %2112 = vmatprep.subr.mxu0 0.0
        %2113 = vmatpush1.msra.mxu0 0.0
        %2114 = vmatprep.subr.mxu0 0.0
        %2115 = vmatpush1.msra.mxu0 0.0
        %2116 = vmatprep.subr.mxu0 0.0
        %2117 = vmatpush1.msra.mxu0 0.0
        %2118 = vmatprep.subr.mxu0 0.0
        %2119 = vmatpush1.msra.mxu0 0.0
        %2120 = vmatprep.subr.mxu0 0.0
        %2121 = vmatpush1.msra.mxu0 0.0
        %2122 = vmatprep.subr.mxu0 0.0
        %2123 = vmatpush1.msra.mxu0 0.0
        %2124 = vmatprep.subr.mxu0 0.0
        %2125 = vmatpush1.msra.mxu0 0.0
        %2126 = vmatprep.subr.mxu0 0.0
        %2127 = vmatpush1.msra.mxu0 0.0
        %2128 = vmatprep.subr.mxu0 0.0
        %2129 = vmatpush1.msra.mxu0 0.0
        %2130 = vmatprep.subr.mxu0 0.0
        %2131 = vmatpush1.msra.mxu0 0.0
        %2132 = vmatprep.subr.mxu0 0.0
        %2133 = vmatpush1.msra.mxu0 0.0
        %2134 = vmatprep.subr.mxu0 0.0
        %2135 = vmatpush1.msra.mxu0 0.0
        %2136 = vmatprep.subr.mxu0 0.0
        %2137 = vmatpush1.msra.mxu0 0.0
        %2138 = vmatprep.subr.mxu0 0.0
        %2139 = vmatpush1.msra.mxu0 0.0
        %2140 = vmatprep.subr.mxu0 0.0
        %2141 = vmatpush1.msra.mxu0 0.0
        %2142 = vmatprep.subr.mxu0 0.0
        %2143 = vmatpush1.msra.mxu0 0.0
        %2144 = vmatprep.subr.mxu0 0.0
        %2145 = vmatpush1.msra.mxu0 0.0
        %2146 = vmatprep.subr.mxu0 0.0
        %2147 = vmatpush1.msra.mxu0 0.0
        %2148 = vmatprep.subr.mxu0 0.0
        %2149 = vmatpush1.msra.mxu0 0.0
        %2150 = vmatprep.subr.mxu0 0.0
        %2151 = vmatpush1.msra.mxu0 0.0
        %2152 = vmatprep.subr.mxu0 0.0
        %2153 = vmatpush1.msra.mxu0 0.0
        %2154 = vmatprep.subr.mxu0 0.0
        %2155 = vmatpush1.msra.mxu0 0.0
        %2156 = vmatprep.subr.mxu0 0.0
        %2157 = vmatpush1.msra.mxu0 0.0
        %2158 = vmatprep.mubr.f32.mxu0 0.0
        %2159 = vmatmul.mubr.f32.gmra.mrb[0].mxu0 %v2083
        %v2160 = vpop.f32.mrb[0].mxu0
        %v2161 = vadd.f32 0.0, %v2160
        %v2162 = vpop.f32.mrb[0].mxu0
        %v2163 = vadd.f32 0.0, %v2162
        %2164 = vmatprep.mubr.f32.mxu0 0.0
        %2165 = vmatmul.mubr.f32.gmra.mrb[0].mxu0 %v2086
        %v2166 = vpop.f32.mrb[0].mxu0
        %v2167 = vadd.f32 0.0, %v2166
        %v2168 = vpop.f32.mrb[0].mxu0
        %v2169 = vadd.f32 0.0, %v2168
        %2170 = vmatprep.mubr.f32.mxu0 0.0
        %2171 = vmatmul.mubr.f32.gmra.mrb[0].mxu0 %v2089
        %v2172 = vpop.f32.mrb[0].mxu0
        %v2173 = vadd.f32 0.0, %v2172
        %v2174 = vpop.f32.mrb[0].mxu0
        %v2175 = vadd.f32 0.0, %v2174
        %2176 = vmatprep.mubr.f32.mxu0 0.0
        %2177 = vmatmul.mubr.f32.gmra.mrb[0].mxu0 %v2092
        %v2178 = vpop.f32.mrb[0].mxu0
        %v2179 = vadd.f32 0.0, %v2178
        %v2180 = vpop.f32.mrb[0].mxu0
        %v2181 = vadd.f32 0.0, %v2180
        %2182 = vdwg.mxu0
        %2183 = vmatprep.subr.mxu0 %v2064
        %2184 = vmatpush1.msra.mxu0 %v2063
        %2185 = vmatprep.subr.mxu0 %v2068
        %2186 = vmatpush1.msra.mxu0 %v2067
        %2187 = vmatprep.subr.mxu0 %v2072
        %2188 = vmatpush1.msra.mxu0 %v2071
        %2189 = vmatprep.subr.mxu0 %v2076
        %2190 = vmatpush1.msra.mxu0 %v2075
        %2191 = vmatprep.subr.mxu0 0.0
        %2192 = vmatpush1.msra.mxu0 0.0
        %2193 = vmatprep.subr.mxu0 0.0
        %2194 = vmatpush1.msra.mxu0 0.0
        %2195 = vmatprep.subr.mxu0 0.0
        %2196 = vmatpush1.msra.mxu0 0.0
        %2197 = vmatprep.subr.mxu0 0.0
        %2198 = vmatpush1.msra.mxu0 0.0
        %2199 = vmatprep.subr.mxu0 0.0
        %2200 = vmatpush1.msra.mxu0 0.0
        %2201 = vmatprep.subr.mxu0 0.0
        %2202 = vmatpush1.msra.mxu0 0.0
        %2203 = vmatprep.subr.mxu0 0.0
        %2204 = vmatpush1.msra.mxu0 0.0
        %2205 = vmatprep.subr.mxu0 0.0
        %2206 = vmatpush1.msra.mxu0 0.0
        %2207 = vmatprep.subr.mxu0 0.0
        %2208 = vmatpush1.msra.mxu0 0.0
        %2209 = vmatprep.subr.mxu0 0.0
        %2210 = vmatpush1.msra.mxu0 0.0
        %2211 = vmatprep.subr.mxu0 0.0
        %2212 = vmatpush1.msra.mxu0 0.0
        %2213 = vmatprep.subr.mxu0 0.0
        %2214 = vmatpush1.msra.mxu0 0.0
        %2215 = vmatprep.subr.mxu0 0.0
        %2216 = vmatpush1.msra.mxu0 0.0
        %2217 = vmatprep.subr.mxu0 0.0
        %2218 = vmatpush1.msra.mxu0 0.0
        %2219 = vmatprep.subr.mxu0 0.0
        %2220 = vmatpush1.msra.mxu0 0.0
        %2221 = vmatprep.subr.mxu0 0.0
        %2222 = vmatpush1.msra.mxu0 0.0
        %2223 = vmatprep.subr.mxu0 0.0
        %2224 = vmatpush1.msra.mxu0 0.0
        %2225 = vmatprep.subr.mxu0 0.0
        %2226 = vmatpush1.msra.mxu0 0.0
        %2227 = vmatprep.subr.mxu0 0.0
        %2228 = vmatpush1.msra.mxu0 0.0
        %2229 = vmatprep.subr.mxu0 0.0
        %2230 = vmatpush1.msra.mxu0 0.0
        %2231 = vmatprep.subr.mxu0 0.0
        %2232 = vmatpush1.msra.mxu0 0.0
        %2233 = vmatprep.subr.mxu0 0.0
        %2234 = vmatpush1.msra.mxu0 0.0
        %2235 = vmatprep.subr.mxu0 0.0
        %2236 = vmatpush1.msra.mxu0 0.0
        %2237 = vmatprep.subr.mxu0 0.0
        %2238 = vmatpush1.msra.mxu0 0.0
        %2239 = vmatprep.subr.mxu0 0.0
        %2240 = vmatpush1.msra.mxu0 0.0
        %2241 = vmatprep.subr.mxu0 0.0
        %2242 = vmatpush1.msra.mxu0 0.0
        %2243 = vmatprep.subr.mxu0 0.0
        %2244 = vmatpush1.msra.mxu0 0.0
        %2245 = vmatprep.subr.mxu0 0.0
        %2246 = vmatpush1.msra.mxu0 0.0
        %2247 = vmatprep.mubr.f32.mxu0 0.0
        %2248 = vmatmul.mubr.f32.gmra.mrb[0].mxu0 %v2083
        %v2249 = vpop.f32.mrb[0].mxu0
        %v2250 = vadd.f32 0.0, %v2249
        %v2251 = vpop.f32.mrb[0].mxu0
        %v2252 = vadd.f32 0.0, %v2251
        %2253 = vmatprep.mubr.f32.mxu0 0.0
        %2254 = vmatmul.mubr.f32.gmra.mrb[0].mxu0 %v2086
        %v2255 = vpop.f32.mrb[0].mxu0
        %v2256 = vadd.f32 0.0, %v2255
        %v2257 = vpop.f32.mrb[0].mxu0
        %v2258 = vadd.f32 0.0, %v2257
        %2259 = vmatprep.mubr.f32.mxu0 0.0
        %2260 = vmatmul.mubr.f32.gmra.mrb[0].mxu0 %v2089
        %v2261 = vpop.f32.mrb[0].mxu0
        %v2262 = vadd.f32 0.0, %v2261
        %v2263 = vpop.f32.mrb[0].mxu0
        %v2264 = vadd.f32 0.0, %v2263
        %2265 = vmatprep.mubr.f32.mxu0 0.0
        %2266 = vmatmul.mubr.f32.gmra.mrb[0].mxu0 %v2092
        %v2267 = vpop.f32.mrb[0].mxu0
        %v2268 = vadd.f32 0.0, %v2267
        %v2269 = vpop.f32.mrb[0].mxu0
        %v2270 = vadd.f32 0.0, %v2269
        %2271 = vdwg.mxu0
        %s2272 = smul.u32 %s25, 2
        %s2273 = sld [smem:[#allocation11 + %s2272]]
        %v2274 = vmul.f32 %v2061, %v2161
        %v2275 = vmul.f32 %v2062, %v2163
        %v2276 = vmul.f32 %v2063, %v2250
        %v2277 = vmul.f32 %v2064, %v2252
        %v2278 = vmul.f32 %v2065, %v2167
        %v2279 = vmul.f32 %v2066, %v2169
        %v2280 = vmul.f32 %v2067, %v2256
        %v2281 = vmul.f32 %v2068, %v2258
        %v2282 = vmul.f32 %v2069, %v2173
        %v2283 = vmul.f32 %v2070, %v2175
        %v2284 = vmul.f32 %v2071, %v2262
        %v2285 = vmul.f32 %v2072, %v2264
        %v2286 = vmul.f32 %v2073, %v2179
        %v2287 = vmul.f32 %v2074, %v2181
        %v2288 = vmul.f32 %v2075, %v2268
        %v2289 = vmul.f32 %v2076, %v2270
        %v2290 = vstv %s2273
        %v2291 = vmul.f32 %v2274, %v2290
        %v2292 = vmul.f32 %v2275, %v2290
        %v2293 = vmul.f32 %v2276, %v2290
        %v2294 = vmul.f32 %v2277, %v2290
        %v2295 = vmul.f32 %v2278, %v2290
        %v2296 = vmul.f32 %v2279, %v2290
        %v2297 = vmul.f32 %v2280, %v2290
        %v2298 = vmul.f32 %v2281, %v2290
        %v2299 = vmul.f32 %v2282, %v2290
        %v2300 = vmul.f32 %v2283, %v2290
        %v2301 = vmul.f32 %v2284, %v2290
        %v2302 = vmul.f32 %v2285, %v2290
        %v2303 = vmul.f32 %v2286, %v2290
        %v2304 = vmul.f32 %v2287, %v2290
        %v2305 = vmul.f32 %v2288, %v2290
        %v2306 = vmul.f32 %v2289, %v2290
        %v2307 = vsub.f32 %v2061, %v2161
        %v2308 = vsub.f32 %v2062, %v2163
        %v2309 = vsub.f32 %v2063, %v2250
        %v2310 = vsub.f32 %v2064, %v2252
        %v2311 = vsub.f32 %v2065, %v2167
        %v2312 = vsub.f32 %v2066, %v2169
        %v2313 = vsub.f32 %v2067, %v2256
        %v2314 = vsub.f32 %v2068, %v2258
        %v2315 = vsub.f32 %v2069, %v2173
        %v2316 = vsub.f32 %v2070, %v2175
        %v2317 = vsub.f32 %v2071, %v2262
        %v2318 = vsub.f32 %v2072, %v2264
        %v2319 = vsub.f32 %v2073, %v2179
        %v2320 = vsub.f32 %v2074, %v2181
        %v2321 = vsub.f32 %v2075, %v2268
        %v2322 = vsub.f32 %v2076, %v2270
        %s2323 = ssub.f32 1.0, %s2273
        %v2324 = vstv %s2323
        %v2325 = vmul.f32 %v2307, %v2324
        %v2326 = vmul.f32 %v2308, %v2324
        %v2327 = vmul.f32 %v2309, %v2324
        %v2328 = vmul.f32 %v2310, %v2324
        %v2329 = vmul.f32 %v2311, %v2324
        %v2330 = vmul.f32 %v2312, %v2324
        %v2331 = vmul.f32 %v2313, %v2324
        %v2332 = vmul.f32 %v2314, %v2324
        %v2333 = vmul.f32 %v2315, %v2324
        %v2334 = vmul.f32 %v2316, %v2324
        %v2335 = vmul.f32 %v2317, %v2324
        %v2336 = vmul.f32 %v2318, %v2324
        %v2337 = vmul.f32 %v2319, %v2324
        %v2338 = vmul.f32 %v2320, %v2324
        %v2339 = vmul.f32 %v2321, %v2324
        %v2340 = vmul.f32 %v2322, %v2324
        %v2341 = vadd.f32 %v2291, %v2325
        %v2342 = vadd.f32 %v2292, %v2326
        %v2343 = vadd.f32 %v2293, %v2327
        %v2344 = vadd.f32 %v2294, %v2328
        %v2345 = vadd.f32 %v2295, %v2329
        %v2346 = vadd.f32 %v2296, %v2330
        %v2347 = vadd.f32 %v2297, %v2331
        %v2348 = vadd.f32 %v2298, %v2332
        %v2349 = vadd.f32 %v2299, %v2333
        %v2350 = vadd.f32 %v2300, %v2334
        %v2351 = vadd.f32 %v2301, %v2335
        %v2352 = vadd.f32 %v2302, %v2336
        %v2353 = vadd.f32 %v2303, %v2337
        %v2354 = vadd.f32 %v2304, %v2338
        %v2355 = vadd.f32 %v2305, %v2339
        %v2356 = vadd.f32 %v2306, %v2340
        %v2357 = vpack.c.bf16 %v2345, %v2341
        %v2358 = vpack.c.bf16 %v2346, %v2342
        %v2359 = vpack.c.bf16 %v2347, %v2343
        %v2360 = vpack.c.bf16 %v2348, %v2344
        %v2361 = vpack.c.bf16 %v2353, %v2349
        %v2362 = vpack.c.bf16 %v2354, %v2350
        %v2363 = vpack.c.bf16 %v2355, %v2351
        %v2364 = vpack.c.bf16 %v2356, %v2352
        %2365 = vmatprep.subr.bf16.mxu0 %v1043
        %2366 = vmatpush1.bf16.msra.mxu0 %v1042
        %2367 = vmatprep.subr.bf16.mxu0 %v1055
        %2368 = vmatpush1.bf16.msra.mxu0 %v1054
        %2369 = vmatprep.subr.bf16.mxu0 %v1067
        %2370 = vmatpush1.bf16.msra.mxu0 %v1066
        %2371 = vmatprep.subr.bf16.mxu0 %v1079
        %2372 = vmatpush1.bf16.msra.mxu0 %v1078
        %2373 = vmatprep.subr.bf16.mxu0 %v1091
        %2374 = vmatpush1.bf16.msra.mxu0 %v1090
        %2375 = vmatprep.subr.bf16.mxu0 %v1103
        %2376 = vmatpush1.bf16.msra.mxu0 %v1102
        %2377 = vmatprep.subr.bf16.mxu0 %v1115
        %2378 = vmatpush1.bf16.msra.mxu0 %v1114
        %2379 = vmatprep.subr.bf16.mxu0 %v1127
        %2380 = vmatpush1.bf16.msra.mxu0 %v1126
        %2381 = vmatprep.subr.bf16.mxu0 %v1139
        %2382 = vmatpush1.bf16.msra.mxu0 %v1138
        %2383 = vmatprep.subr.bf16.mxu0 %v1151
        %2384 = vmatpush1.bf16.msra.mxu0 %v1150
        %2385 = vmatprep.subr.bf16.mxu0 %v1163
        %2386 = vmatpush1.bf16.msra.mxu0 %v1162
        %2387 = vmatprep.subr.bf16.mxu0 %v1175
        %2388 = vmatpush1.bf16.msra.mxu0 %v1174
        %2389 = vmatprep.subr.bf16.mxu0 %v1187
        %2390 = vmatpush1.bf16.msra.mxu0 %v1186
        %2391 = vmatprep.subr.bf16.mxu0 %v1199
        %2392 = vmatpush1.bf16.msra.mxu0 %v1198
        %2393 = vmatprep.subr.bf16.mxu0 %v1211
        %2394 = vmatpush1.bf16.msra.mxu0 %v1210
        %2395 = vmatprep.subr.bf16.mxu0 %v1223
        %2396 = vmatpush1.bf16.msra.mxu0 %v1222
        %2397 = vmatprep.mubr.bf16.mxu0 %v2358
        %2398 = vmatmul.mubr.bf16.gmra.mrb[0].mxu0 %v2357
        %v2399 = vpop.f32.mrb[0].mxu0
        %v2400 = vadd.f32 0.0, %v2399
        %v2401 = vpop.f32.mrb[0].mxu0
        %v2402 = vadd.f32 0.0, %v2401
        %v2403 = vpop.f32.mrb[0].mxu0
        %v2404 = vadd.f32 0.0, %v2403
        %v2405 = vpop.f32.mrb[0].mxu0
        %v2406 = vadd.f32 0.0, %v2405
        %2407 = vmatprep.mubr.bf16.mxu0 %v2362
        %2408 = vmatmul.mubr.bf16.gmra.mrb[0].mxu0 %v2361
        %v2409 = vpop.f32.mrb[0].mxu0
        %v2410 = vadd.f32 0.0, %v2409
        %v2411 = vpop.f32.mrb[0].mxu0
        %v2412 = vadd.f32 0.0, %v2411
        %v2413 = vpop.f32.mrb[0].mxu0
        %v2414 = vadd.f32 0.0, %v2413
        %v2415 = vpop.f32.mrb[0].mxu0
        %v2416 = vadd.f32 0.0, %v2415
        %2417 = vdwg.mxu0
        %2418 = vmatprep.subr.bf16.mxu0 %v1235
        %2419 = vmatpush1.bf16.msra.mxu0 %v1234
        %2420 = vmatprep.subr.bf16.mxu0 %v1247
        %2421 = vmatpush1.bf16.msra.mxu0 %v1246
        %2422 = vmatprep.subr.bf16.mxu0 %v1259
        %2423 = vmatpush1.bf16.msra.mxu0 %v1258
        %2424 = vmatprep.subr.bf16.mxu0 %v1271
        %2425 = vmatpush1.bf16.msra.mxu0 %v1270
        %2426 = vmatprep.subr.bf16.mxu0 %v1283
        %2427 = vmatpush1.bf16.msra.mxu0 %v1282
        %2428 = vmatprep.subr.bf16.mxu0 %v1295
        %2429 = vmatpush1.bf16.msra.mxu0 %v1294
        %2430 = vmatprep.subr.bf16.mxu0 %v1307
        %2431 = vmatpush1.bf16.msra.mxu0 %v1306
        %2432 = vmatprep.subr.bf16.mxu0 %v1319
        %2433 = vmatpush1.bf16.msra.mxu0 %v1318
        %2434 = vmatprep.subr.bf16.mxu0 %v1331
        %2435 = vmatpush1.bf16.msra.mxu0 %v1330
        %2436 = vmatprep.subr.bf16.mxu0 %v1343
        %2437 = vmatpush1.bf16.msra.mxu0 %v1342
        %2438 = vmatprep.subr.bf16.mxu0 %v1355
        %2439 = vmatpush1.bf16.msra.mxu0 %v1354
        %2440 = vmatprep.subr.bf16.mxu0 %v1367
        %2441 = vmatpush1.bf16.msra.mxu0 %v1366
        %2442 = vmatprep.subr.bf16.mxu0 %v1379
        %2443 = vmatpush1.bf16.msra.mxu0 %v1378
        %2444 = vmatprep.subr.bf16.mxu0 %v1391
        %2445 = vmatpush1.bf16.msra.mxu0 %v1390
        %2446 = vmatprep.subr.bf16.mxu0 %v1403
        %2447 = vmatpush1.bf16.msra.mxu0 %v1402
        %2448 = vmatprep.subr.bf16.mxu0 %v1415
        %2449 = vmatpush1.bf16.msra.mxu0 %v1414
        %2450 = vmatprep.mubr.bf16.mxu0 %v2360
        %2451 = vmatmul.mubr.bf16.gmra.mrb[0].mxu0 %v2359
        %v2452 = vpop.f32.mrb[0].mxu0
        %v2453 = vadd.f32 %v2400, %v2452
        %v2454 = vpop.f32.mrb[0].mxu0
        %v2455 = vadd.f32 %v2402, %v2454
        %v2456 = vpop.f32.mrb[0].mxu0
        %v2457 = vadd.f32 %v2404, %v2456
        %v2458 = vpop.f32.mrb[0].mxu0
        %v2459 = vadd.f32 %v2406, %v2458
        %2460 = vmatprep.mubr.bf16.mxu0 %v2364
        %2461 = vmatmul.mubr.bf16.gmra.mrb[0].mxu0 %v2363
        %v2462 = vpop.f32.mrb[0].mxu0
        %v2463 = vadd.f32 %v2410, %v2462
        %v2464 = vpop.f32.mrb[0].mxu0
        %v2465 = vadd.f32 %v2412, %v2464
        %v2466 = vpop.f32.mrb[0].mxu0
        %v2467 = vadd.f32 %v2414, %v2466
        %v2468 = vpop.f32.mrb[0].mxu0
        %v2469 = vadd.f32 %v2416, %v2468
        %2470 = vdwg.mxu0
        %2471 = vmatprep.subr.bf16.mxu0 %v1045
        %2472 = vmatpush1.bf16.msra.mxu0 %v1044
        %2473 = vmatprep.subr.bf16.mxu0 %v1057
        %2474 = vmatpush1.bf16.msra.mxu0 %v1056
        %2475 = vmatprep.subr.bf16.mxu0 %v1069
        %2476 = vmatpush1.bf16.msra.mxu0 %v1068
        %2477 = vmatprep.subr.bf16.mxu0 %v1081
        %2478 = vmatpush1.bf16.msra.mxu0 %v1080
        %2479 = vmatprep.subr.bf16.mxu0 %v1093
        %2480 = vmatpush1.bf16.msra.mxu0 %v1092
        %2481 = vmatprep.subr.bf16.mxu0 %v1105
        %2482 = vmatpush1.bf16.msra.mxu0 %v1104
        %2483 = vmatprep.subr.bf16.mxu0 %v1117
        %2484 = vmatpush1.bf16.msra.mxu0 %v1116
        %2485 = vmatprep.subr.bf16.mxu0 %v1129
        %2486 = vmatpush1.bf16.msra.mxu0 %v1128
        %2487 = vmatprep.subr.bf16.mxu0 %v1141
        %2488 = vmatpush1.bf16.msra.mxu0 %v1140
        %2489 = vmatprep.subr.bf16.mxu0 %v1153
        %2490 = vmatpush1.bf16.msra.mxu0 %v1152
        %2491 = vmatprep.subr.bf16.mxu0 %v1165
        %2492 = vmatpush1.bf16.msra.mxu0 %v1164
        %2493 = vmatprep.subr.bf16.mxu0 %v1177
        %2494 = vmatpush1.bf16.msra.mxu0 %v1176
        %2495 = vmatprep.subr.bf16.mxu0 %v1189
        %2496 = vmatpush1.bf16.msra.mxu0 %v1188
        %2497 = vmatprep.subr.bf16.mxu0 %v1201
        %2498 = vmatpush1.bf16.msra.mxu0 %v1200
        %2499 = vmatprep.subr.bf16.mxu0 %v1213
        %2500 = vmatpush1.bf16.msra.mxu0 %v1212
        %2501 = vmatprep.subr.bf16.mxu0 %v1225
        %2502 = vmatpush1.bf16.msra.mxu0 %v1224
        %2503 = vmatprep.mubr.bf16.mxu0 %v2358
        %2504 = vmatmul.mubr.bf16.gmra.mrb[0].mxu0 %v2357
        %v2505 = vpop.f32.mrb[0].mxu0
        %v2506 = vadd.f32 0.0, %v2505
        %v2507 = vpop.f32.mrb[0].mxu0
        %v2508 = vadd.f32 0.0, %v2507
        %v2509 = vpop.f32.mrb[0].mxu0
        %v2510 = vadd.f32 0.0, %v2509
        %v2511 = vpop.f32.mrb[0].mxu0
        %v2512 = vadd.f32 0.0, %v2511
        %2513 = vmatprep.mubr.bf16.mxu0 %v2362
        %2514 = vmatmul.mubr.bf16.gmra.mrb[0].mxu0 %v2361
        %v2515 = vpop.f32.mrb[0].mxu0
        %v2516 = vadd.f32 0.0, %v2515
        %v2517 = vpop.f32.mrb[0].mxu0
        %v2518 = vadd.f32 0.0, %v2517
        %v2519 = vpop.f32.mrb[0].mxu0
        %v2520 = vadd.f32 0.0, %v2519
        %v2521 = vpop.f32.mrb[0].mxu0
        %v2522 = vadd.f32 0.0, %v2521
        %2523 = vdwg.mxu0
        %2524 = vmatprep.subr.bf16.mxu0 %v1237
        %2525 = vmatpush1.bf16.msra.mxu0 %v1236
        %2526 = vmatprep.subr.bf16.mxu0 %v1249
        %2527 = vmatpush1.bf16.msra.mxu0 %v1248
        %2528 = vmatprep.subr.bf16.mxu0 %v1261
        %2529 = vmatpush1.bf16.msra.mxu0 %v1260
        %2530 = vmatprep.subr.bf16.mxu0 %v1273
        %2531 = vmatpush1.bf16.msra.mxu0 %v1272
        %2532 = vmatprep.subr.bf16.mxu0 %v1285
        %2533 = vmatpush1.bf16.msra.mxu0 %v1284
        %2534 = vmatprep.subr.bf16.mxu0 %v1297
        %2535 = vmatpush1.bf16.msra.mxu0 %v1296
        %2536 = vmatprep.subr.bf16.mxu0 %v1309
        %2537 = vmatpush1.bf16.msra.mxu0 %v1308
        %2538 = vmatprep.subr.bf16.mxu0 %v1321
        %2539 = vmatpush1.bf16.msra.mxu0 %v1320
        %2540 = vmatprep.subr.bf16.mxu0 %v1333
        %2541 = vmatpush1.bf16.msra.mxu0 %v1332
        %2542 = vmatprep.subr.bf16.mxu0 %v1345
        %2543 = vmatpush1.bf16.msra.mxu0 %v1344
        %2544 = vmatprep.subr.bf16.mxu0 %v1357
        %2545 = vmatpush1.bf16.msra.mxu0 %v1356
        %2546 = vmatprep.subr.bf16.mxu0 %v1369
        %2547 = vmatpush1.bf16.msra.mxu0 %v1368
        %2548 = vmatprep.subr.bf16.mxu0 %v1381
        %2549 = vmatpush1.bf16.msra.mxu0 %v1380
        %2550 = vmatprep.subr.bf16.mxu0 %v1393
        %2551 = vmatpush1.bf16.msra.mxu0 %v1392
        %2552 = vmatprep.subr.bf16.mxu0 %v1405
        %2553 = vmatpush1.bf16.msra.mxu0 %v1404
        %2554 = vmatprep.subr.bf16.mxu0 %v1417
        %2555 = vmatpush1.bf16.msra.mxu0 %v1416
        %2556 = vmatprep.mubr.bf16.mxu0 %v2360
        %2557 = vmatmul.mubr.bf16.gmra.mrb[0].mxu0 %v2359
        %v2558 = vpop.f32.mrb[0].mxu0
        %v2559 = vadd.f32 %v2506, %v2558
        %v2560 = vpop.f32.mrb[0].mxu0
        %v2561 = vadd.f32 %v2508, %v2560
        %v2562 = vpop.f32.mrb[0].mxu0
        %v2563 = vadd.f32 %v2510, %v2562
        %v2564 = vpop.f32.mrb[0].mxu0
        %v2565 = vadd.f32 %v2512, %v2564
        %2566 = vmatprep.mubr.bf16.mxu0 %v2364
        %2567 = vmatmul.mubr.bf16.gmra.mrb[0].mxu0 %v2363
        %v2568 = vpop.f32.mrb[0].mxu0
        %v2569 = vadd.f32 %v2516, %v2568
        %v2570 = vpop.f32.mrb[0].mxu0
        %v2571 = vadd.f32 %v2518, %v2570
        %v2572 = vpop.f32.mrb[0].mxu0
        %v2573 = vadd.f32 %v2520, %v2572
        %v2574 = vpop.f32.mrb[0].mxu0
        %v2575 = vadd.f32 %v2522, %v2574
        %2576 = vdwg.mxu0
        %v2578 = vlaneseq
        %v2579 = vshrl.u32 %v2578, 7
        %v2580 = vsub.s32 0, %v2579
        %v2581 = vrot.slane %v1419, %v2580
        %v2582 = vlaneseq
        %v2583 = vshrl.u32 %v2582, 7
        %v2584 = vsub.s32 1, %v2583
        %v2585 = vrot.slane %v1419, %v2584
        %v2586 = vlaneseq
        %v2587 = vshrl.u32 %v2586, 7
        %v2588 = vsub.s32 2, %v2587
        %v2589 = vrot.slane %v1419, %v2588
        %v2590 = vlaneseq
        %v2591 = vshrl.u32 %v2590, 7
        %v2592 = vsub.s32 3, %v2591
        %v2593 = vrot.slane %v1419, %v2592
        %v2598 = vmul.f32 %v2453, %v2581
        %v2599 = vmul.f32 %v2455, %v2585
        %v2600 = vmul.f32 %v2559, %v2589
        %v2601 = vmul.f32 %v2561, %v2593
        %v2602 = vmul.f32 %v2457, %v2581
        %v2603 = vmul.f32 %v2459, %v2585
        %v2604 = vmul.f32 %v2563, %v2589
        %v2605 = vmul.f32 %v2565, %v2593
        %v2606 = vmul.f32 %v2463, %v2581
        %v2607 = vmul.f32 %v2465, %v2585
        %v2608 = vmul.f32 %v2569, %v2589
        %v2609 = vmul.f32 %v2571, %v2593
        %v2610 = vmul.f32 %v2467, %v2581
        %v2611 = vmul.f32 %v2469, %v2585
        %v2612 = vmul.f32 %v2573, %v2589
        %v2613 = vmul.f32 %v2575, %v2593
        %v2614 = vadd.f32 %v818, %v2598
        %v2615 = vadd.f32 %v819, %v2599
        %v2616 = vadd.f32 %v820, %v2600
        %v2617 = vadd.f32 %v821, %v2601
        %v2618 = vadd.f32 %v822, %v2602
        %v2619 = vadd.f32 %v823, %v2603
        %v2620 = vadd.f32 %v824, %v2604
        %v2621 = vadd.f32 %v825, %v2605
        %v2622 = vadd.f32 %v826, %v2606
        %v2623 = vadd.f32 %v827, %v2607
        %v2624 = vadd.f32 %v828, %v2608
        %v2625 = vadd.f32 %v829, %v2609
        %v2626 = vadd.f32 %v830, %v2610
        %v2627 = vadd.f32 %v831, %v2611
        %v2628 = vadd.f32 %v832, %v2612
        %v2629 = vadd.f32 %v833, %v2613
        %2630 = vst [vmem:[#allocation2] sm:$0xff] %v2614
        %2631 = vst [vmem:[#allocation2 + $0x8] sm:$0xff] %v2615
        %2632 = vst [vmem:[#allocation2 + $0x10] sm:$0xff] %v2616
        %2633 = vst [vmem:[#allocation2 + $0x18] sm:$0xff] %v2617
        %2634 = vst [vmem:[#allocation2 + $0x20] sm:$0xff] %v2618
        %2635 = vst [vmem:[#allocation2 + $0x28] sm:$0xff] %v2619
        %2636 = vst [vmem:[#allocation2 + $0x30] sm:$0xff] %v2620
        %2637 = vst [vmem:[#allocation2 + $0x38] sm:$0xff] %v2621
        %2638 = vst [vmem:[#allocation2 + $0x40] sm:$0xff] %v2622
        %2639 = vst [vmem:[#allocation2 + $0x48] sm:$0xff] %v2623
        %2640 = vst [vmem:[#allocation2 + $0x50] sm:$0xff] %v2624
        %2641 = vst [vmem:[#allocation2 + $0x58] sm:$0xff] %v2625
        %2642 = vst [vmem:[#allocation2 + $0x60] sm:$0xff] %v2626
        %2643 = vst [vmem:[#allocation2 + $0x68] sm:$0xff] %v2627
        %2644 = vst [vmem:[#allocation2 + $0x70] sm:$0xff] %v2628
        %2645 = vst [vmem:[#allocation2 + $0x78] sm:$0xff] %v2629
        %v2646 = vld [vmem:[#allocation2] sm:$0xff]
        %v2647 = vld [vmem:[#allocation2 + $0x8] sm:$0xff]
        %v2648 = vld [vmem:[#allocation2 + $0x10] sm:$0xff]
        %v2649 = vld [vmem:[#allocation2 + $0x18] sm:$0xff]
        %v2650 = vld [vmem:[#allocation2 + $0x20] sm:$0xff]
        %v2651 = vld [vmem:[#allocation2 + $0x28] sm:$0xff]
        %v2652 = vld [vmem:[#allocation2 + $0x30] sm:$0xff]
        %v2653 = vld [vmem:[#allocation2 + $0x38] sm:$0xff]
        %v2654 = vld [vmem:[#allocation2 + $0x40] sm:$0xff]
        %v2655 = vld [vmem:[#allocation2 + $0x48] sm:$0xff]
        %v2656 = vld [vmem:[#allocation2 + $0x50] sm:$0xff]
        %v2657 = vld [vmem:[#allocation2 + $0x58] sm:$0xff]
        %v2658 = vld [vmem:[#allocation2 + $0x60] sm:$0xff]
        %v2659 = vld [vmem:[#allocation2 + $0x68] sm:$0xff]
        %v2660 = vld [vmem:[#allocation2 + $0x70] sm:$0xff]
        %v2661 = vld [vmem:[#allocation2 + $0x78] sm:$0xff]
        %v2662 = vpack.c.bf16 %v2650, %v2646
        %v2663 = vpack.c.bf16 %v2651, %v2647
        %v2664 = vpack.c.bf16 %v2652, %v2648
        %v2665 = vpack.c.bf16 %v2653, %v2649
        %v2666 = vpack.c.bf16 %v2658, %v2654
        %v2667 = vpack.c.bf16 %v2659, %v2655
        %v2668 = vpack.c.bf16 %v2660, %v2656
        %v2669 = vpack.c.bf16 %v2661, %v2657
        %s2670 = scalar_lea.vmem %s399, 1536 [#allocation9]
        %v2671 = vld [vmem:[%s2670] sm:$0xff]
        %v2672 = vld [vmem:[%s2670 + $0x8] sm:$0xff]
        %v2673 = vld [vmem:[%s2670 + $0x10] sm:$0xff]
        %v2674 = vld [vmem:[%s2670 + $0x18] sm:$0xff]
        %v2675 = vld [vmem:[%s2670 + $0x20] sm:$0xff]
        %v2676 = vld [vmem:[%s2670 + $0x28] sm:$0xff]
        %v2677 = vld [vmem:[%s2670 + $0x30] sm:$0xff]
        %v2678 = vld [vmem:[%s2670 + $0x38] sm:$0xff]
        %v2679 = vld [vmem:[%s2670 + $0x40] sm:$0xff]
        %v2680 = vld [vmem:[%s2670 + $0x48] sm:$0xff]
        %v2681 = vld [vmem:[%s2670 + $0x50] sm:$0xff]
        %v2682 = vld [vmem:[%s2670 + $0x58] sm:$0xff]
        %v2683 = vld [vmem:[%s2670 + $0x60] sm:$0xff]
        %v2684 = vld [vmem:[%s2670 + $0x68] sm:$0xff]
        %v2685 = vld [vmem:[%s2670 + $0x70] sm:$0xff]
        %v2686 = vld [vmem:[%s2670 + $0x78] sm:$0xff]
        %v2687 = vld [vmem:[%s2670 + $0x80] sm:$0xff]
        %v2688 = vld [vmem:[%s2670 + $0x88] sm:$0xff]
        %v2689 = vld [vmem:[%s2670 + $0x90] sm:$0xff]
        %v2690 = vld [vmem:[%s2670 + $0x98] sm:$0xff]
        %v2691 = vld [vmem:[%s2670 + $0xa0] sm:$0xff]
        %v2692 = vld [vmem:[%s2670 + $0xa8] sm:$0xff]
        %v2693 = vld [vmem:[%s2670 + $0xb0] sm:$0xff]
        %v2694 = vld [vmem:[%s2670 + $0xb8] sm:$0xff]
        %v2695 = vld [vmem:[%s2670 + $0xc0] sm:$0xff]
        %v2696 = vld [vmem:[%s2670 + $0xc8] sm:$0xff]
        %v2697 = vld [vmem:[%s2670 + $0xd0] sm:$0xff]
        %v2698 = vld [vmem:[%s2670 + $0xd8] sm:$0xff]
        %v2699 = vld [vmem:[%s2670 + $0xe0] sm:$0xff]
        %v2700 = vld [vmem:[%s2670 + $0xe8] sm:$0xff]
        %v2701 = vld [vmem:[%s2670 + $0xf0] sm:$0xff]
        %v2702 = vld [vmem:[%s2670 + $0xf8] sm:$0xff]
        %v2703 = vld [vmem:[%s2670 + $0x100] sm:$0xff]
        %v2704 = vld [vmem:[%s2670 + $0x108] sm:$0xff]
        %v2705 = vld [vmem:[%s2670 + $0x110] sm:$0xff]
        %v2706 = vld [vmem:[%s2670 + $0x118] sm:$0xff]
        %v2707 = vld [vmem:[%s2670 + $0x120] sm:$0xff]
        %v2708 = vld [vmem:[%s2670 + $0x128] sm:$0xff]
        %v2709 = vld [vmem:[%s2670 + $0x130] sm:$0xff]
        %v2710 = vld [vmem:[%s2670 + $0x138] sm:$0xff]
        %v2711 = vld [vmem:[%s2670 + $0x140] sm:$0xff]
        %v2712 = vld [vmem:[%s2670 + $0x148] sm:$0xff]
        %v2713 = vld [vmem:[%s2670 + $0x150] sm:$0xff]
        %v2714 = vld [vmem:[%s2670 + $0x158] sm:$0xff]
        %v2715 = vld [vmem:[%s2670 + $0x160] sm:$0xff]
        %v2716 = vld [vmem:[%s2670 + $0x168] sm:$0xff]
        %v2717 = vld [vmem:[%s2670 + $0x170] sm:$0xff]
        %v2718 = vld [vmem:[%s2670 + $0x178] sm:$0xff]
        %v2719 = vld [vmem:[%s2670 + $0x180] sm:$0xff]
        %v2720 = vld [vmem:[%s2670 + $0x188] sm:$0xff]
        %v2721 = vld [vmem:[%s2670 + $0x190] sm:$0xff]
        %v2722 = vld [vmem:[%s2670 + $0x198] sm:$0xff]
        %v2723 = vld [vmem:[%s2670 + $0x1a0] sm:$0xff]
        %v2724 = vld [vmem:[%s2670 + $0x1a8] sm:$0xff]
        %v2725 = vld [vmem:[%s2670 + $0x1b0] sm:$0xff]
        %v2726 = vld [vmem:[%s2670 + $0x1b8] sm:$0xff]
        %v2727 = vld [vmem:[%s2670 + $0x1c0] sm:$0xff]
        %v2728 = vld [vmem:[%s2670 + $0x1c8] sm:$0xff]
        %v2729 = vld [vmem:[%s2670 + $0x1d0] sm:$0xff]
        %v2730 = vld [vmem:[%s2670 + $0x1d8] sm:$0xff]
        %v2731 = vld [vmem:[%s2670 + $0x1e0] sm:$0xff]
        %v2732 = vld [vmem:[%s2670 + $0x1e8] sm:$0xff]
        %v2733 = vld [vmem:[%s2670 + $0x1f0] sm:$0xff]
        %v2734 = vld [vmem:[%s2670 + $0x1f8] sm:$0xff]
        %v2735 = vld [vmem:[%s2670 + $0x200] sm:$0xff]
        %v2736 = vld [vmem:[%s2670 + $0x208] sm:$0xff]
        %v2737 = vld [vmem:[%s2670 + $0x210] sm:$0xff]
        %v2738 = vld [vmem:[%s2670 + $0x218] sm:$0xff]
        %v2739 = vld [vmem:[%s2670 + $0x220] sm:$0xff]
        %v2740 = vld [vmem:[%s2670 + $0x228] sm:$0xff]
        %v2741 = vld [vmem:[%s2670 + $0x230] sm:$0xff]
        %v2742 = vld [vmem:[%s2670 + $0x238] sm:$0xff]
        %v2743 = vld [vmem:[%s2670 + $0x240] sm:$0xff]
        %v2744 = vld [vmem:[%s2670 + $0x248] sm:$0xff]
        %v2745 = vld [vmem:[%s2670 + $0x250] sm:$0xff]
        %v2746 = vld [vmem:[%s2670 + $0x258] sm:$0xff]
        %v2747 = vld [vmem:[%s2670 + $0x260] sm:$0xff]
        %v2748 = vld [vmem:[%s2670 + $0x268] sm:$0xff]
        %v2749 = vld [vmem:[%s2670 + $0x270] sm:$0xff]
        %v2750 = vld [vmem:[%s2670 + $0x278] sm:$0xff]
        %v2751 = vld [vmem:[%s2670 + $0x280] sm:$0xff]
        %v2752 = vld [vmem:[%s2670 + $0x288] sm:$0xff]
        %v2753 = vld [vmem:[%s2670 + $0x290] sm:$0xff]
        %v2754 = vld [vmem:[%s2670 + $0x298] sm:$0xff]
        %v2755 = vld [vmem:[%s2670 + $0x2a0] sm:$0xff]
        %v2756 = vld [vmem:[%s2670 + $0x2a8] sm:$0xff]
        %v2757 = vld [vmem:[%s2670 + $0x2b0] sm:$0xff]
        %v2758 = vld [vmem:[%s2670 + $0x2b8] sm:$0xff]
        %v2759 = vld [vmem:[%s2670 + $0x2c0] sm:$0xff]
        %v2760 = vld [vmem:[%s2670 + $0x2c8] sm:$0xff]
        %v2761 = vld [vmem:[%s2670 + $0x2d0] sm:$0xff]
        %v2762 = vld [vmem:[%s2670 + $0x2d8] sm:$0xff]
        %v2763 = vld [vmem:[%s2670 + $0x2e0] sm:$0xff]
        %v2764 = vld [vmem:[%s2670 + $0x2e8] sm:$0xff]
        %v2765 = vld [vmem:[%s2670 + $0x2f0] sm:$0xff]
        %v2766 = vld [vmem:[%s2670 + $0x2f8] sm:$0xff]
        %v2767 = vld [vmem:[%s2670 + $0x300] sm:$0xff]
        %v2768 = vld [vmem:[%s2670 + $0x308] sm:$0xff]
        %v2769 = vld [vmem:[%s2670 + $0x310] sm:$0xff]
        %v2770 = vld [vmem:[%s2670 + $0x318] sm:$0xff]
        %v2771 = vld [vmem:[%s2670 + $0x320] sm:$0xff]
        %v2772 = vld [vmem:[%s2670 + $0x328] sm:$0xff]
        %v2773 = vld [vmem:[%s2670 + $0x330] sm:$0xff]
        %v2774 = vld [vmem:[%s2670 + $0x338] sm:$0xff]
        %v2775 = vld [vmem:[%s2670 + $0x340] sm:$0xff]
        %v2776 = vld [vmem:[%s2670 + $0x348] sm:$0xff]
        %v2777 = vld [vmem:[%s2670 + $0x350] sm:$0xff]
        %v2778 = vld [vmem:[%s2670 + $0x358] sm:$0xff]
        %v2779 = vld [vmem:[%s2670 + $0x360] sm:$0xff]
        %v2780 = vld [vmem:[%s2670 + $0x368] sm:$0xff]
        %v2781 = vld [vmem:[%s2670 + $0x370] sm:$0xff]
        %v2782 = vld [vmem:[%s2670 + $0x378] sm:$0xff]
        %v2783 = vld [vmem:[%s2670 + $0x380] sm:$0xff]
        %v2784 = vld [vmem:[%s2670 + $0x388] sm:$0xff]
        %v2785 = vld [vmem:[%s2670 + $0x390] sm:$0xff]
        %v2786 = vld [vmem:[%s2670 + $0x398] sm:$0xff]
        %v2787 = vld [vmem:[%s2670 + $0x3a0] sm:$0xff]
        %v2788 = vld [vmem:[%s2670 + $0x3a8] sm:$0xff]
        %v2789 = vld [vmem:[%s2670 + $0x3b0] sm:$0xff]
        %v2790 = vld [vmem:[%s2670 + $0x3b8] sm:$0xff]
        %v2791 = vld [vmem:[%s2670 + $0x3c0] sm:$0xff]
        %v2792 = vld [vmem:[%s2670 + $0x3c8] sm:$0xff]
        %v2793 = vld [vmem:[%s2670 + $0x3d0] sm:$0xff]
        %v2794 = vld [vmem:[%s2670 + $0x3d8] sm:$0xff]
        %v2795 = vld [vmem:[%s2670 + $0x3e0] sm:$0xff]
        %v2796 = vld [vmem:[%s2670 + $0x3e8] sm:$0xff]
        %v2797 = vld [vmem:[%s2670 + $0x3f0] sm:$0xff]
        %v2798 = vld [vmem:[%s2670 + $0x3f8] sm:$0xff]
        %v2799 = vld [vmem:[%s2670 + $0x400] sm:$0xff]
        %v2800 = vld [vmem:[%s2670 + $0x408] sm:$0xff]
        %v2801 = vld [vmem:[%s2670 + $0x410] sm:$0xff]
        %v2802 = vld [vmem:[%s2670 + $0x418] sm:$0xff]
        %v2803 = vld [vmem:[%s2670 + $0x420] sm:$0xff]
        %v2804 = vld [vmem:[%s2670 + $0x428] sm:$0xff]
        %v2805 = vld [vmem:[%s2670 + $0x430] sm:$0xff]
        %v2806 = vld [vmem:[%s2670 + $0x438] sm:$0xff]
        %v2807 = vld [vmem:[%s2670 + $0x440] sm:$0xff]
        %v2808 = vld [vmem:[%s2670 + $0x448] sm:$0xff]
        %v2809 = vld [vmem:[%s2670 + $0x450] sm:$0xff]
        %v2810 = vld [vmem:[%s2670 + $0x458] sm:$0xff]
        %v2811 = vld [vmem:[%s2670 + $0x460] sm:$0xff]
        %v2812 = vld [vmem:[%s2670 + $0x468] sm:$0xff]
        %v2813 = vld [vmem:[%s2670 + $0x470] sm:$0xff]
        %v2814 = vld [vmem:[%s2670 + $0x478] sm:$0xff]
        %v2815 = vld [vmem:[%s2670 + $0x480] sm:$0xff]
        %v2816 = vld [vmem:[%s2670 + $0x488] sm:$0xff]
        %v2817 = vld [vmem:[%s2670 + $0x490] sm:$0xff]
        %v2818 = vld [vmem:[%s2670 + $0x498] sm:$0xff]
        %v2819 = vld [vmem:[%s2670 + $0x4a0] sm:$0xff]
        %v2820 = vld [vmem:[%s2670 + $0x4a8] sm:$0xff]
        %v2821 = vld [vmem:[%s2670 + $0x4b0] sm:$0xff]
        %v2822 = vld [vmem:[%s2670 + $0x4b8] sm:$0xff]
        %v2823 = vld [vmem:[%s2670 + $0x4c0] sm:$0xff]
        %v2824 = vld [vmem:[%s2670 + $0x4c8] sm:$0xff]
        %v2825 = vld [vmem:[%s2670 + $0x4d0] sm:$0xff]
        %v2826 = vld [vmem:[%s2670 + $0x4d8] sm:$0xff]
        %v2827 = vld [vmem:[%s2670 + $0x4e0] sm:$0xff]
        %v2828 = vld [vmem:[%s2670 + $0x4e8] sm:$0xff]
        %v2829 = vld [vmem:[%s2670 + $0x4f0] sm:$0xff]
        %v2830 = vld [vmem:[%s2670 + $0x4f8] sm:$0xff]
        %v2831 = vld [vmem:[%s2670 + $0x500] sm:$0xff]
        %v2832 = vld [vmem:[%s2670 + $0x508] sm:$0xff]
        %v2833 = vld [vmem:[%s2670 + $0x510] sm:$0xff]
        %v2834 = vld [vmem:[%s2670 + $0x518] sm:$0xff]
        %v2835 = vld [vmem:[%s2670 + $0x520] sm:$0xff]
        %v2836 = vld [vmem:[%s2670 + $0x528] sm:$0xff]
        %v2837 = vld [vmem:[%s2670 + $0x530] sm:$0xff]
        %v2838 = vld [vmem:[%s2670 + $0x538] sm:$0xff]
        %v2839 = vld [vmem:[%s2670 + $0x540] sm:$0xff]
        %v2840 = vld [vmem:[%s2670 + $0x548] sm:$0xff]
        %v2841 = vld [vmem:[%s2670 + $0x550] sm:$0xff]
        %v2842 = vld [vmem:[%s2670 + $0x558] sm:$0xff]
        %v2843 = vld [vmem:[%s2670 + $0x560] sm:$0xff]
        %v2844 = vld [vmem:[%s2670 + $0x568] sm:$0xff]
        %v2845 = vld [vmem:[%s2670 + $0x570] sm:$0xff]
        %v2846 = vld [vmem:[%s2670 + $0x578] sm:$0xff]
        %v2847 = vld [vmem:[%s2670 + $0x580] sm:$0xff]
        %v2848 = vld [vmem:[%s2670 + $0x588] sm:$0xff]
        %v2849 = vld [vmem:[%s2670 + $0x590] sm:$0xff]
        %v2850 = vld [vmem:[%s2670 + $0x598] sm:$0xff]
        %v2851 = vld [vmem:[%s2670 + $0x5a0] sm:$0xff]
        %v2852 = vld [vmem:[%s2670 + $0x5a8] sm:$0xff]
        %v2853 = vld [vmem:[%s2670 + $0x5b0] sm:$0xff]
        %v2854 = vld [vmem:[%s2670 + $0x5b8] sm:$0xff]
        %v2855 = vld [vmem:[%s2670 + $0x5c0] sm:$0xff]
        %v2856 = vld [vmem:[%s2670 + $0x5c8] sm:$0xff]
        %v2857 = vld [vmem:[%s2670 + $0x5d0] sm:$0xff]
        %v2858 = vld [vmem:[%s2670 + $0x5d8] sm:$0xff]
        %v2859 = vld [vmem:[%s2670 + $0x5e0] sm:$0xff]
        %v2860 = vld [vmem:[%s2670 + $0x5e8] sm:$0xff]
        %v2861 = vld [vmem:[%s2670 + $0x5f0] sm:$0xff]
        %v2862 = vld [vmem:[%s2670 + $0x5f8] sm:$0xff]
        %v2863 = vunpack.c.l.s8.bf16 %v2671
        %v2864 = vunpack.c.l.s8.bf16 %v2672
        %v2865 = vunpack.c.l.s8.bf16 %v2673
        %v2866 = vunpack.c.l.s8.bf16 %v2674
        %v2867 = vunpack.c.l.s8.bf16 %v2675
        %v2868 = vunpack.c.l.s8.bf16 %v2676
        %v2869 = vunpack.c.l.s8.bf16 %v2677
        %v2870 = vunpack.c.l.s8.bf16 %v2678
        %v2871 = vunpack.c.l.s8.bf16 %v2679
        %v2872 = vunpack.c.l.s8.bf16 %v2680
        %v2873 = vunpack.c.l.s8.bf16 %v2681
        %v2874 = vunpack.c.l.s8.bf16 %v2682
        %v2875 = vunpack.c.h.s8.bf16 %v2671
        %v2876 = vunpack.c.h.s8.bf16 %v2672
        %v2877 = vunpack.c.h.s8.bf16 %v2673
        %v2878 = vunpack.c.h.s8.bf16 %v2674
        %v2879 = vunpack.c.h.s8.bf16 %v2675
        %v2880 = vunpack.c.h.s8.bf16 %v2676
        %v2881 = vunpack.c.h.s8.bf16 %v2677
        %v2882 = vunpack.c.h.s8.bf16 %v2678
        %v2883 = vunpack.c.h.s8.bf16 %v2679
        %v2884 = vunpack.c.h.s8.bf16 %v2680
        %v2885 = vunpack.c.h.s8.bf16 %v2681
        %v2886 = vunpack.c.h.s8.bf16 %v2682
        %v2887 = vunpack.c.l.s8.bf16 %v2683
        %v2888 = vunpack.c.l.s8.bf16 %v2684
        %v2889 = vunpack.c.l.s8.bf16 %v2685
        %v2890 = vunpack.c.l.s8.bf16 %v2686
        %v2891 = vunpack.c.l.s8.bf16 %v2687
        %v2892 = vunpack.c.l.s8.bf16 %v2688
        %v2893 = vunpack.c.l.s8.bf16 %v2689
        %v2894 = vunpack.c.l.s8.bf16 %v2690
        %v2895 = vunpack.c.l.s8.bf16 %v2691
        %v2896 = vunpack.c.l.s8.bf16 %v2692
        %v2897 = vunpack.c.l.s8.bf16 %v2693
        %v2898 = vunpack.c.l.s8.bf16 %v2694
        %v2899 = vunpack.c.h.s8.bf16 %v2683
        %v2900 = vunpack.c.h.s8.bf16 %v2684
        %v2901 = vunpack.c.h.s8.bf16 %v2685
        %v2902 = vunpack.c.h.s8.bf16 %v2686
        %v2903 = vunpack.c.h.s8.bf16 %v2687
        %v2904 = vunpack.c.h.s8.bf16 %v2688
        %v2905 = vunpack.c.h.s8.bf16 %v2689
        %v2906 = vunpack.c.h.s8.bf16 %v2690
        %v2907 = vunpack.c.h.s8.bf16 %v2691
        %v2908 = vunpack.c.h.s8.bf16 %v2692
        %v2909 = vunpack.c.h.s8.bf16 %v2693
        %v2910 = vunpack.c.h.s8.bf16 %v2694
        %v2911 = vunpack.c.l.s8.bf16 %v2695
        %v2912 = vunpack.c.l.s8.bf16 %v2696
        %v2913 = vunpack.c.l.s8.bf16 %v2697
        %v2914 = vunpack.c.l.s8.bf16 %v2698
        %v2915 = vunpack.c.l.s8.bf16 %v2699
        %v2916 = vunpack.c.l.s8.bf16 %v2700
        %v2917 = vunpack.c.l.s8.bf16 %v2701
        %v2918 = vunpack.c.l.s8.bf16 %v2702
        %v2919 = vunpack.c.l.s8.bf16 %v2703
        %v2920 = vunpack.c.l.s8.bf16 %v2704
        %v2921 = vunpack.c.l.s8.bf16 %v2705
        %v2922 = vunpack.c.l.s8.bf16 %v2706
        %v2923 = vunpack.c.h.s8.bf16 %v2695
        %v2924 = vunpack.c.h.s8.bf16 %v2696
        %v2925 = vunpack.c.h.s8.bf16 %v2697
        %v2926 = vunpack.c.h.s8.bf16 %v2698
        %v2927 = vunpack.c.h.s8.bf16 %v2699
        %v2928 = vunpack.c.h.s8.bf16 %v2700
        %v2929 = vunpack.c.h.s8.bf16 %v2701
        %v2930 = vunpack.c.h.s8.bf16 %v2702
        %v2931 = vunpack.c.h.s8.bf16 %v2703
        %v2932 = vunpack.c.h.s8.bf16 %v2704
        %v2933 = vunpack.c.h.s8.bf16 %v2705
        %v2934 = vunpack.c.h.s8.bf16 %v2706
        %v2935 = vunpack.c.l.s8.bf16 %v2707
        %v2936 = vunpack.c.l.s8.bf16 %v2708
        %v2937 = vunpack.c.l.s8.bf16 %v2709
        %v2938 = vunpack.c.l.s8.bf16 %v2710
        %v2939 = vunpack.c.l.s8.bf16 %v2711
        %v2940 = vunpack.c.l.s8.bf16 %v2712
        %v2941 = vunpack.c.l.s8.bf16 %v2713
        %v2942 = vunpack.c.l.s8.bf16 %v2714
        %v2943 = vunpack.c.l.s8.bf16 %v2715
        %v2944 = vunpack.c.l.s8.bf16 %v2716
        %v2945 = vunpack.c.l.s8.bf16 %v2717
        %v2946 = vunpack.c.l.s8.bf16 %v2718
        %v2947 = vunpack.c.h.s8.bf16 %v2707
        %v2948 = vunpack.c.h.s8.bf16 %v2708
        %v2949 = vunpack.c.h.s8.bf16 %v2709
        %v2950 = vunpack.c.h.s8.bf16 %v2710
        %v2951 = vunpack.c.h.s8.bf16 %v2711
        %v2952 = vunpack.c.h.s8.bf16 %v2712
        %v2953 = vunpack.c.h.s8.bf16 %v2713
        %v2954 = vunpack.c.h.s8.bf16 %v2714
        %v2955 = vunpack.c.h.s8.bf16 %v2715
        %v2956 = vunpack.c.h.s8.bf16 %v2716
        %v2957 = vunpack.c.h.s8.bf16 %v2717
        %v2958 = vunpack.c.h.s8.bf16 %v2718
        %v2959 = vunpack.c.l.s8.bf16 %v2719
        %v2960 = vunpack.c.l.s8.bf16 %v2720
        %v2961 = vunpack.c.l.s8.bf16 %v2721
        %v2962 = vunpack.c.l.s8.bf16 %v2722
        %v2963 = vunpack.c.l.s8.bf16 %v2723
        %v2964 = vunpack.c.l.s8.bf16 %v2724
        %v2965 = vunpack.c.l.s8.bf16 %v2725
        %v2966 = vunpack.c.l.s8.bf16 %v2726
        %v2967 = vunpack.c.l.s8.bf16 %v2727
        %v2968 = vunpack.c.l.s8.bf16 %v2728
        %v2969 = vunpack.c.l.s8.bf16 %v2729
        %v2970 = vunpack.c.l.s8.bf16 %v2730
        %v2971 = vunpack.c.h.s8.bf16 %v2719
        %v2972 = vunpack.c.h.s8.bf16 %v2720
        %v2973 = vunpack.c.h.s8.bf16 %v2721
        %v2974 = vunpack.c.h.s8.bf16 %v2722
        %v2975 = vunpack.c.h.s8.bf16 %v2723
        %v2976 = vunpack.c.h.s8.bf16 %v2724
        %v2977 = vunpack.c.h.s8.bf16 %v2725
        %v2978 = vunpack.c.h.s8.bf16 %v2726
        %v2979 = vunpack.c.h.s8.bf16 %v2727
        %v2980 = vunpack.c.h.s8.bf16 %v2728
        %v2981 = vunpack.c.h.s8.bf16 %v2729
        %v2982 = vunpack.c.h.s8.bf16 %v2730
        %v2983 = vunpack.c.l.s8.bf16 %v2731
        %v2984 = vunpack.c.l.s8.bf16 %v2732
        %v2985 = vunpack.c.l.s8.bf16 %v2733
        %v2986 = vunpack.c.l.s8.bf16 %v2734
        %v2987 = vunpack.c.l.s8.bf16 %v2735
        %v2988 = vunpack.c.l.s8.bf16 %v2736
        %v2989 = vunpack.c.l.s8.bf16 %v2737
        %v2990 = vunpack.c.l.s8.bf16 %v2738
        %v2991 = vunpack.c.l.s8.bf16 %v2739
        %v2992 = vunpack.c.l.s8.bf16 %v2740
        %v2993 = vunpack.c.l.s8.bf16 %v2741
        %v2994 = vunpack.c.l.s8.bf16 %v2742
        %v2995 = vunpack.c.h.s8.bf16 %v2731
        %v2996 = vunpack.c.h.s8.bf16 %v2732
        %v2997 = vunpack.c.h.s8.bf16 %v2733
        %v2998 = vunpack.c.h.s8.bf16 %v2734
        %v2999 = vunpack.c.h.s8.bf16 %v2735
        %v3000 = vunpack.c.h.s8.bf16 %v2736
        %v3001 = vunpack.c.h.s8.bf16 %v2737
        %v3002 = vunpack.c.h.s8.bf16 %v2738
        %v3003 = vunpack.c.h.s8.bf16 %v2739
        %v3004 = vunpack.c.h.s8.bf16 %v2740
        %v3005 = vunpack.c.h.s8.bf16 %v2741
        %v3006 = vunpack.c.h.s8.bf16 %v2742
        %v3007 = vunpack.c.l.s8.bf16 %v2743
        %v3008 = vunpack.c.l.s8.bf16 %v2744
        %v3009 = vunpack.c.l.s8.bf16 %v2745
        %v3010 = vunpack.c.l.s8.bf16 %v2746
        %v3011 = vunpack.c.l.s8.bf16 %v2747
        %v3012 = vunpack.c.l.s8.bf16 %v2748
        %v3013 = vunpack.c.l.s8.bf16 %v2749
        %v3014 = vunpack.c.l.s8.bf16 %v2750
        %v3015 = vunpack.c.l.s8.bf16 %v2751
        %v3016 = vunpack.c.l.s8.bf16 %v2752
        %v3017 = vunpack.c.l.s8.bf16 %v2753
        %v3018 = vunpack.c.l.s8.bf16 %v2754
        %v3019 = vunpack.c.h.s8.bf16 %v2743
        %v3020 = vunpack.c.h.s8.bf16 %v2744
        %v3021 = vunpack.c.h.s8.bf16 %v2745
        %v3022 = vunpack.c.h.s8.bf16 %v2746
        %v3023 = vunpack.c.h.s8.bf16 %v2747
        %v3024 = vunpack.c.h.s8.bf16 %v2748
        %v3025 = vunpack.c.h.s8.bf16 %v2749
        %v3026 = vunpack.c.h.s8.bf16 %v2750
        %v3027 = vunpack.c.h.s8.bf16 %v2751
        %v3028 = vunpack.c.h.s8.bf16 %v2752
        %v3029 = vunpack.c.h.s8.bf16 %v2753
        %v3030 = vunpack.c.h.s8.bf16 %v2754
        %v3031 = vunpack.c.l.s8.bf16 %v2755
        %v3032 = vunpack.c.l.s8.bf16 %v2756
        %v3033 = vunpack.c.l.s8.bf16 %v2757
        %v3034 = vunpack.c.l.s8.bf16 %v2758
        %v3035 = vunpack.c.l.s8.bf16 %v2759
        %v3036 = vunpack.c.l.s8.bf16 %v2760
        %v3037 = vunpack.c.l.s8.bf16 %v2761
        %v3038 = vunpack.c.l.s8.bf16 %v2762
        %v3039 = vunpack.c.l.s8.bf16 %v2763
        %v3040 = vunpack.c.l.s8.bf16 %v2764
        %v3041 = vunpack.c.l.s8.bf16 %v2765
        %v3042 = vunpack.c.l.s8.bf16 %v2766
        %v3043 = vunpack.c.h.s8.bf16 %v2755
        %v3044 = vunpack.c.h.s8.bf16 %v2756
        %v3045 = vunpack.c.h.s8.bf16 %v2757
        %v3046 = vunpack.c.h.s8.bf16 %v2758
        %v3047 = vunpack.c.h.s8.bf16 %v2759
        %v3048 = vunpack.c.h.s8.bf16 %v2760
        %v3049 = vunpack.c.h.s8.bf16 %v2761
        %v3050 = vunpack.c.h.s8.bf16 %v2762
        %v3051 = vunpack.c.h.s8.bf16 %v2763
        %v3052 = vunpack.c.h.s8.bf16 %v2764
        %v3053 = vunpack.c.h.s8.bf16 %v2765
        %v3054 = vunpack.c.h.s8.bf16 %v2766
        %v3055 = vunpack.c.l.s8.bf16 %v2767
        %v3056 = vunpack.c.l.s8.bf16 %v2768
        %v3057 = vunpack.c.l.s8.bf16 %v2769
        %v3058 = vunpack.c.l.s8.bf16 %v2770
        %v3059 = vunpack.c.l.s8.bf16 %v2771
        %v3060 = vunpack.c.l.s8.bf16 %v2772
        %v3061 = vunpack.c.l.s8.bf16 %v2773
        %v3062 = vunpack.c.l.s8.bf16 %v2774
        %v3063 = vunpack.c.l.s8.bf16 %v2775
        %v3064 = vunpack.c.l.s8.bf16 %v2776
        %v3065 = vunpack.c.l.s8.bf16 %v2777
        %v3066 = vunpack.c.l.s8.bf16 %v2778
        %v3067 = vunpack.c.h.s8.bf16 %v2767
        %v3068 = vunpack.c.h.s8.bf16 %v2768
        %v3069 = vunpack.c.h.s8.bf16 %v2769
        %v3070 = vunpack.c.h.s8.bf16 %v2770
        %v3071 = vunpack.c.h.s8.bf16 %v2771
        %v3072 = vunpack.c.h.s8.bf16 %v2772
        %v3073 = vunpack.c.h.s8.bf16 %v2773
        %v3074 = vunpack.c.h.s8.bf16 %v2774
        %v3075 = vunpack.c.h.s8.bf16 %v2775
        %v3076 = vunpack.c.h.s8.bf16 %v2776
        %v3077 = vunpack.c.h.s8.bf16 %v2777
        %v3078 = vunpack.c.h.s8.bf16 %v2778
        %v3079 = vunpack.c.l.s8.bf16 %v2779
        %v3080 = vunpack.c.l.s8.bf16 %v2780
        %v3081 = vunpack.c.l.s8.bf16 %v2781
        %v3082 = vunpack.c.l.s8.bf16 %v2782
        %v3083 = vunpack.c.l.s8.bf16 %v2783
        %v3084 = vunpack.c.l.s8.bf16 %v2784
        %v3085 = vunpack.c.l.s8.bf16 %v2785
        %v3086 = vunpack.c.l.s8.bf16 %v2786
        %v3087 = vunpack.c.l.s8.bf16 %v2787
        %v3088 = vunpack.c.l.s8.bf16 %v2788
        %v3089 = vunpack.c.l.s8.bf16 %v2789
        %v3090 = vunpack.c.l.s8.bf16 %v2790
        %v3091 = vunpack.c.h.s8.bf16 %v2779
        %v3092 = vunpack.c.h.s8.bf16 %v2780
        %v3093 = vunpack.c.h.s8.bf16 %v2781
        %v3094 = vunpack.c.h.s8.bf16 %v2782
        %v3095 = vunpack.c.h.s8.bf16 %v2783
        %v3096 = vunpack.c.h.s8.bf16 %v2784
        %v3097 = vunpack.c.h.s8.bf16 %v2785
        %v3098 = vunpack.c.h.s8.bf16 %v2786
        %v3099 = vunpack.c.h.s8.bf16 %v2787
        %v3100 = vunpack.c.h.s8.bf16 %v2788
        %v3101 = vunpack.c.h.s8.bf16 %v2789
        %v3102 = vunpack.c.h.s8.bf16 %v2790
        %v3103 = vunpack.c.l.s8.bf16 %v2791
        %v3104 = vunpack.c.l.s8.bf16 %v2792
        %v3105 = vunpack.c.l.s8.bf16 %v2793
        %v3106 = vunpack.c.l.s8.bf16 %v2794
        %v3107 = vunpack.c.l.s8.bf16 %v2795
        %v3108 = vunpack.c.l.s8.bf16 %v2796
        %v3109 = vunpack.c.l.s8.bf16 %v2797
        %v3110 = vunpack.c.l.s8.bf16 %v2798
        %v3111 = vunpack.c.l.s8.bf16 %v2799
        %v3112 = vunpack.c.l.s8.bf16 %v2800
        %v3113 = vunpack.c.l.s8.bf16 %v2801
        %v3114 = vunpack.c.l.s8.bf16 %v2802
        %v3115 = vunpack.c.h.s8.bf16 %v2791
        %v3116 = vunpack.c.h.s8.bf16 %v2792
        %v3117 = vunpack.c.h.s8.bf16 %v2793
        %v3118 = vunpack.c.h.s8.bf16 %v2794
        %v3119 = vunpack.c.h.s8.bf16 %v2795
        %v3120 = vunpack.c.h.s8.bf16 %v2796
        %v3121 = vunpack.c.h.s8.bf16 %v2797
        %v3122 = vunpack.c.h.s8.bf16 %v2798
        %v3123 = vunpack.c.h.s8.bf16 %v2799
        %v3124 = vunpack.c.h.s8.bf16 %v2800
        %v3125 = vunpack.c.h.s8.bf16 %v2801
        %v3126 = vunpack.c.h.s8.bf16 %v2802
        %v3127 = vunpack.c.l.s8.bf16 %v2803
        %v3128 = vunpack.c.l.s8.bf16 %v2804
        %v3129 = vunpack.c.l.s8.bf16 %v2805
        %v3130 = vunpack.c.l.s8.bf16 %v2806
        %v3131 = vunpack.c.l.s8.bf16 %v2807
        %v3132 = vunpack.c.l.s8.bf16 %v2808
        %v3133 = vunpack.c.l.s8.bf16 %v2809
        %v3134 = vunpack.c.l.s8.bf16 %v2810
        %v3135 = vunpack.c.l.s8.bf16 %v2811
        %v3136 = vunpack.c.l.s8.bf16 %v2812
        %v3137 = vunpack.c.l.s8.bf16 %v2813
        %v3138 = vunpack.c.l.s8.bf16 %v2814
        %v3139 = vunpack.c.h.s8.bf16 %v2803
        %v3140 = vunpack.c.h.s8.bf16 %v2804
        %v3141 = vunpack.c.h.s8.bf16 %v2805
        %v3142 = vunpack.c.h.s8.bf16 %v2806
        %v3143 = vunpack.c.h.s8.bf16 %v2807
        %v3144 = vunpack.c.h.s8.bf16 %v2808
        %v3145 = vunpack.c.h.s8.bf16 %v2809
        %v3146 = vunpack.c.h.s8.bf16 %v2810
        %v3147 = vunpack.c.h.s8.bf16 %v2811
        %v3148 = vunpack.c.h.s8.bf16 %v2812
        %v3149 = vunpack.c.h.s8.bf16 %v2813
        %v3150 = vunpack.c.h.s8.bf16 %v2814
        %v3151 = vunpack.c.l.s8.bf16 %v2815
        %v3152 = vunpack.c.l.s8.bf16 %v2816
        %v3153 = vunpack.c.l.s8.bf16 %v2817
        %v3154 = vunpack.c.l.s8.bf16 %v2818
        %v3155 = vunpack.c.l.s8.bf16 %v2819
        %v3156 = vunpack.c.l.s8.bf16 %v2820
        %v3157 = vunpack.c.l.s8.bf16 %v2821
        %v3158 = vunpack.c.l.s8.bf16 %v2822
        %v3159 = vunpack.c.l.s8.bf16 %v2823
        %v3160 = vunpack.c.l.s8.bf16 %v2824
        %v3161 = vunpack.c.l.s8.bf16 %v2825
        %v3162 = vunpack.c.l.s8.bf16 %v2826
        %v3163 = vunpack.c.h.s8.bf16 %v2815
        %v3164 = vunpack.c.h.s8.bf16 %v2816
        %v3165 = vunpack.c.h.s8.bf16 %v2817
        %v3166 = vunpack.c.h.s8.bf16 %v2818
        %v3167 = vunpack.c.h.s8.bf16 %v2819
        %v3168 = vunpack.c.h.s8.bf16 %v2820
        %v3169 = vunpack.c.h.s8.bf16 %v2821
        %v3170 = vunpack.c.h.s8.bf16 %v2822
        %v3171 = vunpack.c.h.s8.bf16 %v2823
        %v3172 = vunpack.c.h.s8.bf16 %v2824
        %v3173 = vunpack.c.h.s8.bf16 %v2825
        %v3174 = vunpack.c.h.s8.bf16 %v2826
        %v3175 = vunpack.c.l.s8.bf16 %v2827
        %v3176 = vunpack.c.l.s8.bf16 %v2828
        %v3177 = vunpack.c.l.s8.bf16 %v2829
        %v3178 = vunpack.c.l.s8.bf16 %v2830
        %v3179 = vunpack.c.l.s8.bf16 %v2831
        %v3180 = vunpack.c.l.s8.bf16 %v2832
        %v3181 = vunpack.c.l.s8.bf16 %v2833
        %v3182 = vunpack.c.l.s8.bf16 %v2834
        %v3183 = vunpack.c.l.s8.bf16 %v2835
        %v3184 = vunpack.c.l.s8.bf16 %v2836
        %v3185 = vunpack.c.l.s8.bf16 %v2837
        %v3186 = vunpack.c.l.s8.bf16 %v2838
        %v3187 = vunpack.c.h.s8.bf16 %v2827
        %v3188 = vunpack.c.h.s8.bf16 %v2828
        %v3189 = vunpack.c.h.s8.bf16 %v2829
        %v3190 = vunpack.c.h.s8.bf16 %v2830
        %v3191 = vunpack.c.h.s8.bf16 %v2831
        %v3192 = vunpack.c.h.s8.bf16 %v2832
        %v3193 = vunpack.c.h.s8.bf16 %v2833
        %v3194 = vunpack.c.h.s8.bf16 %v2834
        %v3195 = vunpack.c.h.s8.bf16 %v2835
        %v3196 = vunpack.c.h.s8.bf16 %v2836
        %v3197 = vunpack.c.h.s8.bf16 %v2837
        %v3198 = vunpack.c.h.s8.bf16 %v2838
        %v3199 = vunpack.c.l.s8.bf16 %v2839
        %v3200 = vunpack.c.l.s8.bf16 %v2840
        %v3201 = vunpack.c.l.s8.bf16 %v2841
        %v3202 = vunpack.c.l.s8.bf16 %v2842
        %v3203 = vunpack.c.l.s8.bf16 %v2843
        %v3204 = vunpack.c.l.s8.bf16 %v2844
        %v3205 = vunpack.c.l.s8.bf16 %v2845
        %v3206 = vunpack.c.l.s8.bf16 %v2846
        %v3207 = vunpack.c.l.s8.bf16 %v2847
        %v3208 = vunpack.c.l.s8.bf16 %v2848
        %v3209 = vunpack.c.l.s8.bf16 %v2849
        %v3210 = vunpack.c.l.s8.bf16 %v2850
        %v3211 = vunpack.c.h.s8.bf16 %v2839
        %v3212 = vunpack.c.h.s8.bf16 %v2840
        %v3213 = vunpack.c.h.s8.bf16 %v2841
        %v3214 = vunpack.c.h.s8.bf16 %v2842
        %v3215 = vunpack.c.h.s8.bf16 %v2843
        %v3216 = vunpack.c.h.s8.bf16 %v2844
        %v3217 = vunpack.c.h.s8.bf16 %v2845
        %v3218 = vunpack.c.h.s8.bf16 %v2846
        %v3219 = vunpack.c.h.s8.bf16 %v2847
        %v3220 = vunpack.c.h.s8.bf16 %v2848
        %v3221 = vunpack.c.h.s8.bf16 %v2849
        %v3222 = vunpack.c.h.s8.bf16 %v2850
        %v3223 = vunpack.c.l.s8.bf16 %v2851
        %v3224 = vunpack.c.l.s8.bf16 %v2852
        %v3225 = vunpack.c.l.s8.bf16 %v2853
        %v3226 = vunpack.c.l.s8.bf16 %v2854
        %v3227 = vunpack.c.l.s8.bf16 %v2855
        %v3228 = vunpack.c.l.s8.bf16 %v2856
        %v3229 = vunpack.c.l.s8.bf16 %v2857
        %v3230 = vunpack.c.l.s8.bf16 %v2858
        %v3231 = vunpack.c.l.s8.bf16 %v2859
        %v3232 = vunpack.c.l.s8.bf16 %v2860
        %v3233 = vunpack.c.l.s8.bf16 %v2861
        %v3234 = vunpack.c.l.s8.bf16 %v2862
        %v3235 = vunpack.c.h.s8.bf16 %v2851
        %v3236 = vunpack.c.h.s8.bf16 %v2852
        %v3237 = vunpack.c.h.s8.bf16 %v2853
        %v3238 = vunpack.c.h.s8.bf16 %v2854
        %v3239 = vunpack.c.h.s8.bf16 %v2855
        %v3240 = vunpack.c.h.s8.bf16 %v2856
        %v3241 = vunpack.c.h.s8.bf16 %v2857
        %v3242 = vunpack.c.h.s8.bf16 %v2858
        %v3243 = vunpack.c.h.s8.bf16 %v2859
        %v3244 = vunpack.c.h.s8.bf16 %v2860
        %v3245 = vunpack.c.h.s8.bf16 %v2861
        %v3246 = vunpack.c.h.s8.bf16 %v2862
        %s3247 = scalar_lea.vmem %s408, 12 [#allocation10]
        %v3248 = vld [vmem:[%s3247] sm:$0xff]
        %v3249 = vld [vmem:[%s3247 + $0x8] sm:$0xf]
        %3250 = vmatprep.subr.bf16.mxu0 %v2864
        %3251 = vmatpush1.bf16.msra.mxu0 %v2863
        %3252 = vmatprep.subr.bf16.mxu0 %v2876
        %3253 = vmatpush1.bf16.msra.mxu0 %v2875
        %3254 = vmatprep.subr.bf16.mxu0 %v2888
        %3255 = vmatpush1.bf16.msra.mxu0 %v2887
        %3256 = vmatprep.subr.bf16.mxu0 %v2900
        %3257 = vmatpush1.bf16.msra.mxu0 %v2899
        %3258 = vmatprep.subr.bf16.mxu0 %v2912
        %3259 = vmatpush1.bf16.msra.mxu0 %v2911
        %3260 = vmatprep.subr.bf16.mxu0 %v2924
        %3261 = vmatpush1.bf16.msra.mxu0 %v2923
        %3262 = vmatprep.subr.bf16.mxu0 %v2936
        %3263 = vmatpush1.bf16.msra.mxu0 %v2935
        %3264 = vmatprep.subr.bf16.mxu0 %v2948
        %3265 = vmatpush1.bf16.msra.mxu0 %v2947
        %3266 = vmatprep.subr.bf16.mxu0 %v2960
        %3267 = vmatpush1.bf16.msra.mxu0 %v2959
        %3268 = vmatprep.subr.bf16.mxu0 %v2972
        %3269 = vmatpush1.bf16.msra.mxu0 %v2971
        %3270 = vmatprep.subr.bf16.mxu0 %v2984
        %3271 = vmatpush1.bf16.msra.mxu0 %v2983
        %3272 = vmatprep.subr.bf16.mxu0 %v2996
        %3273 = vmatpush1.bf16.msra.mxu0 %v2995
        %3274 = vmatprep.subr.bf16.mxu0 %v3008
        %3275 = vmatpush1.bf16.msra.mxu0 %v3007
        %3276 = vmatprep.subr.bf16.mxu0 %v3020
        %3277 = vmatpush1.bf16.msra.mxu0 %v3019
        %3278 = vmatprep.subr.bf16.mxu0 %v3032
        %3279 = vmatpush1.bf16.msra.mxu0 %v3031
        %3280 = vmatprep.subr.bf16.mxu0 %v3044
        %3281 = vmatpush1.bf16.msra.mxu0 %v3043
        %3282 = vmatprep.mubr.bf16.mxu0 %v2663
        %3283 = vmatmul.mubr.bf16.gmra.mrb[0].mxu0 %v2662
        %v3284 = vpop.f32.mrb[0].mxu0
        %v3285 = vadd.f32 0.0, %v3284
        %v3286 = vpop.f32.mrb[0].mxu0
        %v3287 = vadd.f32 0.0, %v3286
        %v3288 = vpop.f32.mrb[0].mxu0
        %v3289 = vadd.f32 0.0, %v3288
        %v3290 = vpop.f32.mrb[0].mxu0
        %v3291 = vadd.f32 0.0, %v3290
        %3292 = vmatprep.mubr.bf16.mxu0 %v2667
        %3293 = vmatmul.mubr.bf16.gmra.mrb[0].mxu0 %v2666
        %v3294 = vpop.f32.mrb[0].mxu0
        %v3295 = vadd.f32 0.0, %v3294
        %v3296 = vpop.f32.mrb[0].mxu0
        %v3297 = vadd.f32 0.0, %v3296
        %v3298 = vpop.f32.mrb[0].mxu0
        %v3299 = vadd.f32 0.0, %v3298
        %v3300 = vpop.f32.mrb[0].mxu0
        %v3301 = vadd.f32 0.0, %v3300
        %3302 = vdwg.mxu0
        %3303 = vmatprep.subr.bf16.mxu0 %v3056
        %3304 = vmatpush1.bf16.msra.mxu0 %v3055
        %3305 = vmatprep.subr.bf16.mxu0 %v3068
        %3306 = vmatpush1.bf16.msra.mxu0 %v3067
        %3307 = vmatprep.subr.bf16.mxu0 %v3080
        %3308 = vmatpush1.bf16.msra.mxu0 %v3079
        %3309 = vmatprep.subr.bf16.mxu0 %v3092
        %3310 = vmatpush1.bf16.msra.mxu0 %v3091
        %3311 = vmatprep.subr.bf16.mxu0 %v3104
        %3312 = vmatpush1.bf16.msra.mxu0 %v3103
        %3313 = vmatprep.subr.bf16.mxu0 %v3116
        %3314 = vmatpush1.bf16.msra.mxu0 %v3115
        %3315 = vmatprep.subr.bf16.mxu0 %v3128
        %3316 = vmatpush1.bf16.msra.mxu0 %v3127
        %3317 = vmatprep.subr.bf16.mxu0 %v3140
        %3318 = vmatpush1.bf16.msra.mxu0 %v3139
        %3319 = vmatprep.subr.bf16.mxu0 %v3152
        %3320 = vmatpush1.bf16.msra.mxu0 %v3151
        %3321 = vmatprep.subr.bf16.mxu0 %v3164
        %3322 = vmatpush1.bf16.msra.mxu0 %v3163
        %3323 = vmatprep.subr.bf16.mxu0 %v3176
        %3324 = vmatpush1.bf16.msra.mxu0 %v3175
        %3325 = vmatprep.subr.bf16.mxu0 %v3188
        %3326 = vmatpush1.bf16.msra.mxu0 %v3187
        %3327 = vmatprep.subr.bf16.mxu0 %v3200
        %3328 = vmatpush1.bf16.msra.mxu0 %v3199
        %3329 = vmatprep.subr.bf16.mxu0 %v3212
        %3330 = vmatpush1.bf16.msra.mxu0 %v3211
        %3331 = vmatprep.subr.bf16.mxu0 %v3224
        %3332 = vmatpush1.bf16.msra.mxu0 %v3223
        %3333 = vmatprep.subr.bf16.mxu0 %v3236
        %3334 = vmatpush1.bf16.msra.mxu0 %v3235
        %3335 = vmatprep.mubr.bf16.mxu0 %v2665
        %3336 = vmatmul.mubr.bf16.gmra.mrb[0].mxu0 %v2664
        %v3337 = vpop.f32.mrb[0].mxu0
        %v3338 = vadd.f32 %v3285, %v3337
        %v3339 = vpop.f32.mrb[0].mxu0
        %v3340 = vadd.f32 %v3287, %v3339
        %v3341 = vpop.f32.mrb[0].mxu0
        %v3342 = vadd.f32 %v3289, %v3341
        %v3343 = vpop.f32.mrb[0].mxu0
        %v3344 = vadd.f32 %v3291, %v3343
        %3345 = vmatprep.mubr.bf16.mxu0 %v2669
        %3346 = vmatmul.mubr.bf16.gmra.mrb[0].mxu0 %v2668
        %v3347 = vpop.f32.mrb[0].mxu0
        %v3348 = vadd.f32 %v3295, %v3347
        %v3349 = vpop.f32.mrb[0].mxu0
        %v3350 = vadd.f32 %v3297, %v3349
        %v3351 = vpop.f32.mrb[0].mxu0
        %v3352 = vadd.f32 %v3299, %v3351
        %v3353 = vpop.f32.mrb[0].mxu0
        %v3354 = vadd.f32 %v3301, %v3353
        %3355 = vdwg.mxu0
        %3356 = vmatprep.subr.bf16.mxu0 %v2866
        %3357 = vmatpush1.bf16.msra.mxu0 %v2865
        %3358 = vmatprep.subr.bf16.mxu0 %v2878
        %3359 = vmatpush1.bf16.msra.mxu0 %v2877
        %3360 = vmatprep.subr.bf16.mxu0 %v2890
        %3361 = vmatpush1.bf16.msra.mxu0 %v2889
        %3362 = vmatprep.subr.bf16.mxu0 %v2902
        %3363 = vmatpush1.bf16.msra.mxu0 %v2901
        %3364 = vmatprep.subr.bf16.mxu0 %v2914
        %3365 = vmatpush1.bf16.msra.mxu0 %v2913
        %3366 = vmatprep.subr.bf16.mxu0 %v2926
        %3367 = vmatpush1.bf16.msra.mxu0 %v2925
        %3368 = vmatprep.subr.bf16.mxu0 %v2938
        %3369 = vmatpush1.bf16.msra.mxu0 %v2937
        %3370 = vmatprep.subr.bf16.mxu0 %v2950
        %3371 = vmatpush1.bf16.msra.mxu0 %v2949
        %3372 = vmatprep.subr.bf16.mxu0 %v2962
        %3373 = vmatpush1.bf16.msra.mxu0 %v2961
        %3374 = vmatprep.subr.bf16.mxu0 %v2974
        %3375 = vmatpush1.bf16.msra.mxu0 %v2973
        %3376 = vmatprep.subr.bf16.mxu0 %v2986
        %3377 = vmatpush1.bf16.msra.mxu0 %v2985
        %3378 = vmatprep.subr.bf16.mxu0 %v2998
        %3379 = vmatpush1.bf16.msra.mxu0 %v2997
        %3380 = vmatprep.subr.bf16.mxu0 %v3010
        %3381 = vmatpush1.bf16.msra.mxu0 %v3009
        %3382 = vmatprep.subr.bf16.mxu0 %v3022
        %3383 = vmatpush1.bf16.msra.mxu0 %v3021
        %3384 = vmatprep.subr.bf16.mxu0 %v3034
        %3385 = vmatpush1.bf16.msra.mxu0 %v3033
        %3386 = vmatprep.subr.bf16.mxu0 %v3046
        %3387 = vmatpush1.bf16.msra.mxu0 %v3045
        %3388 = vmatprep.mubr.bf16.mxu0 %v2663
        %3389 = vmatmul.mubr.bf16.gmra.mrb[0].mxu0 %v2662
        %v3390 = vpop.f32.mrb[0].mxu0
        %v3391 = vadd.f32 0.0, %v3390
        %v3392 = vpop.f32.mrb[0].mxu0
        %v3393 = vadd.f32 0.0, %v3392
        %v3394 = vpop.f32.mrb[0].mxu0
        %v3395 = vadd.f32 0.0, %v3394
        %v3396 = vpop.f32.mrb[0].mxu0
        %v3397 = vadd.f32 0.0, %v3396
        %3398 = vmatprep.mubr.bf16.mxu0 %v2667
        %3399 = vmatmul.mubr.bf16.gmra.mrb[0].mxu0 %v2666
        %v3400 = vpop.f32.mrb[0].mxu0
        %v3401 = vadd.f32 0.0, %v3400
        %v3402 = vpop.f32.mrb[0].mxu0
        %v3403 = vadd.f32 0.0, %v3402
        %v3404 = vpop.f32.mrb[0].mxu0
        %v3405 = vadd.f32 0.0, %v3404
        %v3406 = vpop.f32.mrb[0].mxu0
        %v3407 = vadd.f32 0.0, %v3406
        %3408 = vdwg.mxu0
        %3409 = vmatprep.subr.bf16.mxu0 %v3058
        %3410 = vmatpush1.bf16.msra.mxu0 %v3057
        %3411 = vmatprep.subr.bf16.mxu0 %v3070
        %3412 = vmatpush1.bf16.msra.mxu0 %v3069
        %3413 = vmatprep.subr.bf16.mxu0 %v3082
        %3414 = vmatpush1.bf16.msra.mxu0 %v3081
        %3415 = vmatprep.subr.bf16.mxu0 %v3094
        %3416 = vmatpush1.bf16.msra.mxu0 %v3093
        %3417 = vmatprep.subr.bf16.mxu0 %v3106
        %3418 = vmatpush1.bf16.msra.mxu0 %v3105
        %3419 = vmatprep.subr.bf16.mxu0 %v3118
        %3420 = vmatpush1.bf16.msra.mxu0 %v3117
        %3421 = vmatprep.subr.bf16.mxu0 %v3130
        %3422 = vmatpush1.bf16.msra.mxu0 %v3129
        %3423 = vmatprep.subr.bf16.mxu0 %v3142
        %3424 = vmatpush1.bf16.msra.mxu0 %v3141
        %3425 = vmatprep.subr.bf16.mxu0 %v3154
        %3426 = vmatpush1.bf16.msra.mxu0 %v3153
        %3427 = vmatprep.subr.bf16.mxu0 %v3166
        %3428 = vmatpush1.bf16.msra.mxu0 %v3165
        %3429 = vmatprep.subr.bf16.mxu0 %v3178
        %3430 = vmatpush1.bf16.msra.mxu0 %v3177
        %3431 = vmatprep.subr.bf16.mxu0 %v3190
        %3432 = vmatpush1.bf16.msra.mxu0 %v3189
        %3433 = vmatprep.subr.bf16.mxu0 %v3202
        %3434 = vmatpush1.bf16.msra.mxu0 %v3201
        %3435 = vmatprep.subr.bf16.mxu0 %v3214
        %3436 = vmatpush1.bf16.msra.mxu0 %v3213
        %3437 = vmatprep.subr.bf16.mxu0 %v3226
        %3438 = vmatpush1.bf16.msra.mxu0 %v3225
        %3439 = vmatprep.subr.bf16.mxu0 %v3238
        %3440 = vmatpush1.bf16.msra.mxu0 %v3237
        %3441 = vmatprep.mubr.bf16.mxu0 %v2665
        %3442 = vmatmul.mubr.bf16.gmra.mrb[0].mxu0 %v2664
        %v3443 = vpop.f32.mrb[0].mxu0
        %v3444 = vadd.f32 %v3391, %v3443
        %v3445 = vpop.f32.mrb[0].mxu0
        %v3446 = vadd.f32 %v3393, %v3445
        %v3447 = vpop.f32.mrb[0].mxu0
        %v3448 = vadd.f32 %v3395, %v3447
        %v3449 = vpop.f32.mrb[0].mxu0
        %v3450 = vadd.f32 %v3397, %v3449
        %3451 = vmatprep.mubr.bf16.mxu0 %v2669
        %3452 = vmatmul.mubr.bf16.gmra.mrb[0].mxu0 %v2668
        %v3453 = vpop.f32.mrb[0].mxu0
        %v3454 = vadd.f32 %v3401, %v3453
        %v3455 = vpop.f32.mrb[0].mxu0
        %v3456 = vadd.f32 %v3403, %v3455
        %v3457 = vpop.f32.mrb[0].mxu0
        %v3458 = vadd.f32 %v3405, %v3457
        %v3459 = vpop.f32.mrb[0].mxu0
        %v3460 = vadd.f32 %v3407, %v3459
        %3461 = vdwg.mxu0
        %3462 = vmatprep.subr.bf16.mxu0 %v2868
        %3463 = vmatpush1.bf16.msra.mxu0 %v2867
        %3464 = vmatprep.subr.bf16.mxu0 %v2880
        %3465 = vmatpush1.bf16.msra.mxu0 %v2879
        %3466 = vmatprep.subr.bf16.mxu0 %v2892
        %3467 = vmatpush1.bf16.msra.mxu0 %v2891
        %3468 = vmatprep.subr.bf16.mxu0 %v2904
        %3469 = vmatpush1.bf16.msra.mxu0 %v2903
        %3470 = vmatprep.subr.bf16.mxu0 %v2916
        %3471 = vmatpush1.bf16.msra.mxu0 %v2915
        %3472 = vmatprep.subr.bf16.mxu0 %v2928
        %3473 = vmatpush1.bf16.msra.mxu0 %v2927
        %3474 = vmatprep.subr.bf16.mxu0 %v2940
        %3475 = vmatpush1.bf16.msra.mxu0 %v2939
        %3476 = vmatprep.subr.bf16.mxu0 %v2952
        %3477 = vmatpush1.bf16.msra.mxu0 %v2951
        %3478 = vmatprep.subr.bf16.mxu0 %v2964
        %3479 = vmatpush1.bf16.msra.mxu0 %v2963
        %3480 = vmatprep.subr.bf16.mxu0 %v2976
        %3481 = vmatpush1.bf16.msra.mxu0 %v2975
        %3482 = vmatprep.subr.bf16.mxu0 %v2988
        %3483 = vmatpush1.bf16.msra.mxu0 %v2987
        %3484 = vmatprep.subr.bf16.mxu0 %v3000
        %3485 = vmatpush1.bf16.msra.mxu0 %v2999
        %3486 = vmatprep.subr.bf16.mxu0 %v3012
        %3487 = vmatpush1.bf16.msra.mxu0 %v3011
        %3488 = vmatprep.subr.bf16.mxu0 %v3024
        %3489 = vmatpush1.bf16.msra.mxu0 %v3023
        %3490 = vmatprep.subr.bf16.mxu0 %v3036
        %3491 = vmatpush1.bf16.msra.mxu0 %v3035
        %3492 = vmatprep.subr.bf16.mxu0 %v3048
        %3493 = vmatpush1.bf16.msra.mxu0 %v3047
        %3494 = vmatprep.mubr.bf16.mxu0 %v2663
        %3495 = vmatmul.mubr.bf16.gmra.mrb[0].mxu0 %v2662
        %v3496 = vpop.f32.mrb[0].mxu0
        %v3497 = vadd.f32 0.0, %v3496
        %v3498 = vpop.f32.mrb[0].mxu0
        %v3499 = vadd.f32 0.0, %v3498
        %v3500 = vpop.f32.mrb[0].mxu0
        %v3501 = vadd.f32 0.0, %v3500
        %v3502 = vpop.f32.mrb[0].mxu0
        %v3503 = vadd.f32 0.0, %v3502
        %3504 = vmatprep.mubr.bf16.mxu0 %v2667
        %3505 = vmatmul.mubr.bf16.gmra.mrb[0].mxu0 %v2666
        %v3506 = vpop.f32.mrb[0].mxu0
        %v3507 = vadd.f32 0.0, %v3506
        %v3508 = vpop.f32.mrb[0].mxu0
        %v3509 = vadd.f32 0.0, %v3508
        %v3510 = vpop.f32.mrb[0].mxu0
        %v3511 = vadd.f32 0.0, %v3510
        %v3512 = vpop.f32.mrb[0].mxu0
        %v3513 = vadd.f32 0.0, %v3512
        %3514 = vdwg.mxu0
        %3515 = vmatprep.subr.bf16.mxu0 %v3060
        %3516 = vmatpush1.bf16.msra.mxu0 %v3059
        %3517 = vmatprep.subr.bf16.mxu0 %v3072
        %3518 = vmatpush1.bf16.msra.mxu0 %v3071
        %3519 = vmatprep.subr.bf16.mxu0 %v3084
        %3520 = vmatpush1.bf16.msra.mxu0 %v3083
        %3521 = vmatprep.subr.bf16.mxu0 %v3096
        %3522 = vmatpush1.bf16.msra.mxu0 %v3095
        %3523 = vmatprep.subr.bf16.mxu0 %v3108
        %3524 = vmatpush1.bf16.msra.mxu0 %v3107
        %3525 = vmatprep.subr.bf16.mxu0 %v3120
        %3526 = vmatpush1.bf16.msra.mxu0 %v3119
        %3527 = vmatprep.subr.bf16.mxu0 %v3132
        %3528 = vmatpush1.bf16.msra.mxu0 %v3131
        %3529 = vmatprep.subr.bf16.mxu0 %v3144
        %3530 = vmatpush1.bf16.msra.mxu0 %v3143
        %3531 = vmatprep.subr.bf16.mxu0 %v3156
        %3532 = vmatpush1.bf16.msra.mxu0 %v3155
        %3533 = vmatprep.subr.bf16.mxu0 %v3168
        %3534 = vmatpush1.bf16.msra.mxu0 %v3167
        %3535 = vmatprep.subr.bf16.mxu0 %v3180
        %3536 = vmatpush1.bf16.msra.mxu0 %v3179
        %3537 = vmatprep.subr.bf16.mxu0 %v3192
        %3538 = vmatpush1.bf16.msra.mxu0 %v3191
        %3539 = vmatprep.subr.bf16.mxu0 %v3204
        %3540 = vmatpush1.bf16.msra.mxu0 %v3203
        %3541 = vmatprep.subr.bf16.mxu0 %v3216
        %3542 = vmatpush1.bf16.msra.mxu0 %v3215
        %3543 = vmatprep.subr.bf16.mxu0 %v3228
        %3544 = vmatpush1.bf16.msra.mxu0 %v3227
        %3545 = vmatprep.subr.bf16.mxu0 %v3240
        %3546 = vmatpush1.bf16.msra.mxu0 %v3239
        %3547 = vmatprep.mubr.bf16.mxu0 %v2665
        %3548 = vmatmul.mubr.bf16.gmra.mrb[0].mxu0 %v2664
        %v3549 = vpop.f32.mrb[0].mxu0
        %v3550 = vadd.f32 %v3497, %v3549
        %v3551 = vpop.f32.mrb[0].mxu0
        %v3552 = vadd.f32 %v3499, %v3551
        %v3553 = vpop.f32.mrb[0].mxu0
        %v3554 = vadd.f32 %v3501, %v3553
        %v3555 = vpop.f32.mrb[0].mxu0
        %v3556 = vadd.f32 %v3503, %v3555
        %3557 = vmatprep.mubr.bf16.mxu0 %v2669
        %3558 = vmatmul.mubr.bf16.gmra.mrb[0].mxu0 %v2668
        %v3559 = vpop.f32.mrb[0].mxu0
        %v3560 = vadd.f32 %v3507, %v3559
        %v3561 = vpop.f32.mrb[0].mxu0
        %v3562 = vadd.f32 %v3509, %v3561
        %v3563 = vpop.f32.mrb[0].mxu0
        %v3564 = vadd.f32 %v3511, %v3563
        %v3565 = vpop.f32.mrb[0].mxu0
        %v3566 = vadd.f32 %v3513, %v3565
        %3567 = vdwg.mxu0
        %3568 = vmatprep.subr.bf16.mxu0 %v2870
        %3569 = vmatpush1.bf16.msra.mxu0 %v2869
        %3570 = vmatprep.subr.bf16.mxu0 %v2882
        %3571 = vmatpush1.bf16.msra.mxu0 %v2881
        %3572 = vmatprep.subr.bf16.mxu0 %v2894
        %3573 = vmatpush1.bf16.msra.mxu0 %v2893
        %3574 = vmatprep.subr.bf16.mxu0 %v2906
        %3575 = vmatpush1.bf16.msra.mxu0 %v2905
        %3576 = vmatprep.subr.bf16.mxu0 %v2918
        %3577 = vmatpush1.bf16.msra.mxu0 %v2917
        %3578 = vmatprep.subr.bf16.mxu0 %v2930
        %3579 = vmatpush1.bf16.msra.mxu0 %v2929
        %3580 = vmatprep.subr.bf16.mxu0 %v2942
        %3581 = vmatpush1.bf16.msra.mxu0 %v2941
        %3582 = vmatprep.subr.bf16.mxu0 %v2954
        %3583 = vmatpush1.bf16.msra.mxu0 %v2953
        %3584 = vmatprep.subr.bf16.mxu0 %v2966
        %3585 = vmatpush1.bf16.msra.mxu0 %v2965
        %3586 = vmatprep.subr.bf16.mxu0 %v2978
        %3587 = vmatpush1.bf16.msra.mxu0 %v2977
        %3588 = vmatprep.subr.bf16.mxu0 %v2990
        %3589 = vmatpush1.bf16.msra.mxu0 %v2989
        %3590 = vmatprep.subr.bf16.mxu0 %v3002
        %3591 = vmatpush1.bf16.msra.mxu0 %v3001
        %3592 = vmatprep.subr.bf16.mxu0 %v3014
        %3593 = vmatpush1.bf16.msra.mxu0 %v3013
        %3594 = vmatprep.subr.bf16.mxu0 %v3026
        %3595 = vmatpush1.bf16.msra.mxu0 %v3025
        %3596 = vmatprep.subr.bf16.mxu0 %v3038
        %3597 = vmatpush1.bf16.msra.mxu0 %v3037
        %3598 = vmatprep.subr.bf16.mxu0 %v3050
        %3599 = vmatpush1.bf16.msra.mxu0 %v3049
        %3600 = vmatprep.mubr.bf16.mxu0 %v2663
        %3601 = vmatmul.mubr.bf16.gmra.mrb[0].mxu0 %v2662
        %v3602 = vpop.f32.mrb[0].mxu0
        %v3603 = vadd.f32 0.0, %v3602
        %v3604 = vpop.f32.mrb[0].mxu0
        %v3605 = vadd.f32 0.0, %v3604
        %v3606 = vpop.f32.mrb[0].mxu0
        %v3607 = vadd.f32 0.0, %v3606
        %v3608 = vpop.f32.mrb[0].mxu0
        %v3609 = vadd.f32 0.0, %v3608
        %3610 = vmatprep.mubr.bf16.mxu0 %v2667
        %3611 = vmatmul.mubr.bf16.gmra.mrb[0].mxu0 %v2666
        %v3612 = vpop.f32.mrb[0].mxu0
        %v3613 = vadd.f32 0.0, %v3612
        %v3614 = vpop.f32.mrb[0].mxu0
        %v3615 = vadd.f32 0.0, %v3614
        %v3616 = vpop.f32.mrb[0].mxu0
        %v3617 = vadd.f32 0.0, %v3616
        %v3618 = vpop.f32.mrb[0].mxu0
        %v3619 = vadd.f32 0.0, %v3618
        %3620 = vdwg.mxu0
        %3621 = vmatprep.subr.bf16.mxu0 %v3062
        %3622 = vmatpush1.bf16.msra.mxu0 %v3061
        %3623 = vmatprep.subr.bf16.mxu0 %v3074
        %3624 = vmatpush1.bf16.msra.mxu0 %v3073
        %3625 = vmatprep.subr.bf16.mxu0 %v3086
        %3626 = vmatpush1.bf16.msra.mxu0 %v3085
        %3627 = vmatprep.subr.bf16.mxu0 %v3098
        %3628 = vmatpush1.bf16.msra.mxu0 %v3097
        %3629 = vmatprep.subr.bf16.mxu0 %v3110
        %3630 = vmatpush1.bf16.msra.mxu0 %v3109
        %3631 = vmatprep.subr.bf16.mxu0 %v3122
        %3632 = vmatpush1.bf16.msra.mxu0 %v3121
        %3633 = vmatprep.subr.bf16.mxu0 %v3134
        %3634 = vmatpush1.bf16.msra.mxu0 %v3133
        %3635 = vmatprep.subr.bf16.mxu0 %v3146
        %3636 = vmatpush1.bf16.msra.mxu0 %v3145
        %3637 = vmatprep.subr.bf16.mxu0 %v3158
        %3638 = vmatpush1.bf16.msra.mxu0 %v3157
        %3639 = vmatprep.subr.bf16.mxu0 %v3170
        %3640 = vmatpush1.bf16.msra.mxu0 %v3169
        %3641 = vmatprep.subr.bf16.mxu0 %v3182
        %3642 = vmatpush1.bf16.msra.mxu0 %v3181
        %3643 = vmatprep.subr.bf16.mxu0 %v3194
        %3644 = vmatpush1.bf16.msra.mxu0 %v3193
        %3645 = vmatprep.subr.bf16.mxu0 %v3206
        %3646 = vmatpush1.bf16.msra.mxu0 %v3205
        %3647 = vmatprep.subr.bf16.mxu0 %v3218
        %3648 = vmatpush1.bf16.msra.mxu0 %v3217
        %3649 = vmatprep.subr.bf16.mxu0 %v3230
        %3650 = vmatpush1.bf16.msra.mxu0 %v3229
        %3651 = vmatprep.subr.bf16.mxu0 %v3242
        %3652 = vmatpush1.bf16.msra.mxu0 %v3241
        %3653 = vmatprep.mubr.bf16.mxu0 %v2665
        %3654 = vmatmul.mubr.bf16.gmra.mrb[0].mxu0 %v2664
        %v3655 = vpop.f32.mrb[0].mxu0
        %v3656 = vadd.f32 %v3603, %v3655
        %v3657 = vpop.f32.mrb[0].mxu0
        %v3658 = vadd.f32 %v3605, %v3657
        %v3659 = vpop.f32.mrb[0].mxu0
        %v3660 = vadd.f32 %v3607, %v3659
        %v3661 = vpop.f32.mrb[0].mxu0
        %v3662 = vadd.f32 %v3609, %v3661
        %3663 = vmatprep.mubr.bf16.mxu0 %v2669
        %3664 = vmatmul.mubr.bf16.gmra.mrb[0].mxu0 %v2668
        %v3665 = vpop.f32.mrb[0].mxu0
        %v3666 = vadd.f32 %v3613, %v3665
        %v3667 = vpop.f32.mrb[0].mxu0
        %v3668 = vadd.f32 %v3615, %v3667
        %v3669 = vpop.f32.mrb[0].mxu0
        %v3670 = vadd.f32 %v3617, %v3669
        %v3671 = vpop.f32.mrb[0].mxu0
        %v3672 = vadd.f32 %v3619, %v3671
        %3673 = vdwg.mxu0
        %v3675 = vlaneseq
        %v3676 = vshrl.u32 %v3675, 7
        %v3677 = vsub.s32 0, %v3676
        %v3678 = vrot.slane %v3248, %v3677
        %v3679 = vlaneseq
        %v3680 = vshrl.u32 %v3679, 7
        %v3681 = vsub.s32 1, %v3680
        %v3682 = vrot.slane %v3248, %v3681
        %v3683 = vlaneseq
        %v3684 = vshrl.u32 %v3683, 7
        %v3685 = vsub.s32 2, %v3684
        %v3686 = vrot.slane %v3248, %v3685
        %v3687 = vlaneseq
        %v3688 = vshrl.u32 %v3687, 7
        %v3689 = vsub.s32 3, %v3688
        %v3690 = vrot.slane %v3248, %v3689
        %v3691 = vlaneseq
        %v3692 = vshrl.u32 %v3691, 7
        %v3693 = vsub.s32 4, %v3692
        %v3694 = vrot.slane %v3248, %v3693
        %v3695 = vlaneseq
        %v3696 = vshrl.u32 %v3695, 7
        %v3697 = vsub.s32 5, %v3696
        %v3698 = vrot.slane %v3248, %v3697
        %v3699 = vlaneseq
        %v3700 = vshrl.u32 %v3699, 7
        %v3701 = vsub.s32 6, %v3700
        %v3702 = vrot.slane %v3248, %v3701
        %v3703 = vlaneseq
        %v3704 = vshrl.u32 %v3703, 7
        %v3705 = vsub.s32 7, %v3704
        %v3706 = vrot.slane %v3248, %v3705
        %v3715 = vmul.f32 %v3338, %v3678
        %v3716 = vmul.f32 %v3340, %v3682
        %v3717 = vmul.f32 %v3444, %v3686
        %v3718 = vmul.f32 %v3446, %v3690
        %v3719 = vmul.f32 %v3550, %v3694
        %v3720 = vmul.f32 %v3552, %v3698
        %v3721 = vmul.f32 %v3656, %v3702
        %v3722 = vmul.f32 %v3658, %v3706
        %v3723 = vmul.f32 %v3342, %v3678
        %v3724 = vmul.f32 %v3344, %v3682
        %v3725 = vmul.f32 %v3448, %v3686
        %v3726 = vmul.f32 %v3450, %v3690
        %v3727 = vmul.f32 %v3554, %v3694
        %v3728 = vmul.f32 %v3556, %v3698
        %v3729 = vmul.f32 %v3660, %v3702
        %v3730 = vmul.f32 %v3662, %v3706
        %v3731 = vmul.f32 %v3348, %v3678
        %v3732 = vmul.f32 %v3350, %v3682
        %v3733 = vmul.f32 %v3454, %v3686
        %v3734 = vmul.f32 %v3456, %v3690
        %v3735 = vmul.f32 %v3560, %v3694
        %v3736 = vmul.f32 %v3562, %v3698
        %v3737 = vmul.f32 %v3666, %v3702
        %v3738 = vmul.f32 %v3668, %v3706
        %v3739 = vmul.f32 %v3352, %v3678
        %v3740 = vmul.f32 %v3354, %v3682
        %v3741 = vmul.f32 %v3458, %v3686
        %v3742 = vmul.f32 %v3460, %v3690
        %v3743 = vmul.f32 %v3564, %v3694
        %v3744 = vmul.f32 %v3566, %v3698
        %v3745 = vmul.f32 %v3670, %v3702
        %v3746 = vmul.f32 %v3672, %v3706
        %v3747 = vmul.f32 %v3719, %v3719
        %v3748 = vmul.f32 %v3720, %v3720
        %v3749 = vmul.f32 %v3721, %v3721
        %v3750 = vmul.f32 %v3722, %v3722
        %v3751 = vmul.f32 %v3727, %v3727
        %v3752 = vmul.f32 %v3728, %v3728
        %v3753 = vmul.f32 %v3729, %v3729
        %v3754 = vmul.f32 %v3730, %v3730
        %v3755 = vmul.f32 %v3735, %v3735
        %v3756 = vmul.f32 %v3736, %v3736
        %v3757 = vmul.f32 %v3737, %v3737
        %v3758 = vmul.f32 %v3738, %v3738
        %v3759 = vmul.f32 %v3743, %v3743
        %v3760 = vmul.f32 %v3744, %v3744
        %v3761 = vmul.f32 %v3745, %v3745
        %v3762 = vmul.f32 %v3746, %v3746
        %v3763 = vmul.f32 %v3719, %v3747
        %v3764 = vmul.f32 %v3720, %v3748
        %v3765 = vmul.f32 %v3721, %v3749
        %v3766 = vmul.f32 %v3722, %v3750
        %v3767 = vmul.f32 %v3727, %v3751
        %v3768 = vmul.f32 %v3728, %v3752
        %v3769 = vmul.f32 %v3729, %v3753
        %v3770 = vmul.f32 %v3730, %v3754
        %v3771 = vmul.f32 %v3735, %v3755
        %v3772 = vmul.f32 %v3736, %v3756
        %v3773 = vmul.f32 %v3737, %v3757
        %v3774 = vmul.f32 %v3738, %v3758
        %v3775 = vmul.f32 %v3743, %v3759
        %v3776 = vmul.f32 %v3744, %v3760
        %v3777 = vmul.f32 %v3745, %v3761
        %v3778 = vmul.f32 %v3746, %v3762
        %v3779 = vmul.f32 %v3763, 0.044715
        %v3780 = vmul.f32 %v3764, 0.044715
        %v3781 = vmul.f32 %v3765, 0.044715
        %v3782 = vmul.f32 %v3766, 0.044715
        %v3783 = vmul.f32 %v3767, 0.044715
        %v3784 = vmul.f32 %v3768, 0.044715
        %v3785 = vmul.f32 %v3769, 0.044715
        %v3786 = vmul.f32 %v3770, 0.044715
        %v3787 = vmul.f32 %v3771, 0.044715
        %v3788 = vmul.f32 %v3772, 0.044715
        %v3789 = vmul.f32 %v3773, 0.044715
        %v3790 = vmul.f32 %v3774, 0.044715
        %v3791 = vmul.f32 %v3775, 0.044715
        %v3792 = vmul.f32 %v3776, 0.044715
        %v3793 = vmul.f32 %v3777, 0.044715
        %v3794 = vmul.f32 %v3778, 0.044715
        %v3795 = vadd.f32 %v3719, %v3779
        %v3796 = vadd.f32 %v3720, %v3780
        %v3797 = vadd.f32 %v3721, %v3781
        %v3798 = vadd.f32 %v3722, %v3782
        %v3799 = vadd.f32 %v3727, %v3783
        %v3800 = vadd.f32 %v3728, %v3784
        %v3801 = vadd.f32 %v3729, %v3785
        %v3802 = vadd.f32 %v3730, %v3786
        %v3803 = vadd.f32 %v3735, %v3787
        %v3804 = vadd.f32 %v3736, %v3788
        %v3805 = vadd.f32 %v3737, %v3789
        %v3806 = vadd.f32 %v3738, %v3790
        %v3807 = vadd.f32 %v3743, %v3791
        %v3808 = vadd.f32 %v3744, %v3792
        %v3809 = vadd.f32 %v3745, %v3793
        %v3810 = vadd.f32 %v3746, %v3794
        %v3811 = vmul.f32 %v3795, 0.7978846
        %v3812 = vmul.f32 %v3796, 0.7978846
        %v3813 = vmul.f32 %v3797, 0.7978846
        %v3814 = vmul.f32 %v3798, 0.7978846
        %v3815 = vmul.f32 %v3799, 0.7978846
        %v3816 = vmul.f32 %v3800, 0.7978846
        %v3817 = vmul.f32 %v3801, 0.7978846
        %v3818 = vmul.f32 %v3802, 0.7978846
        %v3819 = vmul.f32 %v3803, 0.7978846
        %v3820 = vmul.f32 %v3804, 0.7978846
        %v3821 = vmul.f32 %v3805, 0.7978846
        %v3822 = vmul.f32 %v3806, 0.7978846
        %v3823 = vmul.f32 %v3807, 0.7978846
        %v3824 = vmul.f32 %v3808, 0.7978846
        %v3825 = vmul.f32 %v3809, 0.7978846
        %v3826 = vmul.f32 %v3810, 0.7978846
        %v3827 = vtanh.pop %v3811
        %v3828 = vtanh.pop %v3812
        %v3829 = vtanh.pop %v3813
        %v3830 = vtanh.pop %v3814
        %v3831 = vtanh.pop %v3815
        %v3832 = vtanh.pop %v3816
        %v3833 = vtanh.pop %v3817
        %v3834 = vtanh.pop %v3818
        %v3835 = vtanh.pop %v3819
        %v3836 = vtanh.pop %v3820
        %v3837 = vtanh.pop %v3821
        %v3838 = vtanh.pop %v3822
        %v3839 = vtanh.pop %v3823
        %v3840 = vtanh.pop %v3824
        %v3841 = vtanh.pop %v3825
        %v3842 = vtanh.pop %v3826
        %v3843 = vadd.f32 %v3827, 1.0
        %v3844 = vadd.f32 %v3828, 1.0
        %v3845 = vadd.f32 %v3829, 1.0
        %v3846 = vadd.f32 %v3830, 1.0
        %v3847 = vadd.f32 %v3831, 1.0
        %v3848 = vadd.f32 %v3832, 1.0
        %v3849 = vadd.f32 %v3833, 1.0
        %v3850 = vadd.f32 %v3834, 1.0
        %v3851 = vadd.f32 %v3835, 1.0
        %v3852 = vadd.f32 %v3836, 1.0
        %v3853 = vadd.f32 %v3837, 1.0
        %v3854 = vadd.f32 %v3838, 1.0
        %v3855 = vadd.f32 %v3839, 1.0
        %v3856 = vadd.f32 %v3840, 1.0
        %v3857 = vadd.f32 %v3841, 1.0
        %v3858 = vadd.f32 %v3842, 1.0
        %v3859 = vmul.f32 %v3843, 0.5
        %v3860 = vmul.f32 %v3844, 0.5
        %v3861 = vmul.f32 %v3845, 0.5
        %v3862 = vmul.f32 %v3846, 0.5
        %v3863 = vmul.f32 %v3847, 0.5
        %v3864 = vmul.f32 %v3848, 0.5
        %v3865 = vmul.f32 %v3849, 0.5
        %v3866 = vmul.f32 %v3850, 0.5
        %v3867 = vmul.f32 %v3851, 0.5
        %v3868 = vmul.f32 %v3852, 0.5
        %v3869 = vmul.f32 %v3853, 0.5
        %v3870 = vmul.f32 %v3854, 0.5
        %v3871 = vmul.f32 %v3855, 0.5
        %v3872 = vmul.f32 %v3856, 0.5
        %v3873 = vmul.f32 %v3857, 0.5
        %v3874 = vmul.f32 %v3858, 0.5
        %v3875 = vmul.f32 %v3719, %v3859
        %v3876 = vmul.f32 %v3720, %v3860
        %v3877 = vmul.f32 %v3721, %v3861
        %v3878 = vmul.f32 %v3722, %v3862
        %v3879 = vmul.f32 %v3727, %v3863
        %v3880 = vmul.f32 %v3728, %v3864
        %v3881 = vmul.f32 %v3729, %v3865
        %v3882 = vmul.f32 %v3730, %v3866
        %v3883 = vmul.f32 %v3735, %v3867
        %v3884 = vmul.f32 %v3736, %v3868
        %v3885 = vmul.f32 %v3737, %v3869
        %v3886 = vmul.f32 %v3738, %v3870
        %v3887 = vmul.f32 %v3743, %v3871
        %v3888 = vmul.f32 %v3744, %v3872
        %v3889 = vmul.f32 %v3745, %v3873
        %v3890 = vmul.f32 %v3746, %v3874
        %v3891 = vmul.f32 %v3875, %v3715
        %v3892 = vmul.f32 %v3876, %v3716
        %v3893 = vmul.f32 %v3877, %v3717
        %v3894 = vmul.f32 %v3878, %v3718
        %v3895 = vmul.f32 %v3879, %v3723
        %v3896 = vmul.f32 %v3880, %v3724
        %v3897 = vmul.f32 %v3881, %v3725
        %v3898 = vmul.f32 %v3882, %v3726
        %v3899 = vmul.f32 %v3883, %v3731
        %v3900 = vmul.f32 %v3884, %v3732
        %v3901 = vmul.f32 %v3885, %v3733
        %v3902 = vmul.f32 %v3886, %v3734
        %v3903 = vmul.f32 %v3887, %v3739
        %v3904 = vmul.f32 %v3888, %v3740
        %v3905 = vmul.f32 %v3889, %v3741
        %v3906 = vmul.f32 %v3890, %v3742
        %s3907 = scalar_lea.vmem %s469, 32
        %v3908 = vld [vmem:[%s3907] sm:$0xff]
        %v3909 = vld [vmem:[%s3907 + $0x8] sm:$0xff]
        %v3910 = vld [vmem:[%s3907 + $0x10] sm:$0xff]
        %v3911 = vld [vmem:[%s3907 + $0x18] sm:$0xff]
        %v3913 = vsel %vm2081, %v3908, 0
        %v3916 = vsel %vm2081, %v3909, 0
        %v3919 = vsel %vm2081, %v3910, 0
        %v3922 = vsel %vm2081, %v3911, 0
        %3924 = vmatprep.subr.mxu0 %v3892
        %3925 = vmatpush1.msra.mxu0 %v3891
        %3926 = vmatprep.subr.mxu0 %v3896
        %3927 = vmatpush1.msra.mxu0 %v3895
        %3928 = vmatprep.subr.mxu0 %v3900
        %3929 = vmatpush1.msra.mxu0 %v3899
        %3930 = vmatprep.subr.mxu0 %v3904
        %3931 = vmatpush1.msra.mxu0 %v3903
        %3932 = vmatprep.subr.mxu0 0.0
        %3933 = vmatpush1.msra.mxu0 0.0
        %3934 = vmatprep.subr.mxu0 0.0
        %3935 = vmatpush1.msra.mxu0 0.0
        %3936 = vmatprep.subr.mxu0 0.0
        %3937 = vmatpush1.msra.mxu0 0.0
        %3938 = vmatprep.subr.mxu0 0.0
        %3939 = vmatpush1.msra.mxu0 0.0
        %3940 = vmatprep.subr.mxu0 0.0
        %3941 = vmatpush1.msra.mxu0 0.0
        %3942 = vmatprep.subr.mxu0 0.0
        %3943 = vmatpush1.msra.mxu0 0.0
        %3944 = vmatprep.subr.mxu0 0.0
        %3945 = vmatpush1.msra.mxu0 0.0
        %3946 = vmatprep.subr.mxu0 0.0
        %3947 = vmatpush1.msra.mxu0 0.0
        %3948 = vmatprep.subr.mxu0 0.0
        %3949 = vmatpush1.msra.mxu0 0.0
        %3950 = vmatprep.subr.mxu0 0.0
        %3951 = vmatpush1.msra.mxu0 0.0
        %3952 = vmatprep.subr.mxu0 0.0
        %3953 = vmatpush1.msra.mxu0 0.0
        %3954 = vmatprep.subr.mxu0 0.0
        %3955 = vmatpush1.msra.mxu0 0.0
        %3956 = vmatprep.subr.mxu0 0.0
        %3957 = vmatpush1.msra.mxu0 0.0
        %3958 = vmatprep.subr.mxu0 0.0
        %3959 = vmatpush1.msra.mxu0 0.0
        %3960 = vmatprep.subr.mxu0 0.0
        %3961 = vmatpush1.msra.mxu0 0.0
        %3962 = vmatprep.subr.mxu0 0.0
        %3963 = vmatpush1.msra.mxu0 0.0
        %3964 = vmatprep.subr.mxu0 0.0
        %3965 = vmatpush1.msra.mxu0 0.0
        %3966 = vmatprep.subr.mxu0 0.0
        %3967 = vmatpush1.msra.mxu0 0.0
        %3968 = vmatprep.subr.mxu0 0.0
        %3969 = vmatpush1.msra.mxu0 0.0
        %3970 = vmatprep.subr.mxu0 0.0
        %3971 = vmatpush1.msra.mxu0 0.0
        %3972 = vmatprep.subr.mxu0 0.0
        %3973 = vmatpush1.msra.mxu0 0.0
        %3974 = vmatprep.subr.mxu0 0.0
        %3975 = vmatpush1.msra.mxu0 0.0
        %3976 = vmatprep.subr.mxu0 0.0
        %3977 = vmatpush1.msra.mxu0 0.0
        %3978 = vmatprep.subr.mxu0 0.0
        %3979 = vmatpush1.msra.mxu0 0.0
        %3980 = vmatprep.subr.mxu0 0.0
        %3981 = vmatpush1.msra.mxu0 0.0
        %3982 = vmatprep.subr.mxu0 0.0
        %3983 = vmatpush1.msra.mxu0 0.0
        %3984 = vmatprep.subr.mxu0 0.0
        %3985 = vmatpush1.msra.mxu0 0.0
        %3986 = vmatprep.subr.mxu0 0.0
        %3987 = vmatpush1.msra.mxu0 0.0
        %3988 = vmatprep.mubr.f32.mxu0 0.0
        %3989 = vmatmul.mubr.f32.gmra.mrb[0].mxu0 %v3913
        %v3990 = vpop.f32.mrb[0].mxu0
        %v3991 = vadd.f32 0.0, %v3990
        %v3992 = vpop.f32.mrb[0].mxu0
        %v3993 = vadd.f32 0.0, %v3992
        %3994 = vmatprep.mubr.f32.mxu0 0.0
        %3995 = vmatmul.mubr.f32.gmra.mrb[0].mxu0 %v3916
        %v3996 = vpop.f32.mrb[0].mxu0
        %v3997 = vadd.f32 0.0, %v3996
        %v3998 = vpop.f32.mrb[0].mxu0
        %v3999 = vadd.f32 0.0, %v3998
        %4000 = vmatprep.mubr.f32.mxu0 0.0
        %4001 = vmatmul.mubr.f32.gmra.mrb[0].mxu0 %v3919
        %v4002 = vpop.f32.mrb[0].mxu0
        %v4003 = vadd.f32 0.0, %v4002
        %v4004 = vpop.f32.mrb[0].mxu0
        %v4005 = vadd.f32 0.0, %v4004
        %4006 = vmatprep.mubr.f32.mxu0 0.0
        %4007 = vmatmul.mubr.f32.gmra.mrb[0].mxu0 %v3922
        %v4008 = vpop.f32.mrb[0].mxu0
        %v4009 = vadd.f32 0.0, %v4008
        %v4010 = vpop.f32.mrb[0].mxu0
        %v4011 = vadd.f32 0.0, %v4010
        %4012 = vdwg.mxu0
        %4013 = vmatprep.subr.mxu0 %v3894
        %4014 = vmatpush1.msra.mxu0 %v3893
        %4015 = vmatprep.subr.mxu0 %v3898
        %4016 = vmatpush1.msra.mxu0 %v3897
        %4017 = vmatprep.subr.mxu0 %v3902
        %4018 = vmatpush1.msra.mxu0 %v3901
        %4019 = vmatprep.subr.mxu0 %v3906
        %4020 = vmatpush1.msra.mxu0 %v3905
        %4021 = vmatprep.subr.mxu0 0.0
        %4022 = vmatpush1.msra.mxu0 0.0
        %4023 = vmatprep.subr.mxu0 0.0
        %4024 = vmatpush1.msra.mxu0 0.0
        %4025 = vmatprep.subr.mxu0 0.0
        %4026 = vmatpush1.msra.mxu0 0.0
        %4027 = vmatprep.subr.mxu0 0.0
        %4028 = vmatpush1.msra.mxu0 0.0
        %4029 = vmatprep.subr.mxu0 0.0
        %4030 = vmatpush1.msra.mxu0 0.0
        %4031 = vmatprep.subr.mxu0 0.0
        %4032 = vmatpush1.msra.mxu0 0.0
        %4033 = vmatprep.subr.mxu0 0.0
        %4034 = vmatpush1.msra.mxu0 0.0
        %4035 = vmatprep.subr.mxu0 0.0
        %4036 = vmatpush1.msra.mxu0 0.0
        %4037 = vmatprep.subr.mxu0 0.0
        %4038 = vmatpush1.msra.mxu0 0.0
        %4039 = vmatprep.subr.mxu0 0.0
        %4040 = vmatpush1.msra.mxu0 0.0
        %4041 = vmatprep.subr.mxu0 0.0
        %4042 = vmatpush1.msra.mxu0 0.0
        %4043 = vmatprep.subr.mxu0 0.0
        %4044 = vmatpush1.msra.mxu0 0.0
        %4045 = vmatprep.subr.mxu0 0.0
        %4046 = vmatpush1.msra.mxu0 0.0
        %4047 = vmatprep.subr.mxu0 0.0
        %4048 = vmatpush1.msra.mxu0 0.0
        %4049 = vmatprep.subr.mxu0 0.0
        %4050 = vmatpush1.msra.mxu0 0.0
        %4051 = vmatprep.subr.mxu0 0.0
        %4052 = vmatpush1.msra.mxu0 0.0
        %4053 = vmatprep.subr.mxu0 0.0
        %4054 = vmatpush1.msra.mxu0 0.0
        %4055 = vmatprep.subr.mxu0 0.0
        %4056 = vmatpush1.msra.mxu0 0.0
        %4057 = vmatprep.subr.mxu0 0.0
        %4058 = vmatpush1.msra.mxu0 0.0
        %4059 = vmatprep.subr.mxu0 0.0
        %4060 = vmatpush1.msra.mxu0 0.0
        %4061 = vmatprep.subr.mxu0 0.0
        %4062 = vmatpush1.msra.mxu0 0.0
        %4063 = vmatprep.subr.mxu0 0.0
        %4064 = vmatpush1.msra.mxu0 0.0
        %4065 = vmatprep.subr.mxu0 0.0
        %4066 = vmatpush1.msra.mxu0 0.0
        %4067 = vmatprep.subr.mxu0 0.0
        %4068 = vmatpush1.msra.mxu0 0.0
        %4069 = vmatprep.subr.mxu0 0.0
        %4070 = vmatpush1.msra.mxu0 0.0
        %4071 = vmatprep.subr.mxu0 0.0
        %4072 = vmatpush1.msra.mxu0 0.0
        %4073 = vmatprep.subr.mxu0 0.0
        %4074 = vmatpush1.msra.mxu0 0.0
        %4075 = vmatprep.subr.mxu0 0.0
        %4076 = vmatpush1.msra.mxu0 0.0
        %4077 = vmatprep.mubr.f32.mxu0 0.0
        %4078 = vmatmul.mubr.f32.gmra.mrb[0].mxu0 %v3913
        %v4079 = vpop.f32.mrb[0].mxu0
        %v4080 = vadd.f32 0.0, %v4079
        %v4081 = vpop.f32.mrb[0].mxu0
        %v4082 = vadd.f32 0.0, %v4081
        %4083 = vmatprep.mubr.f32.mxu0 0.0
        %4084 = vmatmul.mubr.f32.gmra.mrb[0].mxu0 %v3916
        %v4085 = vpop.f32.mrb[0].mxu0
        %v4086 = vadd.f32 0.0, %v4085
        %v4087 = vpop.f32.mrb[0].mxu0
        %v4088 = vadd.f32 0.0, %v4087
        %4089 = vmatprep.mubr.f32.mxu0 0.0
        %4090 = vmatmul.mubr.f32.gmra.mrb[0].mxu0 %v3919
        %v4091 = vpop.f32.mrb[0].mxu0
        %v4092 = vadd.f32 0.0, %v4091
        %v4093 = vpop.f32.mrb[0].mxu0
        %v4094 = vadd.f32 0.0, %v4093
        %4095 = vmatprep.mubr.f32.mxu0 0.0
        %4096 = vmatmul.mubr.f32.gmra.mrb[0].mxu0 %v3922
        %v4097 = vpop.f32.mrb[0].mxu0
        %v4098 = vadd.f32 0.0, %v4097
        %v4099 = vpop.f32.mrb[0].mxu0
        %v4100 = vadd.f32 0.0, %v4099
        %4101 = vdwg.mxu0
        %s4102 = sadd.s32 %s2272, 1
        %s4103 = sld [smem:[#allocation11 + %s4102]]
        %v4104 = vmul.f32 %v3891, %v3991
        %v4105 = vmul.f32 %v3892, %v3993
        %v4106 = vmul.f32 %v3893, %v4080
        %v4107 = vmul.f32 %v3894, %v4082
        %v4108 = vmul.f32 %v3895, %v3997
        %v4109 = vmul.f32 %v3896, %v3999
        %v4110 = vmul.f32 %v3897, %v4086
        %v4111 = vmul.f32 %v3898, %v4088
        %v4112 = vmul.f32 %v3899, %v4003
        %v4113 = vmul.f32 %v3900, %v4005
        %v4114 = vmul.f32 %v3901, %v4092
        %v4115 = vmul.f32 %v3902, %v4094
        %v4116 = vmul.f32 %v3903, %v4009
        %v4117 = vmul.f32 %v3904, %v4011
        %v4118 = vmul.f32 %v3905, %v4098
        %v4119 = vmul.f32 %v3906, %v4100
        %v4120 = vstv %s4103
        %v4121 = vmul.f32 %v4104, %v4120
        %v4122 = vmul.f32 %v4105, %v4120
        %v4123 = vmul.f32 %v4106, %v4120
        %v4124 = vmul.f32 %v4107, %v4120
        %v4125 = vmul.f32 %v4108, %v4120
        %v4126 = vmul.f32 %v4109, %v4120
        %v4127 = vmul.f32 %v4110, %v4120
        %v4128 = vmul.f32 %v4111, %v4120
        %v4129 = vmul.f32 %v4112, %v4120
        %v4130 = vmul.f32 %v4113, %v4120
        %v4131 = vmul.f32 %v4114, %v4120
        %v4132 = vmul.f32 %v4115, %v4120
        %v4133 = vmul.f32 %v4116, %v4120
        %v4134 = vmul.f32 %v4117, %v4120
        %v4135 = vmul.f32 %v4118, %v4120
        %v4136 = vmul.f32 %v4119, %v4120
        %v4137 = vsub.f32 %v3891, %v3991
        %v4138 = vsub.f32 %v3892, %v3993
        %v4139 = vsub.f32 %v3893, %v4080
        %v4140 = vsub.f32 %v3894, %v4082
        %v4141 = vsub.f32 %v3895, %v3997
        %v4142 = vsub.f32 %v3896, %v3999
        %v4143 = vsub.f32 %v3897, %v4086
        %v4144 = vsub.f32 %v3898, %v4088
        %v4145 = vsub.f32 %v3899, %v4003
        %v4146 = vsub.f32 %v3900, %v4005
        %v4147 = vsub.f32 %v3901, %v4092
        %v4148 = vsub.f32 %v3902, %v4094
        %v4149 = vsub.f32 %v3903, %v4009
        %v4150 = vsub.f32 %v3904, %v4011
        %v4151 = vsub.f32 %v3905, %v4098
        %v4152 = vsub.f32 %v3906, %v4100
        %s4153 = ssub.f32 1.0, %s4103
        %v4154 = vstv %s4153
        %v4155 = vmul.f32 %v4137, %v4154
        %v4156 = vmul.f32 %v4138, %v4154
        %v4157 = vmul.f32 %v4139, %v4154
        %v4158 = vmul.f32 %v4140, %v4154
        %v4159 = vmul.f32 %v4141, %v4154
        %v4160 = vmul.f32 %v4142, %v4154
        %v4161 = vmul.f32 %v4143, %v4154
        %v4162 = vmul.f32 %v4144, %v4154
        %v4163 = vmul.f32 %v4145, %v4154
        %v4164 = vmul.f32 %v4146, %v4154
        %v4165 = vmul.f32 %v4147, %v4154
        %v4166 = vmul.f32 %v4148, %v4154
        %v4167 = vmul.f32 %v4149, %v4154
        %v4168 = vmul.f32 %v4150, %v4154
        %v4169 = vmul.f32 %v4151, %v4154
        %v4170 = vmul.f32 %v4152, %v4154
        %v4171 = vadd.f32 %v4121, %v4155
        %v4172 = vadd.f32 %v4122, %v4156
        %v4173 = vadd.f32 %v4123, %v4157
        %v4174 = vadd.f32 %v4124, %v4158
        %v4175 = vadd.f32 %v4125, %v4159
        %v4176 = vadd.f32 %v4126, %v4160
        %v4177 = vadd.f32 %v4127, %v4161
        %v4178 = vadd.f32 %v4128, %v4162
        %v4179 = vadd.f32 %v4129, %v4163
        %v4180 = vadd.f32 %v4130, %v4164
        %v4181 = vadd.f32 %v4131, %v4165
        %v4182 = vadd.f32 %v4132, %v4166
        %v4183 = vadd.f32 %v4133, %v4167
        %v4184 = vadd.f32 %v4134, %v4168
        %v4185 = vadd.f32 %v4135, %v4169
        %v4186 = vadd.f32 %v4136, %v4170
        %v4187 = vpack.c.bf16 %v4175, %v4171
        %v4188 = vpack.c.bf16 %v4176, %v4172
        %v4189 = vpack.c.bf16 %v4177, %v4173
        %v4190 = vpack.c.bf16 %v4178, %v4174
        %v4191 = vpack.c.bf16 %v4183, %v4179
        %v4192 = vpack.c.bf16 %v4184, %v4180
        %v4193 = vpack.c.bf16 %v4185, %v4181
        %v4194 = vpack.c.bf16 %v4186, %v4182
        %4195 = vmatprep.subr.bf16.mxu0 %v2872
        %4196 = vmatpush1.bf16.msra.mxu0 %v2871
        %4197 = vmatprep.subr.bf16.mxu0 %v2884
        %4198 = vmatpush1.bf16.msra.mxu0 %v2883
        %4199 = vmatprep.subr.bf16.mxu0 %v2896
        %4200 = vmatpush1.bf16.msra.mxu0 %v2895
        %4201 = vmatprep.subr.bf16.mxu0 %v2908
        %4202 = vmatpush1.bf16.msra.mxu0 %v2907
        %4203 = vmatprep.subr.bf16.mxu0 %v2920
        %4204 = vmatpush1.bf16.msra.mxu0 %v2919
        %4205 = vmatprep.subr.bf16.mxu0 %v2932
        %4206 = vmatpush1.bf16.msra.mxu0 %v2931
        %4207 = vmatprep.subr.bf16.mxu0 %v2944
        %4208 = vmatpush1.bf16.msra.mxu0 %v2943
        %4209 = vmatprep.subr.bf16.mxu0 %v2956
        %4210 = vmatpush1.bf16.msra.mxu0 %v2955
        %4211 = vmatprep.subr.bf16.mxu0 %v2968
        %4212 = vmatpush1.bf16.msra.mxu0 %v2967
        %4213 = vmatprep.subr.bf16.mxu0 %v2980
        %4214 = vmatpush1.bf16.msra.mxu0 %v2979
        %4215 = vmatprep.subr.bf16.mxu0 %v2992
        %4216 = vmatpush1.bf16.msra.mxu0 %v2991
        %4217 = vmatprep.subr.bf16.mxu0 %v3004
        %4218 = vmatpush1.bf16.msra.mxu0 %v3003
        %4219 = vmatprep.subr.bf16.mxu0 %v3016
        %4220 = vmatpush1.bf16.msra.mxu0 %v3015
        %4221 = vmatprep.subr.bf16.mxu0 %v3028
        %4222 = vmatpush1.bf16.msra.mxu0 %v3027
        %4223 = vmatprep.subr.bf16.mxu0 %v3040
        %4224 = vmatpush1.bf16.msra.mxu0 %v3039
        %4225 = vmatprep.subr.bf16.mxu0 %v3052
        %4226 = vmatpush1.bf16.msra.mxu0 %v3051
        %4227 = vmatprep.mubr.bf16.mxu0 %v4188
        %4228 = vmatmul.mubr.bf16.gmra.mrb[0].mxu0 %v4187
        %v4229 = vpop.f32.mrb[0].mxu0
        %v4230 = vadd.f32 0.0, %v4229
        %v4231 = vpop.f32.mrb[0].mxu0
        %v4232 = vadd.f32 0.0, %v4231
        %v4233 = vpop.f32.mrb[0].mxu0
        %v4234 = vadd.f32 0.0, %v4233
        %v4235 = vpop.f32.mrb[0].mxu0
        %v4236 = vadd.f32 0.0, %v4235
        %4237 = vmatprep.mubr.bf16.mxu0 %v4192
        %4238 = vmatmul.mubr.bf16.gmra.mrb[0].mxu0 %v4191
        %v4239 = vpop.f32.mrb[0].mxu0
        %v4240 = vadd.f32 0.0, %v4239
        %v4241 = vpop.f32.mrb[0].mxu0
        %v4242 = vadd.f32 0.0, %v4241
        %v4243 = vpop.f32.mrb[0].mxu0
        %v4244 = vadd.f32 0.0, %v4243
        %v4245 = vpop.f32.mrb[0].mxu0
        %v4246 = vadd.f32 0.0, %v4245
        %4247 = vdwg.mxu0
        %4248 = vmatprep.subr.bf16.mxu0 %v3064
        %4249 = vmatpush1.bf16.msra.mxu0 %v3063
        %4250 = vmatprep.subr.bf16.mxu0 %v3076
        %4251 = vmatpush1.bf16.msra.mxu0 %v3075
        %4252 = vmatprep.subr.bf16.mxu0 %v3088
        %4253 = vmatpush1.bf16.msra.mxu0 %v3087
        %4254 = vmatprep.subr.bf16.mxu0 %v3100
        %4255 = vmatpush1.bf16.msra.mxu0 %v3099
        %4256 = vmatprep.subr.bf16.mxu0 %v3112
        %4257 = vmatpush1.bf16.msra.mxu0 %v3111
        %4258 = vmatprep.subr.bf16.mxu0 %v3124
        %4259 = vmatpush1.bf16.msra.mxu0 %v3123
        %4260 = vmatprep.subr.bf16.mxu0 %v3136
        %4261 = vmatpush1.bf16.msra.mxu0 %v3135
        %4262 = vmatprep.subr.bf16.mxu0 %v3148
        %4263 = vmatpush1.bf16.msra.mxu0 %v3147
        %4264 = vmatprep.subr.bf16.mxu0 %v3160
        %4265 = vmatpush1.bf16.msra.mxu0 %v3159
        %4266 = vmatprep.subr.bf16.mxu0 %v3172
        %4267 = vmatpush1.bf16.msra.mxu0 %v3171
        %4268 = vmatprep.subr.bf16.mxu0 %v3184
        %4269 = vmatpush1.bf16.msra.mxu0 %v3183
        %4270 = vmatprep.subr.bf16.mxu0 %v3196
        %4271 = vmatpush1.bf16.msra.mxu0 %v3195
        %4272 = vmatprep.subr.bf16.mxu0 %v3208
        %4273 = vmatpush1.bf16.msra.mxu0 %v3207
        %4274 = vmatprep.subr.bf16.mxu0 %v3220
        %4275 = vmatpush1.bf16.msra.mxu0 %v3219
        %4276 = vmatprep.subr.bf16.mxu0 %v3232
        %4277 = vmatpush1.bf16.msra.mxu0 %v3231
        %4278 = vmatprep.subr.bf16.mxu0 %v3244
        %4279 = vmatpush1.bf16.msra.mxu0 %v3243
        %4280 = vmatprep.mubr.bf16.mxu0 %v4190
        %4281 = vmatmul.mubr.bf16.gmra.mrb[0].mxu0 %v4189
        %v4282 = vpop.f32.mrb[0].mxu0
        %v4283 = vadd.f32 %v4230, %v4282
        %v4284 = vpop.f32.mrb[0].mxu0
        %v4285 = vadd.f32 %v4232, %v4284
        %v4286 = vpop.f32.mrb[0].mxu0
        %v4287 = vadd.f32 %v4234, %v4286
        %v4288 = vpop.f32.mrb[0].mxu0
        %v4289 = vadd.f32 %v4236, %v4288
        %4290 = vmatprep.mubr.bf16.mxu0 %v4194
        %4291 = vmatmul.mubr.bf16.gmra.mrb[0].mxu0 %v4193
        %v4292 = vpop.f32.mrb[0].mxu0
        %v4293 = vadd.f32 %v4240, %v4292
        %v4294 = vpop.f32.mrb[0].mxu0
        %v4295 = vadd.f32 %v4242, %v4294
        %v4296 = vpop.f32.mrb[0].mxu0
        %v4297 = vadd.f32 %v4244, %v4296
        %v4298 = vpop.f32.mrb[0].mxu0
        %v4299 = vadd.f32 %v4246, %v4298
        %4300 = vdwg.mxu0
        %4301 = vmatprep.subr.bf16.mxu0 %v2874
        %4302 = vmatpush1.bf16.msra.mxu0 %v2873
        %4303 = vmatprep.subr.bf16.mxu0 %v2886
        %4304 = vmatpush1.bf16.msra.mxu0 %v2885
        %4305 = vmatprep.subr.bf16.mxu0 %v2898
        %4306 = vmatpush1.bf16.msra.mxu0 %v2897
        %4307 = vmatprep.subr.bf16.mxu0 %v2910
        %4308 = vmatpush1.bf16.msra.mxu0 %v2909
        %4309 = vmatprep.subr.bf16.mxu0 %v2922
        %4310 = vmatpush1.bf16.msra.mxu0 %v2921
        %4311 = vmatprep.subr.bf16.mxu0 %v2934
        %4312 = vmatpush1.bf16.msra.mxu0 %v2933
        %4313 = vmatprep.subr.bf16.mxu0 %v2946
        %4314 = vmatpush1.bf16.msra.mxu0 %v2945
        %4315 = vmatprep.subr.bf16.mxu0 %v2958
        %4316 = vmatpush1.bf16.msra.mxu0 %v2957
        %4317 = vmatprep.subr.bf16.mxu0 %v2970
        %4318 = vmatpush1.bf16.msra.mxu0 %v2969
        %4319 = vmatprep.subr.bf16.mxu0 %v2982
        %4320 = vmatpush1.bf16.msra.mxu0 %v2981
        %4321 = vmatprep.subr.bf16.mxu0 %v2994
        %4322 = vmatpush1.bf16.msra.mxu0 %v2993
        %4323 = vmatprep.subr.bf16.mxu0 %v3006
        %4324 = vmatpush1.bf16.msra.mxu0 %v3005
        %4325 = vmatprep.subr.bf16.mxu0 %v3018
        %4326 = vmatpush1.bf16.msra.mxu0 %v3017
        %4327 = vmatprep.subr.bf16.mxu0 %v3030
        %4328 = vmatpush1.bf16.msra.mxu0 %v3029
        %4329 = vmatprep.subr.bf16.mxu0 %v3042
        %4330 = vmatpush1.bf16.msra.mxu0 %v3041
        %4331 = vmatprep.subr.bf16.mxu0 %v3054
        %4332 = vmatpush1.bf16.msra.mxu0 %v3053
        %4333 = vmatprep.mubr.bf16.mxu0 %v4188
        %4334 = vmatmul.mubr.bf16.gmra.mrb[0].mxu0 %v4187
        %v4335 = vpop.f32.mrb[0].mxu0
        %v4336 = vadd.f32 0.0, %v4335
        %v4337 = vpop.f32.mrb[0].mxu0
        %v4338 = vadd.f32 0.0, %v4337
        %v4339 = vpop.f32.mrb[0].mxu0
        %v4340 = vadd.f32 0.0, %v4339
        %v4341 = vpop.f32.mrb[0].mxu0
        %v4342 = vadd.f32 0.0, %v4341
        %4343 = vmatprep.mubr.bf16.mxu0 %v4192
        %4344 = vmatmul.mubr.bf16.gmra.mrb[0].mxu0 %v4191
        %v4345 = vpop.f32.mrb[0].mxu0
        %v4346 = vadd.f32 0.0, %v4345
        %v4347 = vpop.f32.mrb[0].mxu0
        %v4348 = vadd.f32 0.0, %v4347
        %v4349 = vpop.f32.mrb[0].mxu0
        %v4350 = vadd.f32 0.0, %v4349
        %v4351 = vpop.f32.mrb[0].mxu0
        %v4352 = vadd.f32 0.0, %v4351
        %4353 = vdwg.mxu0
        %4354 = vmatprep.subr.bf16.mxu0 %v3066
        %4355 = vmatpush1.bf16.msra.mxu0 %v3065
        %4356 = vmatprep.subr.bf16.mxu0 %v3078
        %4357 = vmatpush1.bf16.msra.mxu0 %v3077
        %4358 = vmatprep.subr.bf16.mxu0 %v3090
        %4359 = vmatpush1.bf16.msra.mxu0 %v3089
        %4360 = vmatprep.subr.bf16.mxu0 %v3102
        %4361 = vmatpush1.bf16.msra.mxu0 %v3101
        %4362 = vmatprep.subr.bf16.mxu0 %v3114
        %4363 = vmatpush1.bf16.msra.mxu0 %v3113
        %4364 = vmatprep.subr.bf16.mxu0 %v3126
        %4365 = vmatpush1.bf16.msra.mxu0 %v3125
        %4366 = vmatprep.subr.bf16.mxu0 %v3138
        %4367 = vmatpush1.bf16.msra.mxu0 %v3137
        %4368 = vmatprep.subr.bf16.mxu0 %v3150
        %4369 = vmatpush1.bf16.msra.mxu0 %v3149
        %4370 = vmatprep.subr.bf16.mxu0 %v3162
        %4371 = vmatpush1.bf16.msra.mxu0 %v3161
        %4372 = vmatprep.subr.bf16.mxu0 %v3174
        %4373 = vmatpush1.bf16.msra.mxu0 %v3173
        %4374 = vmatprep.subr.bf16.mxu0 %v3186
        %4375 = vmatpush1.bf16.msra.mxu0 %v3185
        %4376 = vmatprep.subr.bf16.mxu0 %v3198
        %4377 = vmatpush1.bf16.msra.mxu0 %v3197
        %4378 = vmatprep.subr.bf16.mxu0 %v3210
        %4379 = vmatpush1.bf16.msra.mxu0 %v3209
        %4380 = vmatprep.subr.bf16.mxu0 %v3222
        %4381 = vmatpush1.bf16.msra.mxu0 %v3221
        %4382 = vmatprep.subr.bf16.mxu0 %v3234
        %4383 = vmatpush1.bf16.msra.mxu0 %v3233
        %4384 = vmatprep.subr.bf16.mxu0 %v3246
        %4385 = vmatpush1.bf16.msra.mxu0 %v3245
        %4386 = vmatprep.mubr.bf16.mxu0 %v4190
        %4387 = vmatmul.mubr.bf16.gmra.mrb[0].mxu0 %v4189
        %v4388 = vpop.f32.mrb[0].mxu0
        %v4389 = vadd.f32 %v4336, %v4388
        %v4390 = vpop.f32.mrb[0].mxu0
        %v4391 = vadd.f32 %v4338, %v4390
        %v4392 = vpop.f32.mrb[0].mxu0
        %v4393 = vadd.f32 %v4340, %v4392
        %v4394 = vpop.f32.mrb[0].mxu0
        %v4395 = vadd.f32 %v4342, %v4394
        %4396 = vmatprep.mubr.bf16.mxu0 %v4194
        %4397 = vmatmul.mubr.bf16.gmra.mrb[0].mxu0 %v4193
        %v4398 = vpop.f32.mrb[0].mxu0
        %v4399 = vadd.f32 %v4346, %v4398
        %v4400 = vpop.f32.mrb[0].mxu0
        %v4401 = vadd.f32 %v4348, %v4400
        %v4402 = vpop.f32.mrb[0].mxu0
        %v4403 = vadd.f32 %v4350, %v4402
        %v4404 = vpop.f32.mrb[0].mxu0
        %v4405 = vadd.f32 %v4352, %v4404
        %4406 = vdwg.mxu0
        %v4408 = vlaneseq
        %v4409 = vshrl.u32 %v4408, 7
        %v4410 = vsub.s32 0, %v4409
        %v4411 = vrot.slane %v3249, %v4410
        %v4412 = vlaneseq
        %v4413 = vshrl.u32 %v4412, 7
        %v4414 = vsub.s32 1, %v4413
        %v4415 = vrot.slane %v3249, %v4414
        %v4416 = vlaneseq
        %v4417 = vshrl.u32 %v4416, 7
        %v4418 = vsub.s32 2, %v4417
        %v4419 = vrot.slane %v3249, %v4418
        %v4420 = vlaneseq
        %v4421 = vshrl.u32 %v4420, 7
        %v4422 = vsub.s32 3, %v4421
        %v4423 = vrot.slane %v3249, %v4422
        %v4428 = vmul.f32 %v4283, %v4411
        %v4429 = vmul.f32 %v4285, %v4415
        %v4430 = vmul.f32 %v4389, %v4419
        %v4431 = vmul.f32 %v4391, %v4423
        %v4432 = vmul.f32 %v4287, %v4411
        %v4433 = vmul.f32 %v4289, %v4415
        %v4434 = vmul.f32 %v4393, %v4419
        %v4435 = vmul.f32 %v4395, %v4423
        %v4436 = vmul.f32 %v4293, %v4411
        %v4437 = vmul.f32 %v4295, %v4415
        %v4438 = vmul.f32 %v4399, %v4419
        %v4439 = vmul.f32 %v4401, %v4423
        %v4440 = vmul.f32 %v4297, %v4411
        %v4441 = vmul.f32 %v4299, %v4415
        %v4442 = vmul.f32 %v4403, %v4419
        %v4443 = vmul.f32 %v4405, %v4423
        %v4444 = vadd.f32 %v2646, %v4428
        %v4445 = vadd.f32 %v2647, %v4429
        %v4446 = vadd.f32 %v2648, %v4430
        %v4447 = vadd.f32 %v2649, %v4431
        %v4448 = vadd.f32 %v2650, %v4432
        %v4449 = vadd.f32 %v2651, %v4433
        %v4450 = vadd.f32 %v2652, %v4434
        %v4451 = vadd.f32 %v2653, %v4435
        %v4452 = vadd.f32 %v2654, %v4436
        %v4453 = vadd.f32 %v2655, %v4437
        %v4454 = vadd.f32 %v2656, %v4438
        %v4455 = vadd.f32 %v2657, %v4439
        %v4456 = vadd.f32 %v2658, %v4440
        %v4457 = vadd.f32 %v2659, %v4441
        %v4458 = vadd.f32 %v2660, %v4442
        %v4459 = vadd.f32 %v2661, %v4443
        %4460 = vst [vmem:[#allocation2] sm:$0xff] %v4444
        %4461 = vst [vmem:[#allocation2 + $0x8] sm:$0xff] %v4445
        %4462 = vst [vmem:[#allocation2 + $0x10] sm:$0xff] %v4446
        %4463 = vst [vmem:[#allocation2 + $0x18] sm:$0xff] %v4447
        %4464 = vst [vmem:[#allocation2 + $0x20] sm:$0xff] %v4448
        %4465 = vst [vmem:[#allocation2 + $0x28] sm:$0xff] %v4449
        %4466 = vst [vmem:[#allocation2 + $0x30] sm:$0xff] %v4450
        %4467 = vst [vmem:[#allocation2 + $0x38] sm:$0xff] %v4451
        %4468 = vst [vmem:[#allocation2 + $0x40] sm:$0xff] %v4452
        %4469 = vst [vmem:[#allocation2 + $0x48] sm:$0xff] %v4453
        %4470 = vst [vmem:[#allocation2 + $0x50] sm:$0xff] %v4454
        %4471 = vst [vmem:[#allocation2 + $0x58] sm:$0xff] %v4455
        %4472 = vst [vmem:[#allocation2 + $0x60] sm:$0xff] %v4456
        %4473 = vst [vmem:[#allocation2 + $0x68] sm:$0xff] %v4457
        %4474 = vst [vmem:[#allocation2 + $0x70] sm:$0xff] %v4458
        %4475 = vst [vmem:[#allocation2 + $0x78] sm:$0xff] %v4459
        %p4476 = scmp.eq.s32.totalorder %s25, 5
        // Predicated region
        $region89: #{remixer_forward.1} parent=55 // pred_check
          %p4477 = pneg %p4476
        $region90: #{remixer_forward.1} parent=55 // pred_check_branch
          %4479 = sbr.rel (%p4477) target = $region92
        $region91: #{remixer_forward.1} parent=55 // pred_region
          %v4480 = vld [vmem:[#allocation2] sm:$0xff]
          %v4481 = vld [vmem:[#allocation2 + $0x8] sm:$0xff]
          %v4482 = vld [vmem:[#allocation2 + $0x10] sm:$0xff]
          %v4483 = vld [vmem:[#allocation2 + $0x18] sm:$0xff]
          %v4484 = vld [vmem:[#allocation2 + $0x20] sm:$0xff]
          %v4485 = vld [vmem:[#allocation2 + $0x28] sm:$0xff]
          %v4486 = vld [vmem:[#allocation2 + $0x30] sm:$0xff]
          %v4487 = vld [vmem:[#allocation2 + $0x38] sm:$0xff]
          %v4488 = vld [vmem:[#allocation2 + $0x40] sm:$0xff]
          %v4489 = vld [vmem:[#allocation2 + $0x48] sm:$0xff]
          %v4490 = vld [vmem:[#allocation2 + $0x50] sm:$0xff]
          %v4491 = vld [vmem:[#allocation2 + $0x58] sm:$0xff]
          %v4492 = vld [vmem:[#allocation2 + $0x60] sm:$0xff]
          %v4493 = vld [vmem:[#allocation2 + $0x68] sm:$0xff]
          %v4494 = vld [vmem:[#allocation2 + $0x70] sm:$0xff]
          %v4495 = vld [vmem:[#allocation2 + $0x78] sm:$0xff]
          %v4496 = vadd.f32 %v4480, %v4484
          %v4497 = vrot.slane %v4496, 4
          %v4498 = vadd.f32 %v4496, %v4497
          %v4499 = vrot.slane %v4498, 2
          %v4500 = vadd.f32 %v4498, %v4499
          %v4501 = vrot.slane %v4500, 1
          %v4502 = vadd.f32 %v4500, %v4501
          %v4503 = vadd.f32 %v4481, %v4485
          %v4504 = vrot.slane %v4503, 4
          %v4505 = vadd.f32 %v4503, %v4504
          %v4506 = vrot.slane %v4505, 2
          %v4507 = vadd.f32 %v4505, %v4506
          %v4508 = vrot.slane %v4507, 1
          %v4509 = vadd.f32 %v4507, %v4508
          %v4510 = vadd.f32 %v4482, %v4486
          %v4511 = vrot.slane %v4510, 4
          %v4512 = vadd.f32 %v4510, %v4511
          %v4513 = vrot.slane %v4512, 2
          %v4514 = vadd.f32 %v4512, %v4513
          %v4515 = vrot.slane %v4514, 1
          %v4516 = vadd.f32 %v4514, %v4515
          %v4517 = vadd.f32 %v4483, %v4487
          %v4518 = vrot.slane %v4517, 4
          %v4519 = vadd.f32 %v4517, %v4518
          %v4520 = vrot.slane %v4519, 2
          %v4521 = vadd.f32 %v4519, %v4520
          %v4522 = vrot.slane %v4521, 1
          %v4523 = vadd.f32 %v4521, %v4522
          %v4524 = vadd.f32 %v4488, %v4492
          %v4525 = vrot.slane %v4524, 4
          %v4526 = vadd.f32 %v4524, %v4525
          %v4527 = vrot.slane %v4526, 2
          %v4528 = vadd.f32 %v4526, %v4527
          %v4529 = vrot.slane %v4528, 1
          %v4530 = vadd.f32 %v4528, %v4529
          %v4531 = vadd.f32 %v4489, %v4493
          %v4532 = vrot.slane %v4531, 4
          %v4533 = vadd.f32 %v4531, %v4532
          %v4534 = vrot.slane %v4533, 2
          %v4535 = vadd.f32 %v4533, %v4534
          %v4536 = vrot.slane %v4535, 1
          %v4537 = vadd.f32 %v4535, %v4536
          %v4538 = vadd.f32 %v4490, %v4494
          %v4539 = vrot.slane %v4538, 4
          %v4540 = vadd.f32 %v4538, %v4539
          %v4541 = vrot.slane %v4540, 2
          %v4542 = vadd.f32 %v4540, %v4541
          %v4543 = vrot.slane %v4542, 1
          %v4544 = vadd.f32 %v4542, %v4543
          %v4545 = vadd.f32 %v4491, %v4495
          %v4546 = vrot.slane %v4545, 4
          %v4547 = vadd.f32 %v4545, %v4546
          %v4548 = vrot.slane %v4547, 2
          %v4549 = vadd.f32 %v4547, %v4548
          %v4550 = vrot.slane %v4549, 1
          %v4551 = vadd.f32 %v4549, %v4550
          %v4552 = vrcp.pop 16.0
          %v4553 = vmul.f32 %v4502, %v4552
          %v4554 = vmul.f32 %v4509, %v4552
          %v4555 = vmul.f32 %v4516, %v4552
          %v4556 = vmul.f32 %v4523, %v4552
          %v4557 = vmul.f32 %v4530, %v4552
          %v4558 = vmul.f32 %v4537, %v4552
          %v4559 = vmul.f32 %v4544, %v4552
          %v4560 = vmul.f32 %v4551, %v4552
          %v4561 = vpack.c.bf16 %v4553, %v4553
          %v4562 = vpack.c.bf16 %v4554, %v4554
          %v4563 = vpack.c.bf16 %v4555, %v4555
          %v4564 = vpack.c.bf16 %v4556, %v4556
          %v4565 = vpack.c.bf16 %v4557, %v4557
          %v4566 = vpack.c.bf16 %v4558, %v4558
          %v4567 = vpack.c.bf16 %v4559, %v4559
          %v4568 = vpack.c.bf16 %v4560, %v4560
          %v4569 = vld [vmem:[#allocation12] sm:$0xf]
          %v4570 = vld [vmem:[#allocation12 + $0x4] sm:$0xf]
          %v4571 = vld [vmem:[#allocation12 + $0x8] sm:$0xf]
          %v4572 = vld [vmem:[#allocation12 + $0xc] sm:$0xf]
          %v4573 = vld [vmem:[#allocation12 + $0x10] sm:$0xf]
          %v4574 = vld [vmem:[#allocation12 + $0x14] sm:$0xf]
          %v4575 = vld [vmem:[#allocation12 + $0x18] sm:$0xf]
          %v4576 = vld [vmem:[#allocation12 + $0x1c] sm:$0xf]
          %v4577 = vld [vmem:[#allocation12 + $0x20] sm:$0xf]
          %v4578 = vld [vmem:[#allocation12 + $0x24] sm:$0xf]
          %v4579 = vld [vmem:[#allocation12 + $0x28] sm:$0xf]
          %v4580 = vld [vmem:[#allocation12 + $0x2c] sm:$0xf]
          %v4581 = vld [vmem:[#allocation12 + $0x30] sm:$0xf]
          %v4582 = vld [vmem:[#allocation12 + $0x34] sm:$0xf]
          %v4583 = vld [vmem:[#allocation12 + $0x38] sm:$0xf]
          %v4584 = vld [vmem:[#allocation12 + $0x3c] sm:$0xf]
          %v4585 = vld [vmem:[#allocation12 + $0x40] sm:$0xf]
          %v4586 = vld [vmem:[#allocation12 + $0x44] sm:$0xf]
          %v4587 = vld [vmem:[#allocation12 + $0x48] sm:$0xf]
          %v4588 = vld [vmem:[#allocation12 + $0x4c] sm:$0xf]
          %v4589 = vld [vmem:[#allocation12 + $0x50] sm:$0xf]
          %v4590 = vld [vmem:[#allocation12 + $0x54] sm:$0xf]
          %v4591 = vld [vmem:[#allocation12 + $0x58] sm:$0xf]
          %v4592 = vld [vmem:[#allocation12 + $0x5c] sm:$0xf]
          %v4593 = vld [vmem:[#allocation12 + $0x60] sm:$0xf]
          %v4594 = vld [vmem:[#allocation12 + $0x64] sm:$0xf]
          %v4595 = vld [vmem:[#allocation12 + $0x68] sm:$0xf]
          %v4596 = vld [vmem:[#allocation12 + $0x6c] sm:$0xf]
          %v4597 = vld [vmem:[#allocation12 + $0x70] sm:$0xf]
          %v4598 = vld [vmem:[#allocation12 + $0x74] sm:$0xf]
          %v4599 = vld [vmem:[#allocation12 + $0x78] sm:$0xf]
          %v4600 = vld [vmem:[#allocation12 + $0x7c] sm:$0xf]
          %v4601 = vld [vmem:[#allocation12 + $0x80] sm:$0xf]
          %v4602 = vld [vmem:[#allocation12 + $0x84] sm:$0xf]
          %v4603 = vld [vmem:[#allocation12 + $0x88] sm:$0xf]
          %v4604 = vld [vmem:[#allocation12 + $0x8c] sm:$0xf]
          %v4605 = vld [vmem:[#allocation12 + $0x90] sm:$0xf]
          %v4606 = vld [vmem:[#allocation12 + $0x94] sm:$0xf]
          %v4607 = vld [vmem:[#allocation12 + $0x98] sm:$0xf]
          %v4608 = vld [vmem:[#allocation12 + $0x9c] sm:$0xf]
          %v4609 = vld [vmem:[#allocation12 + $0xa0] sm:$0xf]
          %v4610 = vld [vmem:[#allocation12 + $0xa4] sm:$0xf]
          %v4611 = vld [vmem:[#allocation12 + $0xa8] sm:$0xf]
          %v4612 = vld [vmem:[#allocation12 + $0xac] sm:$0xf]
          %v4613 = vld [vmem:[#allocation12 + $0xb0] sm:$0xf]
          %v4614 = vld [vmem:[#allocation12 + $0xb4] sm:$0xf]
          %v4615 = vld [vmem:[#allocation12 + $0xb8] sm:$0xf]
          %v4616 = vld [vmem:[#allocation12 + $0xbc] sm:$0xf]
          %v4617 = vld [vmem:[#allocation12 + $0xc0] sm:$0xf]
          %v4618 = vld [vmem:[#allocation12 + $0xc4] sm:$0xf]
          %v4619 = vld [vmem:[#allocation12 + $0xc8] sm:$0xf]
          %v4620 = vld [vmem:[#allocation12 + $0xcc] sm:$0xf]
          %v4621 = vld [vmem:[#allocation12 + $0xd0] sm:$0xf]
          %v4622 = vld [vmem:[#allocation12 + $0xd4] sm:$0xf]
          %v4623 = vld [vmem:[#allocation12 + $0xd8] sm:$0xf]
          %v4624 = vld [vmem:[#allocation12 + $0xdc] sm:$0xf]
          %v4625 = vld [vmem:[#allocation12 + $0xe0] sm:$0xf]
          %v4626 = vld [vmem:[#allocation12 + $0xe4] sm:$0xf]
          %v4627 = vld [vmem:[#allocation12 + $0xe8] sm:$0xf]
          %v4628 = vld [vmem:[#allocation12 + $0xec] sm:$0xf]
          %v4629 = vld [vmem:[#allocation12 + $0xf0] sm:$0xf]
          %v4630 = vld [vmem:[#allocation12 + $0xf4] sm:$0xf]
          %v4631 = vld [vmem:[#allocation12 + $0xf8] sm:$0xf]
          %v4632 = vld [vmem:[#allocation12 + $0xfc] sm:$0xf]
          %v4633 = vld [vmem:[#allocation13] sm:$0x1]
          %v4635 = vlaneseq
          %v4636 = vshrl.u32 %v4635, 7
          %v4637 = vsub.s32 0, %v4636
          %v4638 = vrot.slane %v4633, %v4637
          %v4648 = vunpack.c.l.b16 %v4561
          %v4649 = vunpack.c.l.b16 %v4562
          %v4650 = vunpack.c.l.b16 %v4563
          %v4651 = vunpack.c.l.b16 %v4564
          %v4652 = vunpack.c.l.b16 %v4565
          %v4653 = vunpack.c.l.b16 %v4566
          %v4654 = vunpack.c.l.b16 %v4567
          %v4655 = vunpack.c.l.b16 %v4568
          %vm4656 = vcmask 1041409
          %v4657 = vsel %vm4656, %v4652, %v4648
          %v4658 = vsel %vm4656, %v4653, %v4649
          %v4659 = vsel %vm4656, %v4654, %v4650
          %v4660 = vsel %vm4656, %v4655, %v4651
          %v4661 = vpack.c.b16 %v4657, %v4657
          %v4662 = vpack.c.b16 %v4658, %v4658
          %v4663 = vpack.c.b16 %v4659, %v4659
          %v4664 = vpack.c.b16 %v4660, %v4660
          %v4733 = vunpack.c.l.b16 %v4569
          %v4734 = vunpack.c.l.b16 %v4570
          %v4735 = vunpack.c.l.b16 %v4571
          %v4736 = vunpack.c.l.b16 %v4572
          %v4737 = vunpack.c.l.b16 %v4573
          %v4738 = vunpack.c.l.b16 %v4574
          %v4739 = vunpack.c.l.b16 %v4575
          %v4740 = vunpack.c.l.b16 %v4576
          %v4741 = vunpack.c.l.b16 %v4577
          %v4742 = vunpack.c.l.b16 %v4578
          %v4743 = vunpack.c.l.b16 %v4579
          %v4744 = vunpack.c.l.b16 %v4580
          %v4745 = vunpack.c.l.b16 %v4581
          %v4746 = vunpack.c.l.b16 %v4582
          %v4747 = vunpack.c.l.b16 %v4583
          %v4748 = vunpack.c.l.b16 %v4584
          %v4749 = vunpack.c.l.b16 %v4585
          %v4750 = vunpack.c.l.b16 %v4586
          %v4751 = vunpack.c.l.b16 %v4587
          %v4752 = vunpack.c.l.b16 %v4588
          %v4753 = vunpack.c.l.b16 %v4589
          %v4754 = vunpack.c.l.b16 %v4590
          %v4755 = vunpack.c.l.b16 %v4591
          %v4756 = vunpack.c.l.b16 %v4592
          %v4757 = vunpack.c.l.b16 %v4593
          %v4758 = vunpack.c.l.b16 %v4594
          %v4759 = vunpack.c.l.b16 %v4595
          %v4760 = vunpack.c.l.b16 %v4596
          %v4761 = vunpack.c.l.b16 %v4597
          %v4762 = vunpack.c.l.b16 %v4598
          %v4763 = vunpack.c.l.b16 %v4599
          %v4764 = vunpack.c.l.b16 %v4600
          %v4765 = vunpack.c.l.b16 %v4601
          %v4766 = vunpack.c.l.b16 %v4602
          %v4767 = vunpack.c.l.b16 %v4603
          %v4768 = vunpack.c.l.b16 %v4604
          %v4769 = vunpack.c.l.b16 %v4605
          %v4770 = vunpack.c.l.b16 %v4606
          %v4771 = vunpack.c.l.b16 %v4607
          %v4772 = vunpack.c.l.b16 %v4608
          %v4773 = vunpack.c.l.b16 %v4609
          %v4774 = vunpack.c.l.b16 %v4610
          %v4775 = vunpack.c.l.b16 %v4611
          %v4776 = vunpack.c.l.b16 %v4612
          %v4777 = vunpack.c.l.b16 %v4613
          %v4778 = vunpack.c.l.b16 %v4614
          %v4779 = vunpack.c.l.b16 %v4615
          %v4780 = vunpack.c.l.b16 %v4616
          %v4781 = vunpack.c.l.b16 %v4617
          %v4782 = vunpack.c.l.b16 %v4618
          %v4783 = vunpack.c.l.b16 %v4619
          %v4784 = vunpack.c.l.b16 %v4620
          %v4785 = vunpack.c.l.b16 %v4621
          %v4786 = vunpack.c.l.b16 %v4622
          %v4787 = vunpack.c.l.b16 %v4623
          %v4788 = vunpack.c.l.b16 %v4624
          %v4789 = vunpack.c.l.b16 %v4625
          %v4790 = vunpack.c.l.b16 %v4626
          %v4791 = vunpack.c.l.b16 %v4627
          %v4792 = vunpack.c.l.b16 %v4628
          %v4793 = vunpack.c.l.b16 %v4629
          %v4794 = vunpack.c.l.b16 %v4630
          %v4795 = vunpack.c.l.b16 %v4631
          %v4796 = vunpack.c.l.b16 %v4632
          %v4797 = vpack.c.b16 %v4734, %v4733
          %v4798 = vpack.c.b16 %v4736, %v4735
          %v4799 = vpack.c.b16 %v4738, %v4737
          %v4800 = vpack.c.b16 %v4740, %v4739
          %v4801 = vpack.c.b16 %v4742, %v4741
          %v4802 = vpack.c.b16 %v4744, %v4743
          %v4803 = vpack.c.b16 %v4746, %v4745
          %v4804 = vpack.c.b16 %v4748, %v4747
          %v4805 = vpack.c.b16 %v4750, %v4749
          %v4806 = vpack.c.b16 %v4752, %v4751
          %v4807 = vpack.c.b16 %v4754, %v4753
          %v4808 = vpack.c.b16 %v4756, %v4755
          %v4809 = vpack.c.b16 %v4758, %v4757
          %v4810 = vpack.c.b16 %v4760, %v4759
          %v4811 = vpack.c.b16 %v4762, %v4761
          %v4812 = vpack.c.b16 %v4764, %v4763
          %v4813 = vpack.c.b16 %v4766, %v4765
          %v4814 = vpack.c.b16 %v4768, %v4767
          %v4815 = vpack.c.b16 %v4770, %v4769
          %v4816 = vpack.c.b16 %v4772, %v4771
          %v4817 = vpack.c.b16 %v4774, %v4773
          %v4818 = vpack.c.b16 %v4776, %v4775
          %v4819 = vpack.c.b16 %v4778, %v4777
          %v4820 = vpack.c.b16 %v4780, %v4779
          %v4821 = vpack.c.b16 %v4782, %v4781
          %v4822 = vpack.c.b16 %v4784, %v4783
          %v4823 = vpack.c.b16 %v4786, %v4785
          %v4824 = vpack.c.b16 %v4788, %v4787
          %v4825 = vpack.c.b16 %v4790, %v4789
          %v4826 = vpack.c.b16 %v4792, %v4791
          %v4827 = vpack.c.b16 %v4794, %v4793
          %v4828 = vpack.c.b16 %v4796, %v4795
          %4861 = vmatprep.subr.bf16.mxu0 0
          %4862 = vmatpush1.bf16.msra.mxu0 %v4797
          %4863 = vmatprep.subr.bf16.mxu0 0
          %4864 = vmatpush1.bf16.msra.mxu0 %v4798
          %4865 = vmatprep.subr.bf16.mxu0 0
          %4866 = vmatpush1.bf16.msra.mxu0 %v4799
          %4867 = vmatprep.subr.bf16.mxu0 0
          %4868 = vmatpush1.bf16.msra.mxu0 %v4800
          %4869 = vmatprep.subr.bf16.mxu0 0
          %4870 = vmatpush1.bf16.msra.mxu0 %v4801
          %4871 = vmatprep.subr.bf16.mxu0 0
          %4872 = vmatpush1.bf16.msra.mxu0 %v4802
          %4873 = vmatprep.subr.bf16.mxu0 0
          %4874 = vmatpush1.bf16.msra.mxu0 %v4803
          %4875 = vmatprep.subr.bf16.mxu0 0
          %4876 = vmatpush1.bf16.msra.mxu0 %v4804
          %4877 = vmatprep.subr.bf16.mxu0 0
          %4878 = vmatpush1.bf16.msra.mxu0 %v4805
          %4879 = vmatprep.subr.bf16.mxu0 0
          %4880 = vmatpush1.bf16.msra.mxu0 %v4806
          %4881 = vmatprep.subr.bf16.mxu0 0
          %4882 = vmatpush1.bf16.msra.mxu0 %v4807
          %4883 = vmatprep.subr.bf16.mxu0 0
          %4884 = vmatpush1.bf16.msra.mxu0 %v4808
          %4885 = vmatprep.subr.bf16.mxu0 0
          %4886 = vmatpush1.bf16.msra.mxu0 %v4809
          %4887 = vmatprep.subr.bf16.mxu0 0
          %4888 = vmatpush1.bf16.msra.mxu0 %v4810
          %4889 = vmatprep.subr.bf16.mxu0 0
          %4890 = vmatpush1.bf16.msra.mxu0 %v4811
          %4891 = vmatprep.subr.bf16.mxu0 0
          %4892 = vmatpush1.bf16.msra.mxu0 %v4812
          %4893 = vmatprep.mubr.bf16.mxu0 %v4662
          %4894 = vmatmul.mubr.bf16.gmra.mrb[0].mxu0 %v4661
          %v4895 = vpop.f32.mrb[0].mxu0
          %v4896 = vadd.f32 %v4638, %v4895
          %v4897 = vpop.f32.mrb[0].mxu0
          %v4898 = vpop.f32.mrb[0].mxu0
          %v4899 = vpop.f32.mrb[0].mxu0
          %4900 = vdwg.mxu0
          %4901 = vmatprep.subr.bf16.mxu0 0
          %4902 = vmatpush1.bf16.msra.mxu0 %v4813
          %4903 = vmatprep.subr.bf16.mxu0 0
          %4904 = vmatpush1.bf16.msra.mxu0 %v4814
          %4905 = vmatprep.subr.bf16.mxu0 0
          %4906 = vmatpush1.bf16.msra.mxu0 %v4815
          %4907 = vmatprep.subr.bf16.mxu0 0
          %4908 = vmatpush1.bf16.msra.mxu0 %v4816
          %4909 = vmatprep.subr.bf16.mxu0 0
          %4910 = vmatpush1.bf16.msra.mxu0 %v4817
          %4911 = vmatprep.subr.bf16.mxu0 0
          %4912 = vmatpush1.bf16.msra.mxu0 %v4818
          %4913 = vmatprep.subr.bf16.mxu0 0
          %4914 = vmatpush1.bf16.msra.mxu0 %v4819
          %4915 = vmatprep.subr.bf16.mxu0 0
          %4916 = vmatpush1.bf16.msra.mxu0 %v4820
          %4917 = vmatprep.subr.bf16.mxu0 0
          %4918 = vmatpush1.bf16.msra.mxu0 %v4821
          %4919 = vmatprep.subr.bf16.mxu0 0
          %4920 = vmatpush1.bf16.msra.mxu0 %v4822
          %4921 = vmatprep.subr.bf16.mxu0 0
          %4922 = vmatpush1.bf16.msra.mxu0 %v4823
          %4923 = vmatprep.subr.bf16.mxu0 0
          %4924 = vmatpush1.bf16.msra.mxu0 %v4824
          %4925 = vmatprep.subr.bf16.mxu0 0
          %4926 = vmatpush1.bf16.msra.mxu0 %v4825
          %4927 = vmatprep.subr.bf16.mxu0 0
          %4928 = vmatpush1.bf16.msra.mxu0 %v4826
          %4929 = vmatprep.subr.bf16.mxu0 0
          %4930 = vmatpush1.bf16.msra.mxu0 %v4827
          %4931 = vmatprep.subr.bf16.mxu0 0
          %4932 = vmatpush1.bf16.msra.mxu0 %v4828
          %4933 = vmatprep.mubr.bf16.mxu0 %v4664
          %4934 = vmatmul.mubr.bf16.gmra.mrb[0].mxu0 %v4663
          %v4935 = vpop.f32.mrb[0].mxu0
          %v4936 = vadd.f32 %v4896, %v4935
          %v4937 = vpop.f32.mrb[0].mxu0
          %v4938 = vpop.f32.mrb[0].mxu0
          %v4939 = vpop.f32.mrb[0].mxu0
          %4940 = vdwg.mxu0
          %4941 = vst [vmem:[#allocation15] sm:$0x3] %v4936
        $region92: #{remixer_forward.1} parent=55 // pred_fallthru
          _
        // Predicated region
        $region93: #{remixer_forward.1} parent=55 // pred_check
          %p4942 = pneg %p242
        $region94: #{remixer_forward.1} parent=55 // pred_check_branch
          %4944 = sbr.rel (%p4942) target = $region96
        $region95: #{remixer_forward.1} parent=55 // pred_region
          %s4946 = ssub.s32 32, 32
          %4947 = vsyncadd [#allocation5], %s4946
          %s4949 = sshll.u32 [#allocation15], 4
          %s4950 = int_to_ptr.vmem [resolvable:$true] %s4949
          %4952 = dma.vmem_to_hbm [thread:$0]  %s4950, 32, %s9, [#allocation5]
        $region96: #{remixer_forward.1} parent=55 // pred_fallthru
          _
        // Predicated region
        $region97: #{remixer_forward.1} parent=55 // pred_check
          %p4953 = pneg %p242
        $region98: #{remixer_forward.1} parent=55 // pred_check_branch
          %4955 = sbr.rel (%p4953) target = $region100
        $region99: #{remixer_forward.1} parent=55 // pred_region
          %4956 = dma.done [#allocation5], 32
        $region100: #{remixer_forward.1} parent=55 // pred_fallthru
          _
      $region56: #{remixer_forward.1} parent=5 // pred_fallthru
        _
      %p4957 = scmp.le.s32.totalorder 2, %s20
      // Predicated region
      $region101: #{remixer_forward.1} parent=5 // pred_check
        %p4958 = pneg %p4957
      $region102: #{remixer_forward.1} parent=5 // pred_check_branch
        %4960 = sbr.rel (%p4958) target = $region104
      $region103: #{remixer_forward.1} parent=5 // pred_region
        %s4961 = ssub.s32 %s20, 2
      $region104: #{remixer_forward.1} parent=5 // pred_fallthru
        _
    $region6: #{remixer_forward.1} parent=1 // loop_footer
      %s24 = sadd.s32 1, %s20
    $region7: #{remixer_forward.1} parent=1 // loop_footer_branch
      %19 = sbr.rel target = $region3
    $region8: #{remixer_forward.1} parent=1 // loop_exit
      _
    %4962 = vsyncpa [#allocation4], 1
    %s4963 = scalar_lea.sflag [#allocation4], 1
    %4964 = vsyncpa %s4963, 1
    %4965 = vsyncpa [#allocation8], 1
    %4966 = vsyncpa [#allocation14], 1
    %4967 = vsyncpa [#allocation5], 1
    %s4968 = scalar_lea.sflag [#allocation5], 1
    %4969 = vsyncpa %s4968, 1
    %4970 = vsyncpa [#allocation6], 1
    %s4971 = scalar_lea.sflag [#allocation6], 1
    %4972 = vsyncpa %s4971, 1

</llo_original>
